<compile_context>
chip_gen: v7x
topology: tpu7x:2x2x1
jax: 0.10.0
libtpu: 0.0.40
codegen_flags: <defaults>
</compile_context>

<pallas_src>
import math

import numpy as np

import jax
import jax.numpy as jnp
from jax.experimental import pallas as pl
from jax.experimental.pallas import tpu as pltpu

ATTENTION_DIM = 128
NUM_HEADS = 8
HEAD_DIM = ATTENTION_DIM // NUM_HEADS
MAX_BLOCK_B = 1024       # ~15 MiB of f32 intermediates per tile -> fits 48 MiB scoped VMEM (v7x-safe)
TARGET_GRID_STEPS = 4    # aim for >= 4 grid steps (v7x megacore sharding + pipeline overlap)


def _round_up(x, m):
    return ((x + m - 1) // m) * m


def _cross_modal_attention_kernel(
    lig_ref, prot_ref, int_ref,
    wfl_ref, bfl_ref, wfp_ref, bfp_ref, wfi_ref, bfi_ref,
    seg_ref, c0_ref, c1_ref, c2_ref,
    wfold_ref, bfold_ref, mean_ref,
    out_ref, attw_ref,
):
    f32, bf16 = jnp.float32, jnp.bfloat16
    D = ATTENTION_DIM

    # --- fused (input_proj o QKV) projection: one bf16 GEMM per modality token ---
    qkv = [
        jnp.dot(lig_ref[...].astype(bf16), wfl_ref[...], preferred_element_type=f32) + bfl_ref[...],
        jnp.dot(prot_ref[...].astype(bf16), wfp_ref[...], preferred_element_type=f32) + bfp_ref[...],
        jnp.dot(int_ref[...].astype(bf16), wfi_ref[...], preferred_element_type=f32) + bfi_ref[...],
    ]
    Q = [x[:, 0:D] for x in qkv]          # 128-lane aligned slices (cheap)
    K = [x[:, D:2 * D] for x in qkv]
    V = [x[:, 2 * D:3 * D] for x in qkv]

    # --- per-head scores, one (TB,384)x(384,24) GEMM per key token j ---
    # seg_ref = block_diag(seg, seg, seg) / sqrt(head_dim); S[j][:, i*8 + h] = <Q_i, K_j>_head_h * scale
    seg_bd = seg_ref[...]
    S = []
    for j in range(3):
        x = jnp.concatenate([(Q[0] * K[j]).astype(bf16),
                             (Q[1] * K[j]).astype(bf16),
                             (Q[2] * K[j]).astype(bf16)], axis=1)          # (TB, 384) bf16
        S.append(jnp.dot(x, seg_bd, preferred_element_type=f32))           # (TB, 24)  f32

    # --- softmax over the 3 key tokens (elementwise across the three (TB,24) tensors, f32) ---
    m = jnp.maximum(jnp.maximum(S[0], S[1]), S[2])
    e = [jnp.exp(s - m) for s in S]
    inv = pl.reciprocal(e[0] + e[1] + e[2])        # exact; 1 reciprocal + 3 muls vs 9 divides
    p = [ej * inv for ej in e]                     # (TB, 24), columns i*8 + h
    p_cat = jnp.concatenate(p, axis=1)             # (TB, 72), columns j*24 + i*8 + h
    p_bf = p_cat.astype(bf16)

    # --- attention-weighted values: broadcast probs over head dims, reduce over keys ---
    v_cat = jnp.concatenate(V, axis=1)             # (TB, 384) f32
    cmats = (c0_ref[...], c1_ref[...], c2_ref[...])
    ctx = []
    for i in range(3):
        pf = jnp.dot(p_bf, cmats[i], preferred_element_type=f32)           # (TB, 384)
        pv = pf * v_cat
        ctx.append((pv[:, 0:D] + pv[:, D:2 * D] + pv[:, 2 * D:3 * D]).astype(bf16))

    # --- fused (mha_out o output_proj): single (TB,384)x(384,128) GEMM ---
    ctx_cat = jnp.concatenate(ctx, axis=1)         # (TB, 384) bf16
    out_ref[...] = (jnp.dot(ctx_cat, wfold_ref[...], preferred_element_type=f32)
                    + bfold_ref[...])

    # --- head-averaged attention weights (16 lanes; wrapper slices to 9), f32 path ---
    attw_ref[...] = jnp.dot(p_cat, mean_ref[...], preferred_element_type=f32)


def cross_modal_attention(lig, prot, inter, params, *, block_b=MAX_BLOCK_B):
    """Returns (output (B, D), attention_weights (B, 3, 3))."""
    f32, bf16 = jnp.float32, jnp.bfloat16
    D, H = ATTENTION_DIM, NUM_HEADS
    B = lig.shape[0]
    lig_dim, prot_dim, int_dim = lig.shape[1], prot.shape[1], inter.shape[1]

    # batch tile: multiple of 8 sublanes, capped at block_b, sized so nb >= TARGET_GRID_STEPS
    # whenever the batch allows it (keeps both v7x TensorCores busy on the "parallel" axis)
    TB = min(_round_up(block_b, 8),
             max(8, _round_up((B + TARGET_GRID_STEPS - 1) // TARGET_GRID_STEPS, 8)))
    B_pad = _round_up(B, TB)
    nb = B_pad // TB

    def pad_b(x):
        x = jnp.asarray(x, f32)
        return jnp.pad(x, ((0, B_pad - B), (0, 0)))

    def t(w):      # torch (out, in) -> (in, out) so the kernel does x @ W
        return jnp.asarray(w, f32).T

    # ---- host-side weight folding ----
    wqkv = t(params["in_proj_w"])                        # (D, 3D) = [Wq^T | Wk^T | Wv^T]
    bqkv = jnp.asarray(params["in_proj_b"], f32)         # (3D,)

    def fold_input(w, b):                                # input_proj folded into QKV
        wf = (t(w) @ wqkv).astype(bf16)                  # (in_dim, 3D) bf16
        bf = (jnp.asarray(b, f32) @ wqkv + bqkv).reshape(1, -1)   # (1, 3D) f32
        return wf, bf

    wfl, bfl = fold_input(params["wl"], params["bl"])
    wfp, bfp = fold_input(params["wp"], params["bp"])
    wfi, bfi = fold_input(params["wi"], params["bi"])

    wo_t = t(params["mha_out_w"])                        # (D, D)
    bo = jnp.asarray(params["mha_out_b"], f32)
    wout_t = t(params["out_w"])                          # (3D, D)
    bout = jnp.asarray(params["out_b"], f32)
    # mha out_proj folded into output_proj: block_diag(wo_t, wo_t, wo_t) @ wout_t
    w_fold = jnp.concatenate([wo_t @ wout_t[i * D:(i + 1) * D] for i in range(3)],
                             axis=0).astype(bf16)        # (3D, D) bf16
    b_fold = (jnp.concatenate([bo, bo, bo]) @ wout_t + bout).reshape(1, -1)    # (1, D) f32

    # ---- constant head-segment matrices (host-side numpy; entries exact in bf16) ----
    seg = (np.arange(D)[:, None] // HEAD_DIM == np.arange(H)[None, :]).astype(np.float32)
    scale = 1.0 / math.sqrt(HEAD_DIM)
    seg_bd = jnp.asarray(np.kron(np.eye(3, dtype=np.float32), seg) * scale, bf16)   # (384, 24)

    cmats = []
    for i in range(3):
        e_i = np.zeros((3 * H, D), np.float32)
        e_i[i * H:(i + 1) * H, :] = seg.T
        cmats.append(jnp.asarray(np.kron(np.eye(3, dtype=np.float32), e_i), bf16))  # (72, 384)

    mean_mat = np.zeros((9 * H, 16), np.float32)         # 9 real cols + 7 lane pad
    for j in range(3):
        for i in range(3):
            mean_mat[j * 3 * H + i * H: j * 3 * H + (i + 1) * H, i * 3 + j] = 1.0 / H
    mean_mat = jnp.asarray(mean_mat)                     # (72, 16) f32

    weights = [wfl, bfl, wfp, bfp, wfi, bfi,
               seg_bd, cmats[0], cmats[1], cmats[2],
               w_fold, b_fold, mean_mat]

    act_specs = [
        pl.BlockSpec((TB, lig_dim), lambda b: (b, 0)),
        pl.BlockSpec((TB, prot_dim), lambda b: (b, 0)),
        pl.BlockSpec((TB, int_dim), lambda b: (b, 0)),
    ]
    out_specs = (pl.BlockSpec((TB, D), lambda b: (b, 0)),
                 pl.BlockSpec((TB, 16), lambda b: (b, 0)))

    # scoped-VMEM limit: ~75% of per-core capacity (96 MiB on v5e/v6e, 48 MiB on v7x)
    try:
        vmem_cap = int(pltpu.get_tpu_info().vmem_capacity_bytes)
    except Exception:
        vmem_cap = 64 << 20
    vmem_limit = min(vmem_cap * 3 // 4, 100 << 20)

    # advisory cost estimate for XLA scheduling
    flops_row = 2 * ((lig_dim + prot_dim + int_dim) * 3 * D   # folded QKV projections
                     + 3 * 3 * D * 3 * H                      # head scores
                     + 3 * 9 * H * 3 * D                      # prob -> value broadcast
                     + 3 * D * D                              # folded output projection
                     + 9 * H * 16)                            # head-averaged attn weights
    in_bytes = (4 * B_pad * (lig_dim + prot_dim + int_dim)
                + sum(int(w.size) * w.dtype.itemsize for w in weights))
    out_bytes = 4 * B_pad * (D + 16)
    cost = pl.CostEstimate(flops=flops_row * B_pad,
                           transcendentals=B_pad * 9 * H,
                           bytes_accessed=in_bytes + out_bytes)

    def run(weight_pipeline_mode):
        if weight_pipeline_mode is None:
            w_specs = [pl.BlockSpec(w.shape, lambda b: (0, 0)) for w in weights]
        else:
            # grid-invariant blocks: single-buffer them (index never changes, so
            # double-buffering only doubles their VMEM footprint)
            w_specs = [pl.BlockSpec(w.shape, lambda b: (0, 0),
                                    pipeline_mode=weight_pipeline_mode)
                       for w in weights]
        return pl.pallas_call(
            _cross_modal_attention_kernel,
            out_shape=(jax.ShapeDtypeStruct((B_pad, D), f32),
                       jax.ShapeDtypeStruct((B_pad, 16), f32)),
            grid=(nb,),
            in_specs=act_specs + w_specs,
            out_specs=out_specs,
            compiler_params=pltpu.CompilerParams(
                dimension_semantics=("parallel",),
                vmem_limit_bytes=vmem_limit),
            cost_estimate=cost,
        )(pad_b(lig), pad_b(prot), pad_b(inter), *weights)

    try:
        out_pad, attw_pad = run(pl.Buffered(1))
    except Exception:
        # fall back to default double-buffering if this build rejects Buffered(1)
        out_pad, attw_pad = run(None)

    out = out_pad[:B]
    attw = attw_pad[:B, :9].reshape(B, 3, 3)
    return out, attw


def reference(lig, prot, inter, params):
    """Pure-JAX replica of the PyTorch forward (torch weight conventions)."""
    D, H, hd = ATTENTION_DIM, NUM_HEADS, HEAD_DIM
    B = lig.shape[0]
    t0 = lig @ params["wl"].T + params["bl"]
    t1 = prot @ params["wp"].T + params["bp"]
    t2 = inter @ params["wi"].T + params["bi"]
    combined = jnp.stack([t0, t1, t2], axis=1)  # (B, 3, D)

    wq = params["in_proj_w"][0 * D:1 * D]
    wk = params["in_proj_w"][1 * D:2 * D]
    wv = params["in_proj_w"][2 * D:3 * D]
    bq = params["in_proj_b"][0 * D:1 * D]
    bk = params["in_proj_b"][1 * D:2 * D]
    bv = params["in_proj_b"][2 * D:3 * D]

    q = combined @ wq.T + bq
    k = combined @ wk.T + bk
    v = combined @ wv.T + bv

    def split(x):  # (B, 3, D) -> (B, H, 3, hd)
        return x.reshape(B, 3, H, hd).transpose(0, 2, 1, 3)

    qh, kh, vh = split(q), split(k), split(v)
    scores = jnp.einsum("bhqd,bhkd->bhqk", qh, kh) / math.sqrt(hd)
    probs = jax.nn.softmax(scores, axis=-1)                 # (B, H, 3, 3)
    ctx = jnp.einsum("bhqk,bhkd->bhqd", probs, vh)          # (B, H, 3, hd)
    ctx = ctx.transpose(0, 2, 1, 3).reshape(B, 3, D)
    attended = ctx @ params["mha_out_w"].T + params["mha_out_b"]
    flat = attended.reshape(B, 3 * D)
    out = flat @ params["out_w"].T + params["out_b"]
    attw = probs.mean(axis=1)                               # (B, 3, 3)
    return out, attw


if __name__ == "__main__":
    D = ATTENTION_DIM
    LIG_DIM, PROT_DIM, INT_DIM = 32, 64, 48

    key = jax.random.PRNGKey(0)
    ks = jax.random.split(key, 20)
    f32 = jnp.float32

    params = {
        "wl": jax.random.normal(ks[0], (D, LIG_DIM), f32) * 0.1,
        "bl": jax.random.normal(ks[1], (D,), f32) * 0.01,
        "wp": jax.random.normal(ks[2], (D, PROT_DIM), f32) * 0.1,
        "bp": jax.random.normal(ks[3], (D,), f32) * 0.01,
        "wi": jax.random.normal(ks[4], (D, INT_DIM), f32) * 0.1,
        "bi": jax.random.normal(ks[5], (D,), f32) * 0.01,
        "in_proj_w": jax.random.normal(ks[6], (3 * D, D), f32) * 0.1,
        "in_proj_b": jax.random.normal(ks[7], (3 * D,), f32) * 0.01,
        "mha_out_w": jax.random.normal(ks[8], (D, D), f32) * 0.1,
        "mha_out_b": jax.random.normal(ks[9], (D,), f32) * 0.01,
        "out_w": jax.random.normal(ks[10], (D, 3 * D), f32) * 0.1,
        "out_b": jax.random.normal(ks[11], (D,), f32) * 0.01,
    }

    def check(B, k0, k1, k2):
        lig = jax.random.normal(k0, (B, LIG_DIM), f32)
        prot = jax.random.normal(k1, (B, PROT_DIM), f32)
        inter = jax.random.normal(k2, (B, INT_DIM), f32)
        out, attw = cross_modal_attention(lig, prot, inter, params)
        jax.block_until_ready((out, attw))
        ref_out, ref_attw = reference(lig, prot, inter, params)
        assert out.shape == (B, D) and attw.shape == (B, 3, 3)
        # bf16 GEMM operands -> tolerances loosened vs the f32 reference
        assert jnp.allclose(out, ref_out, atol=1e-1, rtol=5e-2), "output mismatch"
        assert jnp.allclose(attw, ref_attw, atol=1.5e-2, rtol=0.0), "attn weights mismatch"

    check(2, ks[12], ks[13], ks[14])     # tiny batch, single grid step
    check(37, ks[15], ks[16], ks[17])    # padded batch, multi-step grid

    print("KERNEL_OK")
</pallas_src>

<mosaic_0001>
module attributes {stable_mosaic.version = 11 : i64} {
  func.func @_cross_modal_attention_kernel(%arg0: i32, %arg1: memref<8x32xf32, #tpu.memory_space<vmem>>, %arg2: memref<8x64xf32, #tpu.memory_space<vmem>>, %arg3: memref<8x48xf32, #tpu.memory_space<vmem>>, %arg4: memref<32x384xbf16, #tpu.memory_space<vmem>>, %arg5: memref<1x384xf32, #tpu.memory_space<vmem>>, %arg6: memref<64x384xbf16, #tpu.memory_space<vmem>>, %arg7: memref<1x384xf32, #tpu.memory_space<vmem>>, %arg8: memref<48x384xbf16, #tpu.memory_space<vmem>>, %arg9: memref<1x384xf32, #tpu.memory_space<vmem>>, %arg10: memref<384x24xbf16, #tpu.memory_space<vmem>>, %arg11: memref<72x384xbf16, #tpu.memory_space<vmem>>, %arg12: memref<72x384xbf16, #tpu.memory_space<vmem>>, %arg13: memref<72x384xbf16, #tpu.memory_space<vmem>>, %arg14: memref<384x128xbf16, #tpu.memory_space<vmem>>, %arg15: memref<1x128xf32, #tpu.memory_space<vmem>>, %arg16: memref<72x16xf32, #tpu.memory_space<vmem>>, %arg17: memref<8x128xf32, #tpu.memory_space<vmem>>, %arg18: memref<8x16xf32, #tpu.memory_space<vmem>>) attributes {dimension_semantics = [#tpu.dimension_semantics<parallel>], iteration_bounds = array<i64: 1>, scalar_prefetch = 0 : i64, scratch_operands = 0 : i64, tpu.core_type = #tpu.core_type<tc>, window_params = [{transform_indices = @transform_0, window_bounds = array<i64: 8, 32>}, {transform_indices = @transform_1, window_bounds = array<i64: 8, 64>}, {transform_indices = @transform_2, window_bounds = array<i64: 8, 48>}, {pipeline_mode = #tpu.pipeline_mode<synchronous>, transform_indices = @transform_3, window_bounds = array<i64: 32, 384>}, {pipeline_mode = #tpu.pipeline_mode<synchronous>, transform_indices = @transform_4, window_bounds = array<i64: 1, 384>}, {pipeline_mode = #tpu.pipeline_mode<synchronous>, transform_indices = @transform_5, window_bounds = array<i64: 64, 384>}, {pipeline_mode = #tpu.pipeline_mode<synchronous>, transform_indices = @transform_6, window_bounds = array<i64: 1, 384>}, {pipeline_mode = #tpu.pipeline_mode<synchronous>, transform_indices = @transform_7, window_bounds = array<i64: 48, 384>}, {pipeline_mode = #tpu.pipeline_mode<synchronous>, transform_indices = @transform_8, window_bounds = array<i64: 1, 384>}, {pipeline_mode = #tpu.pipeline_mode<synchronous>, transform_indices = @transform_9, window_bounds = array<i64: 384, 24>}, {pipeline_mode = #tpu.pipeline_mode<synchronous>, transform_indices = @transform_10, window_bounds = array<i64: 72, 384>}, {pipeline_mode = #tpu.pipeline_mode<synchronous>, transform_indices = @transform_11, window_bounds = array<i64: 72, 384>}, {pipeline_mode = #tpu.pipeline_mode<synchronous>, transform_indices = @transform_12, window_bounds = array<i64: 72, 384>}, {pipeline_mode = #tpu.pipeline_mode<synchronous>, transform_indices = @transform_13, window_bounds = array<i64: 384, 128>}, {pipeline_mode = #tpu.pipeline_mode<synchronous>, transform_indices = @transform_14, window_bounds = array<i64: 1, 128>}, {pipeline_mode = #tpu.pipeline_mode<synchronous>, transform_indices = @transform_15, window_bounds = array<i64: 72, 16>}, {transform_indices = @transform_16, window_bounds = array<i64: 8, 128>}, {transform_indices = @transform_17, window_bounds = array<i64: 8, 16>}]} {
    %c0 = arith.constant 0 : index
    %c0_0 = arith.constant 0 : index
    %0 = vector.load %arg1[%c0, %c0_0] : memref<8x32xf32, #tpu.memory_space<vmem>>, vector<8x32xf32>
    %1 = arith.truncf %0 : vector<8x32xf32> to vector<8x32xbf16>
    %c0_1 = arith.constant 0 : index
    %c0_2 = arith.constant 0 : index
    %2 = vector.load %arg4[%c0_1, %c0_2] : memref<32x384xbf16, #tpu.memory_space<vmem>>, vector<32x384xbf16>
    %cst = arith.constant dense<0.000000e+00> : vector<8x384xf32>
    %3 = tpu.matmul %1, %2, %cst {dimension_numbers = #tpu.dot_dimension_numbers<[1], [0], [0], [1], [0, 0, 1, 1], [], []>} : vector<8x32xbf16>, vector<32x384xbf16>, vector<8x384xf32> -> vector<8x384xf32>
    %c0_3 = arith.constant 0 : index
    %c0_4 = arith.constant 0 : index
    %4 = vector.load %arg5[%c0_3, %c0_4] : memref<1x384xf32, #tpu.memory_space<vmem>>, vector<1x384xf32>
    %5 = vector.broadcast %4 : vector<1x384xf32> to vector<8x384xf32>
    %6 = arith.addf %3, %5 : vector<8x384xf32>
    %c0_5 = arith.constant 0 : index
    %c0_6 = arith.constant 0 : index
    %7 = vector.load %arg2[%c0_5, %c0_6] : memref<8x64xf32, #tpu.memory_space<vmem>>, vector<8x64xf32>
    %8 = arith.truncf %7 : vector<8x64xf32> to vector<8x64xbf16>
    %c0_7 = arith.constant 0 : index
    %c0_8 = arith.constant 0 : index
    %9 = vector.load %arg6[%c0_7, %c0_8] : memref<64x384xbf16, #tpu.memory_space<vmem>>, vector<64x384xbf16>
    %cst_9 = arith.constant dense<0.000000e+00> : vector<8x384xf32>
    %10 = tpu.matmul %8, %9, %cst_9 {dimension_numbers = #tpu.dot_dimension_numbers<[1], [0], [0], [1], [0, 0, 1, 1], [], []>} : vector<8x64xbf16>, vector<64x384xbf16>, vector<8x384xf32> -> vector<8x384xf32>
    %c0_10 = arith.constant 0 : index
    %c0_11 = arith.constant 0 : index
    %11 = vector.load %arg7[%c0_10, %c0_11] : memref<1x384xf32, #tpu.memory_space<vmem>>, vector<1x384xf32>
    %12 = vector.broadcast %11 : vector<1x384xf32> to vector<8x384xf32>
    %13 = arith.addf %10, %12 : vector<8x384xf32>
    %c0_12 = arith.constant 0 : index
    %c0_13 = arith.constant 0 : index
    %14 = vector.load %arg3[%c0_12, %c0_13] : memref<8x48xf32, #tpu.memory_space<vmem>>, vector<8x48xf32>
    %15 = arith.truncf %14 : vector<8x48xf32> to vector<8x48xbf16>
    %c0_14 = arith.constant 0 : index
    %c0_15 = arith.constant 0 : index
    %16 = vector.load %arg8[%c0_14, %c0_15] : memref<48x384xbf16, #tpu.memory_space<vmem>>, vector<48x384xbf16>
    %cst_16 = arith.constant dense<0.000000e+00> : vector<8x384xf32>
    %17 = tpu.matmul %15, %16, %cst_16 {dimension_numbers = #tpu.dot_dimension_numbers<[1], [0], [0], [1], [0, 0, 1, 1], [], []>} : vector<8x48xbf16>, vector<48x384xbf16>, vector<8x384xf32> -> vector<8x384xf32>
    %c0_17 = arith.constant 0 : index
    %c0_18 = arith.constant 0 : index
    %18 = vector.load %arg9[%c0_17, %c0_18] : memref<1x384xf32, #tpu.memory_space<vmem>>, vector<1x384xf32>
    %19 = vector.broadcast %18 : vector<1x384xf32> to vector<8x384xf32>
    %20 = arith.addf %17, %19 : vector<8x384xf32>
    %21 = vector.extract_strided_slice %6 {offsets = [0, 0], sizes = [8, 128], strides = [1, 1]} : vector<8x384xf32> to vector<8x128xf32>
    %22 = vector.extract_strided_slice %13 {offsets = [0, 0], sizes = [8, 128], strides = [1, 1]} : vector<8x384xf32> to vector<8x128xf32>
    %23 = vector.extract_strided_slice %20 {offsets = [0, 0], sizes = [8, 128], strides = [1, 1]} : vector<8x384xf32> to vector<8x128xf32>
    %24 = vector.extract_strided_slice %6 {offsets = [0, 128], sizes = [8, 128], strides = [1, 1]} : vector<8x384xf32> to vector<8x128xf32>
    %25 = vector.extract_strided_slice %13 {offsets = [0, 128], sizes = [8, 128], strides = [1, 1]} : vector<8x384xf32> to vector<8x128xf32>
    %26 = vector.extract_strided_slice %20 {offsets = [0, 128], sizes = [8, 128], strides = [1, 1]} : vector<8x384xf32> to vector<8x128xf32>
    %27 = vector.extract_strided_slice %6 {offsets = [0, 256], sizes = [8, 128], strides = [1, 1]} : vector<8x384xf32> to vector<8x128xf32>
    %28 = vector.extract_strided_slice %13 {offsets = [0, 256], sizes = [8, 128], strides = [1, 1]} : vector<8x384xf32> to vector<8x128xf32>
    %29 = vector.extract_strided_slice %20 {offsets = [0, 256], sizes = [8, 128], strides = [1, 1]} : vector<8x384xf32> to vector<8x128xf32>
    %c0_19 = arith.constant 0 : index
    %c0_20 = arith.constant 0 : index
    %30 = vector.load %arg10[%c0_19, %c0_20] : memref<384x24xbf16, #tpu.memory_space<vmem>>, vector<384x24xbf16>
    %31 = arith.mulf %21, %24 : vector<8x128xf32>
    %32 = arith.truncf %31 : vector<8x128xf32> to vector<8x128xbf16>
    %33 = arith.mulf %22, %24 : vector<8x128xf32>
    %34 = arith.truncf %33 : vector<8x128xf32> to vector<8x128xbf16>
    %35 = arith.mulf %23, %24 : vector<8x128xf32>
    %36 = arith.truncf %35 : vector<8x128xf32> to vector<8x128xbf16>
    %37 = tpu.concatenate %32, %34, %36 in 1 : vector<8x128xbf16>, vector<8x128xbf16>, vector<8x128xbf16> -> vector<8x384xbf16>
    %cst_21 = arith.constant dense<0.000000e+00> : vector<8x24xf32>
    %38 = tpu.matmul %37, %30, %cst_21 {dimension_numbers = #tpu.dot_dimension_numbers<[1], [0], [0], [1], [0, 0, 1, 1], [], []>} : vector<8x384xbf16>, vector<384x24xbf16>, vector<8x24xf32> -> vector<8x24xf32>
    %39 = arith.mulf %21, %25 : vector<8x128xf32>
    %40 = arith.truncf %39 : vector<8x128xf32> to vector<8x128xbf16>
    %41 = arith.mulf %22, %25 : vector<8x128xf32>
    %42 = arith.truncf %41 : vector<8x128xf32> to vector<8x128xbf16>
    %43 = arith.mulf %23, %25 : vector<8x128xf32>
    %44 = arith.truncf %43 : vector<8x128xf32> to vector<8x128xbf16>
    %45 = tpu.concatenate %40, %42, %44 in 1 : vector<8x128xbf16>, vector<8x128xbf16>, vector<8x128xbf16> -> vector<8x384xbf16>
    %cst_22 = arith.constant dense<0.000000e+00> : vector<8x24xf32>
    %46 = tpu.matmul %45, %30, %cst_22 {dimension_numbers = #tpu.dot_dimension_numbers<[1], [0], [0], [1], [0, 0, 1, 1], [], []>} : vector<8x384xbf16>, vector<384x24xbf16>, vector<8x24xf32> -> vector<8x24xf32>
    %47 = arith.mulf %21, %26 : vector<8x128xf32>
    %48 = arith.truncf %47 : vector<8x128xf32> to vector<8x128xbf16>
    %49 = arith.mulf %22, %26 : vector<8x128xf32>
    %50 = arith.truncf %49 : vector<8x128xf32> to vector<8x128xbf16>
    %51 = arith.mulf %23, %26 : vector<8x128xf32>
    %52 = arith.truncf %51 : vector<8x128xf32> to vector<8x128xbf16>
    %53 = tpu.concatenate %48, %50, %52 in 1 : vector<8x128xbf16>, vector<8x128xbf16>, vector<8x128xbf16> -> vector<8x384xbf16>
    %cst_23 = arith.constant dense<0.000000e+00> : vector<8x24xf32>
    %54 = tpu.matmul %53, %30, %cst_23 {dimension_numbers = #tpu.dot_dimension_numbers<[1], [0], [0], [1], [0, 0, 1, 1], [], []>} : vector<8x384xbf16>, vector<384x24xbf16>, vector<8x24xf32> -> vector<8x24xf32>
    %55 = arith.maximumf %38, %46 : vector<8x24xf32>
    %56 = arith.maximumf %55, %54 : vector<8x24xf32>
    %57 = arith.subf %38, %56 : vector<8x24xf32>
    %58 = math.exp %57 : vector<8x24xf32>
    %59 = arith.subf %46, %56 : vector<8x24xf32>
    %60 = math.exp %59 : vector<8x24xf32>
    %61 = arith.subf %54, %56 : vector<8x24xf32>
    %62 = math.exp %61 : vector<8x24xf32>
    %63 = arith.addf %58, %60 : vector<8x24xf32>
    %64 = arith.addf %63, %62 : vector<8x24xf32>
    %65 = tpu.reciprocal %64 : vector<8x24xf32> -> vector<8x24xf32>
    %66 = arith.mulf %58, %65 : vector<8x24xf32>
    %67 = arith.mulf %60, %65 : vector<8x24xf32>
    %68 = arith.mulf %62, %65 : vector<8x24xf32>
    %69 = tpu.concatenate %66, %67, %68 in 1 : vector<8x24xf32>, vector<8x24xf32>, vector<8x24xf32> -> vector<8x72xf32>
    %70 = arith.truncf %69 : vector<8x72xf32> to vector<8x72xbf16>
    %71 = tpu.concatenate %27, %28, %29 in 1 : vector<8x128xf32>, vector<8x128xf32>, vector<8x128xf32> -> vector<8x384xf32>
    %c0_24 = arith.constant 0 : index
    %c0_25 = arith.constant 0 : index
    %72 = vector.load %arg11[%c0_24, %c0_25] : memref<72x384xbf16, #tpu.memory_space<vmem>>, vector<72x384xbf16>
    %c0_26 = arith.constant 0 : index
    %c0_27 = arith.constant 0 : index
    %73 = vector.load %arg12[%c0_26, %c0_27] : memref<72x384xbf16, #tpu.memory_space<vmem>>, vector<72x384xbf16>
    %c0_28 = arith.constant 0 : index
    %c0_29 = arith.constant 0 : index
    %74 = vector.load %arg13[%c0_28, %c0_29] : memref<72x384xbf16, #tpu.memory_space<vmem>>, vector<72x384xbf16>
    %cst_30 = arith.constant dense<0.000000e+00> : vector<8x384xf32>
    %75 = tpu.matmul %70, %72, %cst_30 {dimension_numbers = #tpu.dot_dimension_numbers<[1], [0], [0], [1], [0, 0, 1, 1], [], []>} : vector<8x72xbf16>, vector<72x384xbf16>, vector<8x384xf32> -> vector<8x384xf32>
    %76 = arith.mulf %75, %71 : vector<8x384xf32>
    %77 = vector.extract_strided_slice %76 {offsets = [0, 0], sizes = [8, 128], strides = [1, 1]} : vector<8x384xf32> to vector<8x128xf32>
    %78 = vector.extract_strided_slice %76 {offsets = [0, 128], sizes = [8, 128], strides = [1, 1]} : vector<8x384xf32> to vector<8x128xf32>
    %79 = arith.addf %77, %78 : vector<8x128xf32>
    %80 = vector.extract_strided_slice %76 {offsets = [0, 256], sizes = [8, 128], strides = [1, 1]} : vector<8x384xf32> to vector<8x128xf32>
    %81 = arith.addf %79, %80 : vector<8x128xf32>
    %82 = arith.truncf %81 : vector<8x128xf32> to vector<8x128xbf16>
    %cst_31 = arith.constant dense<0.000000e+00> : vector<8x384xf32>
    %83 = tpu.matmul %70, %73, %cst_31 {dimension_numbers = #tpu.dot_dimension_numbers<[1], [0], [0], [1], [0, 0, 1, 1], [], []>} : vector<8x72xbf16>, vector<72x384xbf16>, vector<8x384xf32> -> vector<8x384xf32>
    %84 = arith.mulf %83, %71 : vector<8x384xf32>
    %85 = vector.extract_strided_slice %84 {offsets = [0, 0], sizes = [8, 128], strides = [1, 1]} : vector<8x384xf32> to vector<8x128xf32>
    %86 = vector.extract_strided_slice %84 {offsets = [0, 128], sizes = [8, 128], strides = [1, 1]} : vector<8x384xf32> to vector<8x128xf32>
    %87 = arith.addf %85, %86 : vector<8x128xf32>
    %88 = vector.extract_strided_slice %84 {offsets = [0, 256], sizes = [8, 128], strides = [1, 1]} : vector<8x384xf32> to vector<8x128xf32>
    %89 = arith.addf %87, %88 : vector<8x128xf32>
    %90 = arith.truncf %89 : vector<8x128xf32> to vector<8x128xbf16>
    %cst_32 = arith.constant dense<0.000000e+00> : vector<8x384xf32>
    %91 = tpu.matmul %70, %74, %cst_32 {dimension_numbers = #tpu.dot_dimension_numbers<[1], [0], [0], [1], [0, 0, 1, 1], [], []>} : vector<8x72xbf16>, vector<72x384xbf16>, vector<8x384xf32> -> vector<8x384xf32>
    %92 = arith.mulf %91, %71 : vector<8x384xf32>
    %93 = vector.extract_strided_slice %92 {offsets = [0, 0], sizes = [8, 128], strides = [1, 1]} : vector<8x384xf32> to vector<8x128xf32>
    %94 = vector.extract_strided_slice %92 {offsets = [0, 128], sizes = [8, 128], strides = [1, 1]} : vector<8x384xf32> to vector<8x128xf32>
    %95 = arith.addf %93, %94 : vector<8x128xf32>
    %96 = vector.extract_strided_slice %92 {offsets = [0, 256], sizes = [8, 128], strides = [1, 1]} : vector<8x384xf32> to vector<8x128xf32>
    %97 = arith.addf %95, %96 : vector<8x128xf32>
    %98 = arith.truncf %97 : vector<8x128xf32> to vector<8x128xbf16>
    %99 = tpu.concatenate %82, %90, %98 in 1 : vector<8x128xbf16>, vector<8x128xbf16>, vector<8x128xbf16> -> vector<8x384xbf16>
    %c0_33 = arith.constant 0 : index
    %c0_34 = arith.constant 0 : index
    %100 = vector.load %arg14[%c0_33, %c0_34] : memref<384x128xbf16, #tpu.memory_space<vmem>>, vector<384x128xbf16>
    %cst_35 = arith.constant dense<0.000000e+00> : vector<8x128xf32>
    %101 = tpu.matmul %99, %100, %cst_35 {dimension_numbers = #tpu.dot_dimension_numbers<[1], [0], [0], [1], [0, 0, 1, 1], [], []>} : vector<8x384xbf16>, vector<384x128xbf16>, vector<8x128xf32> -> vector<8x128xf32>
    %c0_36 = arith.constant 0 : index
    %c0_37 = arith.constant 0 : index
    %102 = vector.load %arg15[%c0_36, %c0_37] : memref<1x128xf32, #tpu.memory_space<vmem>>, vector<1x128xf32>
    %103 = vector.broadcast %102 : vector<1x128xf32> to vector<8x128xf32>
    %104 = arith.addf %101, %103 : vector<8x128xf32>
    %c0_38 = arith.constant 0 : index
    %c0_39 = arith.constant 0 : index
    %105 = vector.load %arg17[%c0_38, %c0_39] : memref<8x128xf32, #tpu.memory_space<vmem>>, vector<8x128xf32>
    tpu.vector_store %arg17[%c0_38, %c0_39], %104 {strides = array<i32>} : memref<8x128xf32, #tpu.memory_space<vmem>>, vector<8x128xf32>,
    %c0_40 = arith.constant 0 : index
    %c0_41 = arith.constant 0 : index
    %106 = vector.load %arg16[%c0_40, %c0_41] : memref<72x16xf32, #tpu.memory_space<vmem>>, vector<72x16xf32>
    %cst_42 = arith.constant dense<0.000000e+00> : vector<8x16xf32>
    %107 = tpu.matmul %69, %106, %cst_42 {dimension_numbers = #tpu.dot_dimension_numbers<[1], [0], [0], [1], [0, 0, 1, 1], [], []>} : vector<8x72xf32>, vector<72x16xf32>, vector<8x16xf32> -> vector<8x16xf32>
    %c0_43 = arith.constant 0 : index
    %c0_44 = arith.constant 0 : index
    %108 = vector.load %arg18[%c0_43, %c0_44] : memref<8x16xf32, #tpu.memory_space<vmem>>, vector<8x16xf32>
    tpu.vector_store %arg18[%c0_43, %c0_44], %107 {strides = array<i32>} : memref<8x16xf32, #tpu.memory_space<vmem>>, vector<8x16xf32>,
    return
  }
  func.func @transform_0(%arg0: i32) -> (i32, i32) {
    %c0_i32 = arith.constant 0 : i32
    %c0_i32_0 = arith.constant 0 : i32
    return %arg0, %c0_i32 : i32, i32
  }
  func.func @transform_1(%arg0: i32) -> (i32, i32) {
    %c0_i32 = arith.constant 0 : i32
    %c0_i32_0 = arith.constant 0 : i32
    return %arg0, %c0_i32 : i32, i32
  }
  func.func @transform_2(%arg0: i32) -> (i32, i32) {
    %c0_i32 = arith.constant 0 : i32
    %c0_i32_0 = arith.constant 0 : i32
    return %arg0, %c0_i32 : i32, i32
  }
  func.func @transform_3(%arg0: i32) -> (i32, i32) {
    %c0_i32 = arith.constant 0 : i32
    %c0_i32_0 = arith.constant 0 : i32
    %c0_i32_1 = arith.constant 0 : i32
    return %c0_i32, %c0_i32_0 : i32, i32
  }
  func.func @transform_4(%arg0: i32) -> (i32, i32) {
    %c0_i32 = arith.constant 0 : i32
    %c0_i32_0 = arith.constant 0 : i32
    %c0_i32_1 = arith.constant 0 : i32
    return %c0_i32, %c0_i32_0 : i32, i32
  }
  func.func @transform_5(%arg0: i32) -> (i32, i32) {
    %c0_i32 = arith.constant 0 : i32
    %c0_i32_0 = arith.constant 0 : i32
    %c0_i32_1 = arith.constant 0 : i32
    return %c0_i32, %c0_i32_0 : i32, i32
  }
  func.func @transform_6(%arg0: i32) -> (i32, i32) {
    %c0_i32 = arith.constant 0 : i32
    %c0_i32_0 = arith.constant 0 : i32
    %c0_i32_1 = arith.constant 0 : i32
    return %c0_i32, %c0_i32_0 : i32, i32
  }
  func.func @transform_7(%arg0: i32) -> (i32, i32) {
    %c0_i32 = arith.constant 0 : i32
    %c0_i32_0 = arith.constant 0 : i32
    %c0_i32_1 = arith.constant 0 : i32
    return %c0_i32, %c0_i32_0 : i32, i32
  }
  func.func @transform_8(%arg0: i32) -> (i32, i32) {
    %c0_i32 = arith.constant 0 : i32
    %c0_i32_0 = arith.constant 0 : i32
    %c0_i32_1 = arith.constant 0 : i32
    return %c0_i32, %c0_i32_0 : i32, i32
  }
  func.func @transform_9(%arg0: i32) -> (i32, i32) {
    %c0_i32 = arith.constant 0 : i32
    %c0_i32_0 = arith.constant 0 : i32
    %c0_i32_1 = arith.constant 0 : i32
    return %c0_i32, %c0_i32_0 : i32, i32
  }
  func.func @transform_10(%arg0: i32) -> (i32, i32) {
    %c0_i32 = arith.constant 0 : i32
    %c0_i32_0 = arith.constant 0 : i32
    %c0_i32_1 = arith.constant 0 : i32
    return %c0_i32, %c0_i32_0 : i32, i32
  }
  func.func @transform_11(%arg0: i32) -> (i32, i32) {
    %c0_i32 = arith.constant 0 : i32
    %c0_i32_0 = arith.constant 0 : i32
    %c0_i32_1 = arith.constant 0 : i32
    return %c0_i32, %c0_i32_0 : i32, i32
  }
  func.func @transform_12(%arg0: i32) -> (i32, i32) {
    %c0_i32 = arith.constant 0 : i32
    %c0_i32_0 = arith.constant 0 : i32
    %c0_i32_1 = arith.constant 0 : i32
    return %c0_i32, %c0_i32_0 : i32, i32
  }
  func.func @transform_13(%arg0: i32) -> (i32, i32) {
    %c0_i32 = arith.constant 0 : i32
    %c0_i32_0 = arith.constant 0 : i32
    %c0_i32_1 = arith.constant 0 : i32
    return %c0_i32, %c0_i32_0 : i32, i32
  }
  func.func @transform_14(%arg0: i32) -> (i32, i32) {
    %c0_i32 = arith.constant 0 : i32
    %c0_i32_0 = arith.constant 0 : i32
    %c0_i32_1 = arith.constant 0 : i32
    return %c0_i32, %c0_i32_0 : i32, i32
  }
  func.func @transform_15(%arg0: i32) -> (i32, i32) {
    %c0_i32 = arith.constant 0 : i32
    %c0_i32_0 = arith.constant 0 : i32
    %c0_i32_1 = arith.constant 0 : i32
    return %c0_i32, %c0_i32_0 : i32, i32
  }
  func.func @transform_16(%arg0: i32) -> (i32, i32) {
    %c0_i32 = arith.constant 0 : i32
    %c0_i32_0 = arith.constant 0 : i32
    return %arg0, %c0_i32 : i32, i32
  }
  func.func @transform_17(%arg0: i32) -> (i32, i32) {
    %c0_i32 = arith.constant 0 : i32
    %c0_i32_0 = arith.constant 0 : i32
    return %arg0, %c0_i32 : i32, i32
  }
}

module attributes {stable_mosaic.version = 11 : i64} {
  func.func @_cross_modal_attention_kernel(%arg0: i32, %arg1: memref<8x32xf32, #tpu.memory_space<vmem>>, %arg2: memref<8x64xf32, #tpu.memory_space<vmem>>, %arg3: memref<8x48xf32, #tpu.memory_space<vmem>>, %arg4: memref<32x384xbf16, #tpu.memory_space<vmem>>, %arg5: memref<1x384xf32, #tpu.memory_space<vmem>>, %arg6: memref<64x384xbf16, #tpu.memory_space<vmem>>, %arg7: memref<1x384xf32, #tpu.memory_space<vmem>>, %arg8: memref<48x384xbf16, #tpu.memory_space<vmem>>, %arg9: memref<1x384xf32, #tpu.memory_space<vmem>>, %arg10: memref<384x24xbf16, #tpu.memory_space<vmem>>, %arg11: memref<72x384xbf16, #tpu.memory_space<vmem>>, %arg12: memref<72x384xbf16, #tpu.memory_space<vmem>>, %arg13: memref<72x384xbf16, #tpu.memory_space<vmem>>, %arg14: memref<384x128xbf16, #tpu.memory_space<vmem>>, %arg15: memref<1x128xf32, #tpu.memory_space<vmem>>, %arg16: memref<72x16xf32, #tpu.memory_space<vmem>>, %arg17: memref<8x128xf32, #tpu.memory_space<vmem>>, %arg18: memref<8x16xf32, #tpu.memory_space<vmem>>) attributes {dimension_semantics = [#tpu.dimension_semantics<parallel>], iteration_bounds = array<i64: 1>, scalar_prefetch = 0 : i64, scratch_operands = 0 : i64, tpu.core_type = #tpu.core_type<tc>, window_params = [{transform_indices = @transform_0, window_bounds = array<i64: 8, 32>}, {transform_indices = @transform_1, window_bounds = array<i64: 8, 64>}, {transform_indices = @transform_2, window_bounds = array<i64: 8, 48>}, {pipeline_mode = #tpu.pipeline_mode<synchronous>, transform_indices = @transform_3, window_bounds = array<i64: 32, 384>}, {pipeline_mode = #tpu.pipeline_mode<synchronous>, transform_indices = @transform_4, window_bounds = array<i64: 1, 384>}, {pipeline_mode = #tpu.pipeline_mode<synchronous>, transform_indices = @transform_5, window_bounds = array<i64: 64, 384>}, {pipeline_mode = #tpu.pipeline_mode<synchronous>, transform_indices = @transform_6, window_bounds = array<i64: 1, 384>}, {pipeline_mode = #tpu.pipeline_mode<synchronous>, transform_indices = @transform_7, window_bounds = array<i64: 48, 384>}, {pipeline_mode = #tpu.pipeline_mode<synchronous>, transform_indices = @transform_8, window_bounds = array<i64: 1, 384>}, {pipeline_mode = #tpu.pipeline_mode<synchronous>, transform_indices = @transform_9, window_bounds = array<i64: 384, 24>}, {pipeline_mode = #tpu.pipeline_mode<synchronous>, transform_indices = @transform_10, window_bounds = array<i64: 72, 384>}, {pipeline_mode = #tpu.pipeline_mode<synchronous>, transform_indices = @transform_11, window_bounds = array<i64: 72, 384>}, {pipeline_mode = #tpu.pipeline_mode<synchronous>, transform_indices = @transform_12, window_bounds = array<i64: 72, 384>}, {pipeline_mode = #tpu.pipeline_mode<synchronous>, transform_indices = @transform_13, window_bounds = array<i64: 384, 128>}, {pipeline_mode = #tpu.pipeline_mode<synchronous>, transform_indices = @transform_14, window_bounds = array<i64: 1, 128>}, {pipeline_mode = #tpu.pipeline_mode<synchronous>, transform_indices = @transform_15, window_bounds = array<i64: 72, 16>}, {transform_indices = @transform_16, window_bounds = array<i64: 8, 128>}, {transform_indices = @transform_17, window_bounds = array<i64: 8, 16>}]} {
    %c0 = arith.constant 0 : index
    %c0_0 = arith.constant 0 : index
    %0 = vector.load %arg1[%c0, %c0_0] : memref<8x32xf32, #tpu.memory_space<vmem>>, vector<8x32xf32>
    %1 = arith.truncf %0 : vector<8x32xf32> to vector<8x32xbf16>
    %c0_1 = arith.constant 0 : index
    %c0_2 = arith.constant 0 : index
    %2 = vector.load %arg4[%c0_1, %c0_2] : memref<32x384xbf16, #tpu.memory_space<vmem>>, vector<32x384xbf16>
    %cst = arith.constant dense<0.000000e+00> : vector<8x384xf32>
    %3 = tpu.matmul %1, %2, %cst {dimension_numbers = #tpu.dot_dimension_numbers<[1], [0], [0], [1], [0, 0, 1, 1], [], []>} : vector<8x32xbf16>, vector<32x384xbf16>, vector<8x384xf32> -> vector<8x384xf32>
    %c0_3 = arith.constant 0 : index
    %c0_4 = arith.constant 0 : index
    %4 = vector.load %arg5[%c0_3, %c0_4] : memref<1x384xf32, #tpu.memory_space<vmem>>, vector<1x384xf32>
    %5 = vector.broadcast %4 : vector<1x384xf32> to vector<8x384xf32>
    %6 = arith.addf %3, %5 : vector<8x384xf32>
    %c0_5 = arith.constant 0 : index
    %c0_6 = arith.constant 0 : index
    %7 = vector.load %arg2[%c0_5, %c0_6] : memref<8x64xf32, #tpu.memory_space<vmem>>, vector<8x64xf32>
    %8 = arith.truncf %7 : vector<8x64xf32> to vector<8x64xbf16>
    %c0_7 = arith.constant 0 : index
    %c0_8 = arith.constant 0 : index
    %9 = vector.load %arg6[%c0_7, %c0_8] : memref<64x384xbf16, #tpu.memory_space<vmem>>, vector<64x384xbf16>
    %cst_9 = arith.constant dense<0.000000e+00> : vector<8x384xf32>
    %10 = tpu.matmul %8, %9, %cst_9 {dimension_numbers = #tpu.dot_dimension_numbers<[1], [0], [0], [1], [0, 0, 1, 1], [], []>} : vector<8x64xbf16>, vector<64x384xbf16>, vector<8x384xf32> -> vector<8x384xf32>
    %c0_10 = arith.constant 0 : index
    %c0_11 = arith.constant 0 : index
    %11 = vector.load %arg7[%c0_10, %c0_11] : memref<1x384xf32, #tpu.memory_space<vmem>>, vector<1x384xf32>
    %12 = vector.broadcast %11 : vector<1x384xf32> to vector<8x384xf32>
    %13 = arith.addf %10, %12 : vector<8x384xf32>
    %c0_12 = arith.constant 0 : index
    %c0_13 = arith.constant 0 : index
    %14 = vector.load %arg3[%c0_12, %c0_13] : memref<8x48xf32, #tpu.memory_space<vmem>>, vector<8x48xf32>
    %15 = arith.truncf %14 : vector<8x48xf32> to vector<8x48xbf16>
    %c0_14 = arith.constant 0 : index
    %c0_15 = arith.constant 0 : index
    %16 = vector.load %arg8[%c0_14, %c0_15] : memref<48x384xbf16, #tpu.memory_space<vmem>>, vector<48x384xbf16>
    %cst_16 = arith.constant dense<0.000000e+00> : vector<8x384xf32>
    %17 = tpu.matmul %15, %16, %cst_16 {dimension_numbers = #tpu.dot_dimension_numbers<[1], [0], [0], [1], [0, 0, 1, 1], [], []>} : vector<8x48xbf16>, vector<48x384xbf16>, vector<8x384xf32> -> vector<8x384xf32>
    %c0_17 = arith.constant 0 : index
    %c0_18 = arith.constant 0 : index
    %18 = vector.load %arg9[%c0_17, %c0_18] : memref<1x384xf32, #tpu.memory_space<vmem>>, vector<1x384xf32>
    %19 = vector.broadcast %18 : vector<1x384xf32> to vector<8x384xf32>
    %20 = arith.addf %17, %19 : vector<8x384xf32>
    %21 = vector.extract_strided_slice %6 {offsets = [0, 0], sizes = [8, 128], strides = [1, 1]} : vector<8x384xf32> to vector<8x128xf32>
    %22 = vector.extract_strided_slice %13 {offsets = [0, 0], sizes = [8, 128], strides = [1, 1]} : vector<8x384xf32> to vector<8x128xf32>
    %23 = vector.extract_strided_slice %20 {offsets = [0, 0], sizes = [8, 128], strides = [1, 1]} : vector<8x384xf32> to vector<8x128xf32>
    %24 = vector.extract_strided_slice %6 {offsets = [0, 128], sizes = [8, 128], strides = [1, 1]} : vector<8x384xf32> to vector<8x128xf32>
    %25 = vector.extract_strided_slice %13 {offsets = [0, 128], sizes = [8, 128], strides = [1, 1]} : vector<8x384xf32> to vector<8x128xf32>
    %26 = vector.extract_strided_slice %20 {offsets = [0, 128], sizes = [8, 128], strides = [1, 1]} : vector<8x384xf32> to vector<8x128xf32>
    %27 = vector.extract_strided_slice %6 {offsets = [0, 256], sizes = [8, 128], strides = [1, 1]} : vector<8x384xf32> to vector<8x128xf32>
    %28 = vector.extract_strided_slice %13 {offsets = [0, 256], sizes = [8, 128], strides = [1, 1]} : vector<8x384xf32> to vector<8x128xf32>
    %29 = vector.extract_strided_slice %20 {offsets = [0, 256], sizes = [8, 128], strides = [1, 1]} : vector<8x384xf32> to vector<8x128xf32>
    %c0_19 = arith.constant 0 : index
    %c0_20 = arith.constant 0 : index
    %30 = vector.load %arg10[%c0_19, %c0_20] : memref<384x24xbf16, #tpu.memory_space<vmem>>, vector<384x24xbf16>
    %31 = arith.mulf %21, %24 : vector<8x128xf32>
    %32 = arith.truncf %31 : vector<8x128xf32> to vector<8x128xbf16>
    %33 = arith.mulf %22, %24 : vector<8x128xf32>
    %34 = arith.truncf %33 : vector<8x128xf32> to vector<8x128xbf16>
    %35 = arith.mulf %23, %24 : vector<8x128xf32>
    %36 = arith.truncf %35 : vector<8x128xf32> to vector<8x128xbf16>
    %37 = tpu.concatenate %32, %34, %36 in 1 : vector<8x128xbf16>, vector<8x128xbf16>, vector<8x128xbf16> -> vector<8x384xbf16>
    %cst_21 = arith.constant dense<0.000000e+00> : vector<8x24xf32>
    %38 = tpu.matmul %37, %30, %cst_21 {dimension_numbers = #tpu.dot_dimension_numbers<[1], [0], [0], [1], [0, 0, 1, 1], [], []>} : vector<8x384xbf16>, vector<384x24xbf16>, vector<8x24xf32> -> vector<8x24xf32>
    %39 = arith.mulf %21, %25 : vector<8x128xf32>
    %40 = arith.truncf %39 : vector<8x128xf32> to vector<8x128xbf16>
    %41 = arith.mulf %22, %25 : vector<8x128xf32>
    %42 = arith.truncf %41 : vector<8x128xf32> to vector<8x128xbf16>
    %43 = arith.mulf %23, %25 : vector<8x128xf32>
    %44 = arith.truncf %43 : vector<8x128xf32> to vector<8x128xbf16>
    %45 = tpu.concatenate %40, %42, %44 in 1 : vector<8x128xbf16>, vector<8x128xbf16>, vector<8x128xbf16> -> vector<8x384xbf16>
    %cst_22 = arith.constant dense<0.000000e+00> : vector<8x24xf32>
    %46 = tpu.matmul %45, %30, %cst_22 {dimension_numbers = #tpu.dot_dimension_numbers<[1], [0], [0], [1], [0, 0, 1, 1], [], []>} : vector<8x384xbf16>, vector<384x24xbf16>, vector<8x24xf32> -> vector<8x24xf32>
    %47 = arith.mulf %21, %26 : vector<8x128xf32>
    %48 = arith.truncf %47 : vector<8x128xf32> to vector<8x128xbf16>
    %49 = arith.mulf %22, %26 : vector<8x128xf32>
    %50 = arith.truncf %49 : vector<8x128xf32> to vector<8x128xbf16>
    %51 = arith.mulf %23, %26 : vector<8x128xf32>
    %52 = arith.truncf %51 : vector<8x128xf32> to vector<8x128xbf16>
    %53 = tpu.concatenate %48, %50, %52 in 1 : vector<8x128xbf16>, vector<8x128xbf16>, vector<8x128xbf16> -> vector<8x384xbf16>
    %cst_23 = arith.constant dense<0.000000e+00> : vector<8x24xf32>
    %54 = tpu.matmul %53, %30, %cst_23 {dimension_numbers = #tpu.dot_dimension_numbers<[1], [0], [0], [1], [0, 0, 1, 1], [], []>} : vector<8x384xbf16>, vector<384x24xbf16>, vector<8x24xf32> -> vector<8x24xf32>
    %55 = arith.maximumf %38, %46 : vector<8x24xf32>
    %56 = arith.maximumf %55, %54 : vector<8x24xf32>
    %57 = arith.subf %38, %56 : vector<8x24xf32>
    %58 = math.exp %57 : vector<8x24xf32>
    %59 = arith.subf %46, %56 : vector<8x24xf32>
    %60 = math.exp %59 : vector<8x24xf32>
    %61 = arith.subf %54, %56 : vector<8x24xf32>
    %62 = math.exp %61 : vector<8x24xf32>
    %63 = arith.addf %58, %60 : vector<8x24xf32>
    %64 = arith.addf %63, %62 : vector<8x24xf32>
    %65 = tpu.reciprocal %64 : vector<8x24xf32> -> vector<8x24xf32>
    %66 = arith.mulf %58, %65 : vector<8x24xf32>
    %67 = arith.mulf %60, %65 : vector<8x24xf32>
    %68 = arith.mulf %62, %65 : vector<8x24xf32>
    %69 = tpu.concatenate %66, %67, %68 in 1 : vector<8x24xf32>, vector<8x24xf32>, vector<8x24xf32> -> vector<8x72xf32>
    %70 = arith.truncf %69 : vector<8x72xf32> to vector<8x72xbf16>
    %71 = tpu.concatenate %27, %28, %29 in 1 : vector<8x128xf32>, vector<8x128xf32>, vector<8x128xf32> -> vector<8x384xf32>
    %c0_24 = arith.constant 0 : index
    %c0_25 = arith.constant 0 : index
    %72 = vector.load %arg11[%c0_24, %c0_25] : memref<72x384xbf16, #tpu.memory_space<vmem>>, vector<72x384xbf16>
    %c0_26 = arith.constant 0 : index
    %c0_27 = arith.constant 0 : index
    %73 = vector.load %arg12[%c0_26, %c0_27] : memref<72x384xbf16, #tpu.memory_space<vmem>>, vector<72x384xbf16>
    %c0_28 = arith.constant 0 : index
    %c0_29 = arith.constant 0 : index
    %74 = vector.load %arg13[%c0_28, %c0_29] : memref<72x384xbf16, #tpu.memory_space<vmem>>, vector<72x384xbf16>
    %cst_30 = arith.constant dense<0.000000e+00> : vector<8x384xf32>
    %75 = tpu.matmul %70, %72, %cst_30 {dimension_numbers = #tpu.dot_dimension_numbers<[1], [0], [0], [1], [0, 0, 1, 1], [], []>} : vector<8x72xbf16>, vector<72x384xbf16>, vector<8x384xf32> -> vector<8x384xf32>
    %76 = arith.mulf %75, %71 : vector<8x384xf32>
    %77 = vector.extract_strided_slice %76 {offsets = [0, 0], sizes = [8, 128], strides = [1, 1]} : vector<8x384xf32> to vector<8x128xf32>
    %78 = vector.extract_strided_slice %76 {offsets = [0, 128], sizes = [8, 128], strides = [1, 1]} : vector<8x384xf32> to vector<8x128xf32>
    %79 = arith.addf %77, %78 : vector<8x128xf32>
    %80 = vector.extract_strided_slice %76 {offsets = [0, 256], sizes = [8, 128], strides = [1, 1]} : vector<8x384xf32> to vector<8x128xf32>
    %81 = arith.addf %79, %80 : vector<8x128xf32>
    %82 = arith.truncf %81 : vector<8x128xf32> to vector<8x128xbf16>
    %cst_31 = arith.constant dense<0.000000e+00> : vector<8x384xf32>
    %83 = tpu.matmul %70, %73, %cst_31 {dimension_numbers = #tpu.dot_dimension_numbers<[1], [0], [0], [1], [0, 0, 1, 1], [], []>} : vector<8x72xbf16>, vector<72x384xbf16>, vector<8x384xf32> -> vector<8x384xf32>
    %84 = arith.mulf %83, %71 : vector<8x384xf32>
    %85 = vector.extract_strided_slice %84 {offsets = [0, 0], sizes = [8, 128], strides = [1, 1]} : vector<8x384xf32> to vector<8x128xf32>
    %86 = vector.extract_strided_slice %84 {offsets = [0, 128], sizes = [8, 128], strides = [1, 1]} : vector<8x384xf32> to vector<8x128xf32>
    %87 = arith.addf %85, %86 : vector<8x128xf32>
    %88 = vector.extract_strided_slice %84 {offsets = [0, 256], sizes = [8, 128], strides = [1, 1]} : vector<8x384xf32> to vector<8x128xf32>
    %89 = arith.addf %87, %88 : vector<8x128xf32>
    %90 = arith.truncf %89 : vector<8x128xf32> to vector<8x128xbf16>
    %cst_32 = arith.constant dense<0.000000e+00> : vector<8x384xf32>
    %91 = tpu.matmul %70, %74, %cst_32 {dimension_numbers = #tpu.dot_dimension_numbers<[1], [0], [0], [1], [0, 0, 1, 1], [], []>} : vector<8x72xbf16>, vector<72x384xbf16>, vector<8x384xf32> -> vector<8x384xf32>
    %92 = arith.mulf %91, %71 : vector<8x384xf32>
    %93 = vector.extract_strided_slice %92 {offsets = [0, 0], sizes = [8, 128], strides = [1, 1]} : vector<8x384xf32> to vector<8x128xf32>
    %94 = vector.extract_strided_slice %92 {offsets = [0, 128], sizes = [8, 128], strides = [1, 1]} : vector<8x384xf32> to vector<8x128xf32>
    %95 = arith.addf %93, %94 : vector<8x128xf32>
    %96 = vector.extract_strided_slice %92 {offsets = [0, 256], sizes = [8, 128], strides = [1, 1]} : vector<8x384xf32> to vector<8x128xf32>
    %97 = arith.addf %95, %96 : vector<8x128xf32>
    %98 = arith.truncf %97 : vector<8x128xf32> to vector<8x128xbf16>
    %99 = tpu.concatenate %82, %90, %98 in 1 : vector<8x128xbf16>, vector<8x128xbf16>, vector<8x128xbf16> -> vector<8x384xbf16>
    %c0_33 = arith.constant 0 : index
    %c0_34 = arith.constant 0 : index
    %100 = vector.load %arg14[%c0_33, %c0_34] : memref<384x128xbf16, #tpu.memory_space<vmem>>, vector<384x128xbf16>
    %cst_35 = arith.constant dense<0.000000e+00> : vector<8x128xf32>
    %101 = tpu.matmul %99, %100, %cst_35 {dimension_numbers = #tpu.dot_dimension_numbers<[1], [0], [0], [1], [0, 0, 1, 1], [], []>} : vector<8x384xbf16>, vector<384x128xbf16>, vector<8x128xf32> -> vector<8x128xf32>
    %c0_36 = arith.constant 0 : index
    %c0_37 = arith.constant 0 : index
    %102 = vector.load %arg15[%c0_36, %c0_37] : memref<1x128xf32, #tpu.memory_space<vmem>>, vector<1x128xf32>
    %103 = vector.broadcast %102 : vector<1x128xf32> to vector<8x128xf32>
    %104 = arith.addf %101, %103 : vector<8x128xf32>
    %c0_38 = arith.constant 0 : index
    %c0_39 = arith.constant 0 : index
    %105 = vector.load %arg17[%c0_38, %c0_39] : memref<8x128xf32, #tpu.memory_space<vmem>>, vector<8x128xf32>
    tpu.vector_store %arg17[%c0_38, %c0_39], %104 {strides = array<i32>} : memref<8x128xf32, #tpu.memory_space<vmem>>, vector<8x128xf32>,
    %c0_40 = arith.constant 0 : index
    %c0_41 = arith.constant 0 : index
    %106 = vector.load %arg16[%c0_40, %c0_41] : memref<72x16xf32, #tpu.memory_space<vmem>>, vector<72x16xf32>
    %cst_42 = arith.constant dense<0.000000e+00> : vector<8x16xf32>
    %107 = tpu.matmul %69, %106, %cst_42 {dimension_numbers = #tpu.dot_dimension_numbers<[1], [0], [0], [1], [0, 0, 1, 1], [], []>} : vector<8x72xf32>, vector<72x16xf32>, vector<8x16xf32> -> vector<8x16xf32>
    %c0_43 = arith.constant 0 : index
    %c0_44 = arith.constant 0 : index
    %108 = vector.load %arg18[%c0_43, %c0_44] : memref<8x16xf32, #tpu.memory_space<vmem>>, vector<8x16xf32>
    tpu.vector_store %arg18[%c0_43, %c0_44], %107 {strides = array<i32>} : memref<8x16xf32, #tpu.memory_space<vmem>>, vector<8x16xf32>,
    return
  }
  func.func @transform_0(%arg0: i32) -> (i32, i32) {
    %c0_i32 = arith.constant 0 : i32
    %c0_i32_0 = arith.constant 0 : i32
    return %arg0, %c0_i32 : i32, i32
  }
  func.func @transform_1(%arg0: i32) -> (i32, i32) {
    %c0_i32 = arith.constant 0 : i32
    %c0_i32_0 = arith.constant 0 : i32
    return %arg0, %c0_i32 : i32, i32
  }
  func.func @transform_2(%arg0: i32) -> (i32, i32) {
    %c0_i32 = arith.constant 0 : i32
    %c0_i32_0 = arith.constant 0 : i32
    return %arg0, %c0_i32 : i32, i32
  }
  func.func @transform_3(%arg0: i32) -> (i32, i32) {
    %c0_i32 = arith.constant 0 : i32
    %c0_i32_0 = arith.constant 0 : i32
    %c0_i32_1 = arith.constant 0 : i32
    return %c0_i32, %c0_i32_0 : i32, i32
  }
  func.func @transform_4(%arg0: i32) -> (i32, i32) {
    %c0_i32 = arith.constant 0 : i32
    %c0_i32_0 = arith.constant 0 : i32
    %c0_i32_1 = arith.constant 0 : i32
    return %c0_i32, %c0_i32_0 : i32, i32
  }
  func.func @transform_5(%arg0: i32) -> (i32, i32) {
    %c0_i32 = arith.constant 0 : i32
    %c0_i32_0 = arith.constant 0 : i32
    %c0_i32_1 = arith.constant 0 : i32
    return %c0_i32, %c0_i32_0 : i32, i32
  }
  func.func @transform_6(%arg0: i32) -> (i32, i32) {
    %c0_i32 = arith.constant 0 : i32
    %c0_i32_0 = arith.constant 0 : i32
    %c0_i32_1 = arith.constant 0 : i32
    return %c0_i32, %c0_i32_0 : i32, i32
  }
  func.func @transform_7(%arg0: i32) -> (i32, i32) {
    %c0_i32 = arith.constant 0 : i32
    %c0_i32_0 = arith.constant 0 : i32
    %c0_i32_1 = arith.constant 0 : i32
    return %c0_i32, %c0_i32_0 : i32, i32
  }
  func.func @transform_8(%arg0: i32) -> (i32, i32) {
    %c0_i32 = arith.constant 0 : i32
    %c0_i32_0 = arith.constant 0 : i32
    %c0_i32_1 = arith.constant 0 : i32
    return %c0_i32, %c0_i32_0 : i32, i32
  }
  func.func @transform_9(%arg0: i32) -> (i32, i32) {
    %c0_i32 = arith.constant 0 : i32
    %c0_i32_0 = arith.constant 0 : i32
    %c0_i32_1 = arith.constant 0 : i32
    return %c0_i32, %c0_i32_0 : i32, i32
  }
  func.func @transform_10(%arg0: i32) -> (i32, i32) {
    %c0_i32 = arith.constant 0 : i32
    %c0_i32_0 = arith.constant 0 : i32
    %c0_i32_1 = arith.constant 0 : i32
    return %c0_i32, %c0_i32_0 : i32, i32
  }
  func.func @transform_11(%arg0: i32) -> (i32, i32) {
    %c0_i32 = arith.constant 0 : i32
    %c0_i32_0 = arith.constant 0 : i32
    %c0_i32_1 = arith.constant 0 : i32
    return %c0_i32, %c0_i32_0 : i32, i32
  }
  func.func @transform_12(%arg0: i32) -> (i32, i32) {
    %c0_i32 = arith.constant 0 : i32
    %c0_i32_0 = arith.constant 0 : i32
    %c0_i32_1 = arith.constant 0 : i32
    return %c0_i32, %c0_i32_0 : i32, i32
  }
  func.func @transform_13(%arg0: i32) -> (i32, i32) {
    %c0_i32 = arith.constant 0 : i32
    %c0_i32_0 = arith.constant 0 : i32
    %c0_i32_1 = arith.constant 0 : i32
    return %c0_i32, %c0_i32_0 : i32, i32
  }
  func.func @transform_14(%arg0: i32) -> (i32, i32) {
    %c0_i32 = arith.constant 0 : i32
    %c0_i32_0 = arith.constant 0 : i32
    %c0_i32_1 = arith.constant 0 : i32
    return %c0_i32, %c0_i32_0 : i32, i32
  }
  func.func @transform_15(%arg0: i32) -> (i32, i32) {
    %c0_i32 = arith.constant 0 : i32
    %c0_i32_0 = arith.constant 0 : i32
    %c0_i32_1 = arith.constant 0 : i32
    return %c0_i32, %c0_i32_0 : i32, i32
  }
  func.func @transform_16(%arg0: i32) -> (i32, i32) {
    %c0_i32 = arith.constant 0 : i32
    %c0_i32_0 = arith.constant 0 : i32
    return %arg0, %c0_i32 : i32, i32
  }
  func.func @transform_17(%arg0: i32) -> (i32, i32) {
    %c0_i32 = arith.constant 0 : i32
    %c0_i32_0 = arith.constant 0 : i32
    return %arg0, %c0_i32 : i32, i32
  }
}

</mosaic_0001>

<llo_original>
// kernel: tpu_custom_call.1
$region0: #{tpu_custom_call.1}
  #allocation0 [shape = 'u32[]', space=smem, size = 0x4, offset = 0x4, fixed_abs, tag = 'smem constant byte address 0x4 - core index']
  #allocation1 [shape = 'u32[144,128]{1,0:T(1,128)}', space=vmem, size = 0x12000, scoped, tag = 'internal scratch']
  %s0 = inlined_call_operand.hbm [shape: f32[8,32], index: 0, kind: input, shape index: {}]
  %s1 = inlined_call_operand.hbm [shape: f32[8,64], index: 1, kind: input, shape index: {}]
  %s2 = inlined_call_operand.hbm [shape: f32[8,48], index: 2, kind: input, shape index: {}]
  %s3 = inlined_call_operand.vmem [shape: bf16[32,384], index: 3, kind: input, shape index: {}]
  %s4 = inlined_call_operand.vmem [shape: f32[1,384], index: 4, kind: input, shape index: {}]
  %s5 = inlined_call_operand.hbm [shape: bf16[64,384], index: 5, kind: input, shape index: {}]
  %s6 = inlined_call_operand.hbm [shape: f32[1,384], index: 6, kind: input, shape index: {}]
  %s7 = inlined_call_operand.hbm [shape: bf16[48,384], index: 7, kind: input, shape index: {}]
  %s8 = inlined_call_operand.hbm [shape: f32[1,384], index: 8, kind: input, shape index: {}]
  %s9 = inlined_call_operand.vmem [shape: bf16[384,24], index: 9, kind: input, shape index: {}]
  %s10 = inlined_call_operand.vmem [shape: bf16[72,384], index: 10, kind: input, shape index: {}]
  %s11 = inlined_call_operand.hbm [shape: bf16[72,384], index: 11, kind: input, shape index: {}]
  %s12 = inlined_call_operand.hbm [shape: bf16[72,384], index: 12, kind: input, shape index: {}]
  %s13 = inlined_call_operand.vmem [shape: bf16[384,128], index: 13, kind: input, shape index: {}]
  %s14 = inlined_call_operand.vmem [shape: f32[1,128], index: 14, kind: input, shape index: {}]
  %s15 = inlined_call_operand.vmem [shape: f32[72,16], index: 15, kind: input, shape index: {}]
  %s16 = inlined_call_operand.hbm [shape: f32[8,128], index: 16, kind: output, shape index: {0}]
  %s17 = inlined_call_operand.hbm [shape: f32[8,16], index: 17, kind: output, shape index: {1}]
  %18 = xla_tuple %s16, %s17
  %s19 = sld [smem:[#allocation0]]
  $region118: #{tpu_custom_call.1} parent=0
    _
  %s21 = ssub.s32 1, %s19
  %s22 = scalar_select 0, %s21, %s19
  $region1: #{tpu_custom_call.1} parent=0
    #allocation2 [shape = 'u8[4096]{0}', space=vmem, size = 0x1000, scoped, tag = 'input window, operand 0, single buffered']
    #allocation3 [shape = 's32[1]{0}', space=sflag, size = 0x4, scoped, tag = 'scoped memory for tpu_custom_call.1']
    #allocation4 [shape = 's32[1]{0}', space=sflag, size = 0x4, scoped, tag = 'scoped memory for tpu_custom_call.1']
    #allocation5 [shape = 'u8[4096]{0}', space=vmem, size = 0x1000, scoped, tag = 'input window, operand 1, single buffered']
    #allocation6 [shape = 's32[1]{0}', space=sflag, size = 0x4, scoped, tag = 'scoped memory for tpu_custom_call.1']
    #allocation7 [shape = 'u8[4096]{0}', space=vmem, size = 0x1000, scoped, tag = 'input window, operand 2, single buffered']
    #allocation8 [shape = 'u8[49152]{0}', space=vmem, size = 0xc000, scoped, tag = 'input window, operand 5, single buffered']
    #allocation9 [shape = 's32[1]{0}', space=sflag, size = 0x4, scoped, tag = 'scoped memory for tpu_custom_call.1']
    #allocation10 [shape = 'u8[1536]{0}', space=vmem, size = 0x800, scoped, tag = 'input window, operand 6, single buffered']
    #allocation11 [shape = 'u8[36864]{0}', space=vmem, size = 0x9000, scoped, tag = 'input window, operand 7, single buffered']
    #allocation12 [shape = 's32[1]{0}', space=sflag, size = 0x4, scoped, tag = 'scoped memory for tpu_custom_call.1']
    #allocation13 [shape = 'u8[1536]{0}', space=vmem, size = 0x800, scoped, tag = 'input window, operand 8, single buffered']
    #allocation14 [shape = 'u8[55296]{0}', space=vmem, size = 0xd800, scoped, tag = 'input window, operand 11, single buffered']
    #allocation15 [shape = 's32[1]{0}', space=sflag, size = 0x4, scoped, tag = 'scoped memory for tpu_custom_call.1']
    #allocation16 [shape = 'u8[55296]{0}', space=vmem, size = 0xd800, scoped, tag = 'input window, operand 12, single buffered']
    #allocation17 [shape = 'u8[4096]{0}', space=vmem, size = 0x1000, scoped, tag = 'output window, operand 0, single buffered']
    #allocation18 [shape = 'u8[4096]{0}', space=vmem, size = 0x1000, scoped, tag = 'output window, operand 1, single buffered']
    #allocation19 [shape = 's32[1]{0}', space=sflag, size = 0x4, scoped, tag = 'scoped memory for tpu_custom_call.1']
    %23 = vsyncpa [#allocation3], 0
    %24 = vsyncpa [#allocation6], 0
    %25 = vsyncpa [#allocation9], 0
    %26 = vsyncpa [#allocation12], 0
    %27 = vsyncpa [#allocation15], 0
    %28 = vsyncpa [#allocation4], 0
    %29 = vsyncpa [#allocation19], 0
    // Predicated region
    $region2: #{tpu_custom_call.1} parent=1 // pred_check
      _
    $region3: #{tpu_custom_call.1} parent=1 // pred_check_branch
      %31 = sbr.rel (0) target = $region5
    $region4: #{tpu_custom_call.1} parent=1 // pred_region
      %s33 = ssub.s32 128, 128
      %34 = vsyncadd [#allocation3], %s33
      %s36 = sshll.u32 [#allocation2], 4
      %s37 = int_to_ptr.vmem [resolvable:$true] %s36
      %39 = dma.hbm_to_vmem [thread:$0]  %s0, 128, %s37, [#allocation3]
    $region5: #{tpu_custom_call.1} parent=1 // pred_fallthru
      _
    // Predicated region
    $region6: #{tpu_custom_call.1} parent=1 // pred_check
      _
    $region7: #{tpu_custom_call.1} parent=1 // pred_check_branch
      %41 = sbr.rel (0) target = $region9
    $region8: #{tpu_custom_call.1} parent=1 // pred_region
      %s43 = ssub.s32 128, 128
      %44 = vsyncadd [#allocation6], %s43
      %s46 = sshll.u32 [#allocation5], 4
      %s47 = int_to_ptr.vmem [resolvable:$true] %s46
      %49 = dma.hbm_to_vmem [thread:$0]  %s1, 128, %s47, [#allocation6]
    $region9: #{tpu_custom_call.1} parent=1 // pred_fallthru
      _
    // Predicated region
    $region10: #{tpu_custom_call.1} parent=1 // pred_check
      _
    $region11: #{tpu_custom_call.1} parent=1 // pred_check_branch
      %51 = sbr.rel (0) target = $region13
    $region12: #{tpu_custom_call.1} parent=1 // pred_region
      %s53 = ssub.s32 128, 128
      %54 = vsyncadd [#allocation6], %s53
      %s56 = sshll.u32 [#allocation7], 4
      %s57 = int_to_ptr.vmem [resolvable:$true] %s56
      %59 = dma.hbm_to_vmem [thread:$0]  %s2, 128, %s57, [#allocation6]
    $region13: #{tpu_custom_call.1} parent=1 // pred_fallthru
      _
    // Predicated region
    $region14: #{tpu_custom_call.1} parent=1 // pred_check
      _
    $region15: #{tpu_custom_call.1} parent=1 // pred_check_branch
      %61 = sbr.rel (0) target = $region17
    $region16: #{tpu_custom_call.1} parent=1 // pred_region
      _
    $region17: #{tpu_custom_call.1} parent=1 // pred_fallthru
      _
    // Predicated region
    $region18: #{tpu_custom_call.1} parent=1 // pred_check
      _
    $region19: #{tpu_custom_call.1} parent=1 // pred_check_branch
      %63 = sbr.rel (0) target = $region21
    $region20: #{tpu_custom_call.1} parent=1 // pred_region
      _
    $region21: #{tpu_custom_call.1} parent=1 // pred_fallthru
      _
    // Predicated region
    $region22: #{tpu_custom_call.1} parent=1 // pred_check
      _
    $region23: #{tpu_custom_call.1} parent=1 // pred_check_branch
      %65 = sbr.rel (0) target = $region25
    $region24: #{tpu_custom_call.1} parent=1 // pred_region
      %s67 = ssub.s32 1536, 1536
      %68 = vsyncadd [#allocation9], %s67
      %s69 = sshll.u32 [#allocation8], 4
      %s70 = int_to_ptr.vmem [resolvable:$true] %s69
      %75 = dma.hbm_to_vmem [thread:$0]  %s5, 1536, %s70, [#allocation9], 192, 192, 12
    $region25: #{tpu_custom_call.1} parent=1 // pred_fallthru
      _
    // Predicated region
    $region26: #{tpu_custom_call.1} parent=1 // pred_check
      _
    $region27: #{tpu_custom_call.1} parent=1 // pred_check_branch
      %77 = sbr.rel (0) target = $region29
    $region28: #{tpu_custom_call.1} parent=1 // pred_region
      %s79 = ssub.s32 48, 48
      %80 = vsyncadd [#allocation9], %s79
      %s82 = sshll.u32 [#allocation10], 4
      %s83 = int_to_ptr.vmem [resolvable:$true] %s82
      %85 = dma.hbm_to_vmem [thread:$0]  %s6, 48, %s83, [#allocation9]
    $region29: #{tpu_custom_call.1} parent=1 // pred_fallthru
      _
    // Predicated region
    $region30: #{tpu_custom_call.1} parent=1 // pred_check
      _
    $region31: #{tpu_custom_call.1} parent=1 // pred_check_branch
      %87 = sbr.rel (0) target = $region33
    $region32: #{tpu_custom_call.1} parent=1 // pred_region
      %s89 = ssub.s32 1152, 1152
      %90 = vsyncadd [#allocation12], %s89
      %s91 = sshll.u32 [#allocation11], 4
      %s92 = int_to_ptr.vmem [resolvable:$true] %s91
      %97 = dma.hbm_to_vmem [thread:$0]  %s7, 1152, %s92, [#allocation12], 192, 192, 12
    $region33: #{tpu_custom_call.1} parent=1 // pred_fallthru
      _
    // Predicated region
    $region34: #{tpu_custom_call.1} parent=1 // pred_check
      _
    $region35: #{tpu_custom_call.1} parent=1 // pred_check_branch
      %99 = sbr.rel (0) target = $region37
    $region36: #{tpu_custom_call.1} parent=1 // pred_region
      %s101 = ssub.s32 48, 48
      %102 = vsyncadd [#allocation12], %s101
      %s104 = sshll.u32 [#allocation13], 4
      %s105 = int_to_ptr.vmem [resolvable:$true] %s104
      %107 = dma.hbm_to_vmem [thread:$0]  %s8, 48, %s105, [#allocation12]
    $region37: #{tpu_custom_call.1} parent=1 // pred_fallthru
      _
    // Predicated region
    $region38: #{tpu_custom_call.1} parent=1 // pred_check
      _
    $region39: #{tpu_custom_call.1} parent=1 // pred_check_branch
      %109 = sbr.rel (0) target = $region41
    $region40: #{tpu_custom_call.1} parent=1 // pred_region
      _
    $region41: #{tpu_custom_call.1} parent=1 // pred_fallthru
      _
    // Predicated region
    $region42: #{tpu_custom_call.1} parent=1 // pred_check
      _
    $region43: #{tpu_custom_call.1} parent=1 // pred_check_branch
      %111 = sbr.rel (0) target = $region45
    $region44: #{tpu_custom_call.1} parent=1 // pred_region
      _
    $region45: #{tpu_custom_call.1} parent=1 // pred_fallthru
      _
    // Predicated region
    $region46: #{tpu_custom_call.1} parent=1 // pred_check
      _
    $region47: #{tpu_custom_call.1} parent=1 // pred_check_branch
      %113 = sbr.rel (0) target = $region49
    $region48: #{tpu_custom_call.1} parent=1 // pred_region
      %s115 = ssub.s32 1728, 1728
      %116 = vsyncadd [#allocation15], %s115
      %s117 = sshll.u32 [#allocation14], 4
      %s118 = int_to_ptr.vmem [resolvable:$true] %s117
      %123 = dma.hbm_to_vmem [thread:$0]  %s11, 1728, %s118, [#allocation15], 192, 192, 12
    $region49: #{tpu_custom_call.1} parent=1 // pred_fallthru
      _
    // Predicated region
    $region50: #{tpu_custom_call.1} parent=1 // pred_check
      _
    $region51: #{tpu_custom_call.1} parent=1 // pred_check_branch
      %125 = sbr.rel (0) target = $region53
    $region52: #{tpu_custom_call.1} parent=1 // pred_region
      %s127 = ssub.s32 1728, 1728
      %128 = vsyncadd [#allocation15], %s127
      %s129 = sshll.u32 [#allocation16], 4
      %s130 = int_to_ptr.vmem [resolvable:$true] %s129
      %135 = dma.hbm_to_vmem [thread:$0]  %s12, 1728, %s130, [#allocation15], 192, 192, 12
    $region53: #{tpu_custom_call.1} parent=1 // pred_fallthru
      _
    // Predicated region
    $region54: #{tpu_custom_call.1} parent=1 // pred_check
      _
    $region55: #{tpu_custom_call.1} parent=1 // pred_check_branch
      %137 = sbr.rel (0) target = $region57
    $region56: #{tpu_custom_call.1} parent=1 // pred_region
      _
    $region57: #{tpu_custom_call.1} parent=1 // pred_fallthru
      _
    // Predicated region
    $region58: #{tpu_custom_call.1} parent=1 // pred_check
      _
    $region59: #{tpu_custom_call.1} parent=1 // pred_check_branch
      %139 = sbr.rel (0) target = $region61
    $region60: #{tpu_custom_call.1} parent=1 // pred_region
      _
    $region61: #{tpu_custom_call.1} parent=1 // pred_fallthru
      _
    // Predicated region
    $region62: #{tpu_custom_call.1} parent=1 // pred_check
      _
    $region63: #{tpu_custom_call.1} parent=1 // pred_check_branch
      %141 = sbr.rel (0) target = $region65
    $region64: #{tpu_custom_call.1} parent=1 // pred_region
      _
    $region65: #{tpu_custom_call.1} parent=1 // pred_fallthru
      _
    // Predicated region
    $region66: #{tpu_custom_call.1} parent=1 // pred_check
      _
    $region67: #{tpu_custom_call.1} parent=1 // pred_check_branch
      %143 = sbr.rel (0) target = $region69
    $region68: #{tpu_custom_call.1} parent=1 // pred_region
      %144 = dma.done [#allocation3], 128
    $region69: #{tpu_custom_call.1} parent=1 // pred_fallthru
      _
    // Predicated region
    $region70: #{tpu_custom_call.1} parent=1 // pred_check
      _
    $region71: #{tpu_custom_call.1} parent=1 // pred_check_branch
      %146 = sbr.rel (0) target = $region73
    $region72: #{tpu_custom_call.1} parent=1 // pred_region
      %147 = dma.done [#allocation6], 128
    $region73: #{tpu_custom_call.1} parent=1 // pred_fallthru
      _
    // Predicated region
    $region74: #{tpu_custom_call.1} parent=1 // pred_check
      _
    $region75: #{tpu_custom_call.1} parent=1 // pred_check_branch
      %149 = sbr.rel (0) target = $region77
    $region76: #{tpu_custom_call.1} parent=1 // pred_region
      %150 = dma.done [#allocation6], 128
    $region77: #{tpu_custom_call.1} parent=1 // pred_fallthru
      _
    // Predicated region
    $region78: #{tpu_custom_call.1} parent=1 // pred_check
      _
    $region79: #{tpu_custom_call.1} parent=1 // pred_check_branch
      %152 = sbr.rel (0) target = $region81
    $region80: #{tpu_custom_call.1} parent=1 // pred_region
      %153 = dma.done [#allocation9], 1536
    $region81: #{tpu_custom_call.1} parent=1 // pred_fallthru
      _
    // Predicated region
    $region82: #{tpu_custom_call.1} parent=1 // pred_check
      _
    $region83: #{tpu_custom_call.1} parent=1 // pred_check_branch
      %155 = sbr.rel (0) target = $region85
    $region84: #{tpu_custom_call.1} parent=1 // pred_region
      %156 = dma.done [#allocation9], 48
    $region85: #{tpu_custom_call.1} parent=1 // pred_fallthru
      _
    // Predicated region
    $region86: #{tpu_custom_call.1} parent=1 // pred_check
      _
    $region87: #{tpu_custom_call.1} parent=1 // pred_check_branch
      %158 = sbr.rel (0) target = $region89
    $region88: #{tpu_custom_call.1} parent=1 // pred_region
      %159 = dma.done [#allocation12], 1152
    $region89: #{tpu_custom_call.1} parent=1 // pred_fallthru
      _
    // Predicated region
    $region90: #{tpu_custom_call.1} parent=1 // pred_check
      _
    $region91: #{tpu_custom_call.1} parent=1 // pred_check_branch
      %161 = sbr.rel (0) target = $region93
    $region92: #{tpu_custom_call.1} parent=1 // pred_region
      %162 = dma.done [#allocation12], 48
    $region93: #{tpu_custom_call.1} parent=1 // pred_fallthru
      _
    // Predicated region
    $region94: #{tpu_custom_call.1} parent=1 // pred_check
      _
    $region95: #{tpu_custom_call.1} parent=1 // pred_check_branch
      %164 = sbr.rel (0) target = $region97
    $region96: #{tpu_custom_call.1} parent=1 // pred_region
      %165 = dma.done [#allocation15], 1728
    $region97: #{tpu_custom_call.1} parent=1 // pred_fallthru
      _
    // Predicated region
    $region98: #{tpu_custom_call.1} parent=1 // pred_check
      _
    $region99: #{tpu_custom_call.1} parent=1 // pred_check_branch
      %167 = sbr.rel (0) target = $region101
    $region100: #{tpu_custom_call.1} parent=1 // pred_region
      %168 = dma.done [#allocation15], 1728
    $region101: #{tpu_custom_call.1} parent=1 // pred_fallthru
      _
    %v170 = vld [vmem:[#allocation2] sm:$0xff]
    %v171 = vpack.c.bf16 %v170, %v170
    %v172 = vld [vmem:[%s3] sm:$0xff]
    %v173 = vld [vmem:[%s3 + $0x8] sm:$0xf]
    %v174 = vld [vmem:[%s3 + $0xc] sm:$0xff]
    %v175 = vld [vmem:[%s3 + $0x14] sm:$0xf]
    %v176 = vld [vmem:[%s3 + $0x18] sm:$0xff]
    %v177 = vld [vmem:[%s3 + $0x20] sm:$0xf]
    %v178 = vld [vmem:[%s3 + $0x24] sm:$0xff]
    %v179 = vld [vmem:[%s3 + $0x2c] sm:$0xf]
    %v180 = vld [vmem:[%s4] sm:$0x7]
    %v182 = vlaneseq
    %v183 = vshrl.u32 %v182, 7
    %v184 = vsub.s32 0, %v183
    %v185 = vrot.slane %v180, %v184
    %v186 = vlaneseq
    %v187 = vshrl.u32 %v186, 7
    %v188 = vsub.s32 1, %v187
    %v189 = vrot.slane %v180, %v188
    %v190 = vlaneseq
    %v191 = vshrl.u32 %v190, 7
    %v192 = vsub.s32 2, %v191
    %v193 = vrot.slane %v180, %v192
    %v205 = vunpack.c.l.b16 %v172
    %v206 = vunpack.c.h.b16 %v172
    %v207 = vunpack.c.l.b16 %v173
    %v208 = vunpack.c.l.b16 %v174
    %v209 = vunpack.c.h.b16 %v174
    %v210 = vunpack.c.l.b16 %v175
    %v211 = vunpack.c.l.b16 %v176
    %v212 = vunpack.c.h.b16 %v176
    %v213 = vunpack.c.l.b16 %v177
    %v214 = vunpack.c.l.b16 %v178
    %v215 = vunpack.c.h.b16 %v178
    %v216 = vunpack.c.l.b16 %v179
    %v217 = vpack.c.b16 %v208, %v205
    %v218 = vpack.c.b16 %v209, %v206
    %v219 = vpack.c.b16 %v210, %v207
    %v220 = vpack.c.b16 %v214, %v211
    %v221 = vpack.c.b16 %v215, %v212
    %v222 = vpack.c.b16 %v216, %v213
    %vm229 = vcmask 261120
    %v231 = vsel %vm229, %v171, 0
    %233 = vmatprep.subr.bf16.mxu0 %v218
    %234 = vmatpush1.bf16.msra.mxu0 %v217
    %235 = vmatprep.subr.bf16.mxu0 %v221
    %236 = vmatpush1.bf16.msra.mxu0 %v220
    %237 = vmatprep.subr.bf16.mxu0 0
    %238 = vmatpush1.bf16.msra.mxu0 0
    %239 = vmatprep.subr.bf16.mxu0 0
    %240 = vmatpush1.bf16.msra.mxu0 0
    %241 = vmatprep.subr.bf16.mxu0 0
    %242 = vmatpush1.bf16.msra.mxu0 0
    %243 = vmatprep.subr.bf16.mxu0 0
    %244 = vmatpush1.bf16.msra.mxu0 0
    %245 = vmatprep.subr.bf16.mxu0 0
    %246 = vmatpush1.bf16.msra.mxu0 0
    %247 = vmatprep.subr.bf16.mxu0 0
    %248 = vmatpush1.bf16.msra.mxu0 0
    %249 = vmatprep.subr.bf16.mxu0 0
    %250 = vmatpush1.bf16.msra.mxu0 0
    %251 = vmatprep.subr.bf16.mxu0 0
    %252 = vmatpush1.bf16.msra.mxu0 0
    %253 = vmatprep.subr.bf16.mxu0 0
    %254 = vmatpush1.bf16.msra.mxu0 0
    %255 = vmatprep.subr.bf16.mxu0 0
    %256 = vmatpush1.bf16.msra.mxu0 0
    %257 = vmatprep.subr.bf16.mxu0 0
    %258 = vmatpush1.bf16.msra.mxu0 0
    %259 = vmatprep.subr.bf16.mxu0 0
    %260 = vmatpush1.bf16.msra.mxu0 0
    %261 = vmatprep.subr.bf16.mxu0 0
    %262 = vmatpush1.bf16.msra.mxu0 0
    %263 = vmatprep.subr.bf16.mxu0 0
    %264 = vmatpush1.bf16.msra.mxu0 0
    %265 = vmatprep.mubr.bf16.mxu0 0
    %266 = vmatmul.mubr.bf16.gmra.mrb[0].mxu0 %v231
    %v267 = vpop.f32.mrb[0].mxu0
    %v268 = vadd.f32 %v185, %v267
    %v269 = vpop.f32.mrb[0].mxu0
    %v270 = vadd.f32 %v189, %v269
    %v271 = vpop.f32.mrb[0].mxu0
    %v272 = vpop.f32.mrb[0].mxu0
    %273 = vdwg.mxu0
    %274 = vmatprep.subr.bf16.mxu0 0
    %275 = vmatpush1.bf16.msra.mxu0 %v219
    %276 = vmatprep.subr.bf16.mxu0 0
    %277 = vmatpush1.bf16.msra.mxu0 %v222
    %278 = vmatprep.subr.bf16.mxu0 0
    %279 = vmatpush1.bf16.msra.mxu0 0
    %280 = vmatprep.subr.bf16.mxu0 0
    %281 = vmatpush1.bf16.msra.mxu0 0
    %282 = vmatprep.subr.bf16.mxu0 0
    %283 = vmatpush1.bf16.msra.mxu0 0
    %284 = vmatprep.subr.bf16.mxu0 0
    %285 = vmatpush1.bf16.msra.mxu0 0
    %286 = vmatprep.subr.bf16.mxu0 0
    %287 = vmatpush1.bf16.msra.mxu0 0
    %288 = vmatprep.subr.bf16.mxu0 0
    %289 = vmatpush1.bf16.msra.mxu0 0
    %290 = vmatprep.subr.bf16.mxu0 0
    %291 = vmatpush1.bf16.msra.mxu0 0
    %292 = vmatprep.subr.bf16.mxu0 0
    %293 = vmatpush1.bf16.msra.mxu0 0
    %294 = vmatprep.subr.bf16.mxu0 0
    %295 = vmatpush1.bf16.msra.mxu0 0
    %296 = vmatprep.subr.bf16.mxu0 0
    %297 = vmatpush1.bf16.msra.mxu0 0
    %298 = vmatprep.subr.bf16.mxu0 0
    %299 = vmatpush1.bf16.msra.mxu0 0
    %300 = vmatprep.subr.bf16.mxu0 0
    %301 = vmatpush1.bf16.msra.mxu0 0
    %302 = vmatprep.subr.bf16.mxu0 0
    %303 = vmatpush1.bf16.msra.mxu0 0
    %304 = vmatprep.subr.bf16.mxu0 0
    %305 = vmatpush1.bf16.msra.mxu0 0
    %306 = vmatprep.mubr.bf16.mxu0 0
    %307 = vmatmul.mubr.bf16.gmra.mrb[0].mxu0 %v231
    %v308 = vpop.f32.mrb[0].mxu0
    %v309 = vadd.f32 %v193, %v308
    %v310 = vpop.f32.mrb[0].mxu0
    %v311 = vpop.f32.mrb[0].mxu0
    %v312 = vpop.f32.mrb[0].mxu0
    %313 = vdwg.mxu0
    %v314 = vld [vmem:[#allocation5] sm:$0xff]
    %v315 = vpack.c.bf16 %v314, %v314
    %v316 = vld [vmem:[#allocation8] sm:$0xff]
    %v317 = vld [vmem:[#allocation8 + $0x8] sm:$0xf]
    %v318 = vld [vmem:[#allocation8 + $0xc] sm:$0xff]
    %v319 = vld [vmem:[#allocation8 + $0x14] sm:$0xf]
    %v320 = vld [vmem:[#allocation8 + $0x18] sm:$0xff]
    %v321 = vld [vmem:[#allocation8 + $0x20] sm:$0xf]
    %v322 = vld [vmem:[#allocation8 + $0x24] sm:$0xff]
    %v323 = vld [vmem:[#allocation8 + $0x2c] sm:$0xf]
    %v324 = vld [vmem:[#allocation8 + $0x30] sm:$0xff]
    %v325 = vld [vmem:[#allocation8 + $0x38] sm:$0xf]
    %v326 = vld [vmem:[#allocation8 + $0x3c] sm:$0xff]
    %v327 = vld [vmem:[#allocation8 + $0x44] sm:$0xf]
    %v328 = vld [vmem:[#allocation8 + $0x48] sm:$0xff]
    %v329 = vld [vmem:[#allocation8 + $0x50] sm:$0xf]
    %v330 = vld [vmem:[#allocation8 + $0x54] sm:$0xff]
    %v331 = vld [vmem:[#allocation8 + $0x5c] sm:$0xf]
    %v332 = vld [vmem:[#allocation10] sm:$0x7]
    %v334 = vlaneseq
    %v335 = vshrl.u32 %v334, 7
    %v336 = vsub.s32 0, %v335
    %v337 = vrot.slane %v332, %v336
    %v338 = vlaneseq
    %v339 = vshrl.u32 %v338, 7
    %v340 = vsub.s32 1, %v339
    %v341 = vrot.slane %v332, %v340
    %v342 = vlaneseq
    %v343 = vshrl.u32 %v342, 7
    %v344 = vsub.s32 2, %v343
    %v345 = vrot.slane %v332, %v344
    %v365 = vunpack.c.l.b16 %v316
    %v366 = vunpack.c.h.b16 %v316
    %v367 = vunpack.c.l.b16 %v317
    %v368 = vunpack.c.l.b16 %v318
    %v369 = vunpack.c.h.b16 %v318
    %v370 = vunpack.c.l.b16 %v319
    %v371 = vunpack.c.l.b16 %v320
    %v372 = vunpack.c.h.b16 %v320
    %v373 = vunpack.c.l.b16 %v321
    %v374 = vunpack.c.l.b16 %v322
    %v375 = vunpack.c.h.b16 %v322
    %v376 = vunpack.c.l.b16 %v323
    %v377 = vunpack.c.l.b16 %v324
    %v378 = vunpack.c.h.b16 %v324
    %v379 = vunpack.c.l.b16 %v325
    %v380 = vunpack.c.l.b16 %v326
    %v381 = vunpack.c.h.b16 %v326
    %v382 = vunpack.c.l.b16 %v327
    %v383 = vunpack.c.l.b16 %v328
    %v384 = vunpack.c.h.b16 %v328
    %v385 = vunpack.c.l.b16 %v329
    %v386 = vunpack.c.l.b16 %v330
    %v387 = vunpack.c.h.b16 %v330
    %v388 = vunpack.c.l.b16 %v331
    %v389 = vpack.c.b16 %v368, %v365
    %v390 = vpack.c.b16 %v369, %v366
    %v391 = vpack.c.b16 %v370, %v367
    %v392 = vpack.c.b16 %v374, %v371
    %v393 = vpack.c.b16 %v375, %v372
    %v394 = vpack.c.b16 %v376, %v373
    %v395 = vpack.c.b16 %v380, %v377
    %v396 = vpack.c.b16 %v381, %v378
    %v397 = vpack.c.b16 %v382, %v379
    %v398 = vpack.c.b16 %v386, %v383
    %v399 = vpack.c.b16 %v387, %v384
    %v400 = vpack.c.b16 %v388, %v385
    %vm413 = vcmask 523264
    %v415 = vsel %vm413, %v315, 0
    %417 = vmatprep.subr.bf16.mxu0 %v390
    %418 = vmatpush1.bf16.msra.mxu0 %v389
    %419 = vmatprep.subr.bf16.mxu0 %v393
    %420 = vmatpush1.bf16.msra.mxu0 %v392
    %421 = vmatprep.subr.bf16.mxu0 %v396
    %422 = vmatpush1.bf16.msra.mxu0 %v395
    %423 = vmatprep.subr.bf16.mxu0 %v399
    %424 = vmatpush1.bf16.msra.mxu0 %v398
    %425 = vmatprep.subr.bf16.mxu0 0
    %426 = vmatpush1.bf16.msra.mxu0 0
    %427 = vmatprep.subr.bf16.mxu0 0
    %428 = vmatpush1.bf16.msra.mxu0 0
    %429 = vmatprep.subr.bf16.mxu0 0
    %430 = vmatpush1.bf16.msra.mxu0 0
    %431 = vmatprep.subr.bf16.mxu0 0
    %432 = vmatpush1.bf16.msra.mxu0 0
    %433 = vmatprep.subr.bf16.mxu0 0
    %434 = vmatpush1.bf16.msra.mxu0 0
    %435 = vmatprep.subr.bf16.mxu0 0
    %436 = vmatpush1.bf16.msra.mxu0 0
    %437 = vmatprep.subr.bf16.mxu0 0
    %438 = vmatpush1.bf16.msra.mxu0 0
    %439 = vmatprep.subr.bf16.mxu0 0
    %440 = vmatpush1.bf16.msra.mxu0 0
    %441 = vmatprep.subr.bf16.mxu0 0
    %442 = vmatpush1.bf16.msra.mxu0 0
    %443 = vmatprep.subr.bf16.mxu0 0
    %444 = vmatpush1.bf16.msra.mxu0 0
    %445 = vmatprep.subr.bf16.mxu0 0
    %446 = vmatpush1.bf16.msra.mxu0 0
    %447 = vmatprep.subr.bf16.mxu0 0
    %448 = vmatpush1.bf16.msra.mxu0 0
    %449 = vmatprep.mubr.bf16.mxu0 0
    %450 = vmatmul.mubr.bf16.gmra.mrb[0].mxu0 %v415
    %v451 = vpop.f32.mrb[0].mxu0
    %v452 = vadd.f32 %v337, %v451
    %v453 = vpop.f32.mrb[0].mxu0
    %v454 = vadd.f32 %v341, %v453
    %v455 = vpop.f32.mrb[0].mxu0
    %v456 = vpop.f32.mrb[0].mxu0
    %457 = vdwg.mxu0
    %458 = vmatprep.subr.bf16.mxu0 0
    %459 = vmatpush1.bf16.msra.mxu0 %v391
    %460 = vmatprep.subr.bf16.mxu0 0
    %461 = vmatpush1.bf16.msra.mxu0 %v394
    %462 = vmatprep.subr.bf16.mxu0 0
    %463 = vmatpush1.bf16.msra.mxu0 %v397
    %464 = vmatprep.subr.bf16.mxu0 0
    %465 = vmatpush1.bf16.msra.mxu0 %v400
    %466 = vmatprep.subr.bf16.mxu0 0
    %467 = vmatpush1.bf16.msra.mxu0 0
    %468 = vmatprep.subr.bf16.mxu0 0
    %469 = vmatpush1.bf16.msra.mxu0 0
    %470 = vmatprep.subr.bf16.mxu0 0
    %471 = vmatpush1.bf16.msra.mxu0 0
    %472 = vmatprep.subr.bf16.mxu0 0
    %473 = vmatpush1.bf16.msra.mxu0 0
    %474 = vmatprep.subr.bf16.mxu0 0
    %475 = vmatpush1.bf16.msra.mxu0 0
    %476 = vmatprep.subr.bf16.mxu0 0
    %477 = vmatpush1.bf16.msra.mxu0 0
    %478 = vmatprep.subr.bf16.mxu0 0
    %479 = vmatpush1.bf16.msra.mxu0 0
    %480 = vmatprep.subr.bf16.mxu0 0
    %481 = vmatpush1.bf16.msra.mxu0 0
    %482 = vmatprep.subr.bf16.mxu0 0
    %483 = vmatpush1.bf16.msra.mxu0 0
    %484 = vmatprep.subr.bf16.mxu0 0
    %485 = vmatpush1.bf16.msra.mxu0 0
    %486 = vmatprep.subr.bf16.mxu0 0
    %487 = vmatpush1.bf16.msra.mxu0 0
    %488 = vmatprep.subr.bf16.mxu0 0
    %489 = vmatpush1.bf16.msra.mxu0 0
    %490 = vmatprep.mubr.bf16.mxu0 0
    %491 = vmatmul.mubr.bf16.gmra.mrb[0].mxu0 %v415
    %v492 = vpop.f32.mrb[0].mxu0
    %v493 = vadd.f32 %v345, %v492
    %v494 = vpop.f32.mrb[0].mxu0
    %v495 = vpop.f32.mrb[0].mxu0
    %v496 = vpop.f32.mrb[0].mxu0
    %497 = vdwg.mxu0
    %v498 = vld [vmem:[#allocation7] sm:$0xff]
    %v499 = vpack.c.bf16 %v498, %v498
    %v500 = vld [vmem:[#allocation11] sm:$0xff]
    %v501 = vld [vmem:[#allocation11 + $0x8] sm:$0xf]
    %v502 = vld [vmem:[#allocation11 + $0xc] sm:$0xff]
    %v503 = vld [vmem:[#allocation11 + $0x14] sm:$0xf]
    %v504 = vld [vmem:[#allocation11 + $0x18] sm:$0xff]
    %v505 = vld [vmem:[#allocation11 + $0x20] sm:$0xf]
    %v506 = vld [vmem:[#allocation11 + $0x24] sm:$0xff]
    %v507 = vld [vmem:[#allocation11 + $0x2c] sm:$0xf]
    %v508 = vld [vmem:[#allocation11 + $0x30] sm:$0xff]
    %v509 = vld [vmem:[#allocation11 + $0x38] sm:$0xf]
    %v510 = vld [vmem:[#allocation11 + $0x3c] sm:$0xff]
    %v511 = vld [vmem:[#allocation11 + $0x44] sm:$0xf]
    %v512 = vld [vmem:[#allocation13] sm:$0x7]
    %v514 = vlaneseq
    %v515 = vshrl.u32 %v514, 7
    %v516 = vsub.s32 0, %v515
    %v517 = vrot.slane %v512, %v516
    %v518 = vlaneseq
    %v519 = vshrl.u32 %v518, 7
    %v520 = vsub.s32 1, %v519
    %v521 = vrot.slane %v512, %v520
    %v522 = vlaneseq
    %v523 = vshrl.u32 %v522, 7
    %v524 = vsub.s32 2, %v523
    %v525 = vrot.slane %v512, %v524
    %v541 = vunpack.c.l.b16 %v500
    %v542 = vunpack.c.h.b16 %v500
    %v543 = vunpack.c.l.b16 %v501
    %v544 = vunpack.c.l.b16 %v502
    %v545 = vunpack.c.h.b16 %v502
    %v546 = vunpack.c.l.b16 %v503
    %v547 = vunpack.c.l.b16 %v504
    %v548 = vunpack.c.h.b16 %v504
    %v549 = vunpack.c.l.b16 %v505
    %v550 = vunpack.c.l.b16 %v506
    %v551 = vunpack.c.h.b16 %v506
    %v552 = vunpack.c.l.b16 %v507
    %v553 = vunpack.c.l.b16 %v508
    %v554 = vunpack.c.h.b16 %v508
    %v555 = vunpack.c.l.b16 %v509
    %v556 = vunpack.c.l.b16 %v510
    %v557 = vunpack.c.h.b16 %v510
    %v558 = vunpack.c.l.b16 %v511
    %v559 = vpack.c.b16 %v544, %v541
    %v560 = vpack.c.b16 %v545, %v542
    %v561 = vpack.c.b16 %v546, %v543
    %v562 = vpack.c.b16 %v550, %v547
    %v563 = vpack.c.b16 %v551, %v548
    %v564 = vpack.c.b16 %v552, %v549
    %v565 = vpack.c.b16 %v556, %v553
    %v566 = vpack.c.b16 %v557, %v554
    %v567 = vpack.c.b16 %v558, %v555
    %vm577 = vcmask 392192
    %v579 = vsel %vm577, %v499, 0
    %581 = vmatprep.subr.bf16.mxu0 %v560
    %582 = vmatpush1.bf16.msra.mxu0 %v559
    %583 = vmatprep.subr.bf16.mxu0 %v563
    %584 = vmatpush1.bf16.msra.mxu0 %v562
    %585 = vmatprep.subr.bf16.mxu0 %v566
    %586 = vmatpush1.bf16.msra.mxu0 %v565
    %587 = vmatprep.subr.bf16.mxu0 0
    %588 = vmatpush1.bf16.msra.mxu0 0
    %589 = vmatprep.subr.bf16.mxu0 0
    %590 = vmatpush1.bf16.msra.mxu0 0
    %591 = vmatprep.subr.bf16.mxu0 0
    %592 = vmatpush1.bf16.msra.mxu0 0
    %593 = vmatprep.subr.bf16.mxu0 0
    %594 = vmatpush1.bf16.msra.mxu0 0
    %595 = vmatprep.subr.bf16.mxu0 0
    %596 = vmatpush1.bf16.msra.mxu0 0
    %597 = vmatprep.subr.bf16.mxu0 0
    %598 = vmatpush1.bf16.msra.mxu0 0
    %599 = vmatprep.subr.bf16.mxu0 0
    %600 = vmatpush1.bf16.msra.mxu0 0
    %601 = vmatprep.subr.bf16.mxu0 0
    %602 = vmatpush1.bf16.msra.mxu0 0
    %603 = vmatprep.subr.bf16.mxu0 0
    %604 = vmatpush1.bf16.msra.mxu0 0
    %605 = vmatprep.subr.bf16.mxu0 0
    %606 = vmatpush1.bf16.msra.mxu0 0
    %607 = vmatprep.subr.bf16.mxu0 0
    %608 = vmatpush1.bf16.msra.mxu0 0
    %609 = vmatprep.subr.bf16.mxu0 0
    %610 = vmatpush1.bf16.msra.mxu0 0
    %611 = vmatprep.subr.bf16.mxu0 0
    %612 = vmatpush1.bf16.msra.mxu0 0
    %613 = vmatprep.mubr.bf16.mxu0 0
    %614 = vmatmul.mubr.bf16.gmra.mrb[0].mxu0 %v579
    %v615 = vpop.f32.mrb[0].mxu0
    %v616 = vadd.f32 %v517, %v615
    %v617 = vpop.f32.mrb[0].mxu0
    %v618 = vadd.f32 %v521, %v617
    %v619 = vpop.f32.mrb[0].mxu0
    %v620 = vpop.f32.mrb[0].mxu0
    %621 = vdwg.mxu0
    %622 = vmatprep.subr.bf16.mxu0 0
    %623 = vmatpush1.bf16.msra.mxu0 %v561
    %624 = vmatprep.subr.bf16.mxu0 0
    %625 = vmatpush1.bf16.msra.mxu0 %v564
    %626 = vmatprep.subr.bf16.mxu0 0
    %627 = vmatpush1.bf16.msra.mxu0 %v567
    %628 = vmatprep.subr.bf16.mxu0 0
    %629 = vmatpush1.bf16.msra.mxu0 0
    %630 = vmatprep.subr.bf16.mxu0 0
    %631 = vmatpush1.bf16.msra.mxu0 0
    %632 = vmatprep.subr.bf16.mxu0 0
    %633 = vmatpush1.bf16.msra.mxu0 0
    %634 = vmatprep.subr.bf16.mxu0 0
    %635 = vmatpush1.bf16.msra.mxu0 0
    %636 = vmatprep.subr.bf16.mxu0 0
    %637 = vmatpush1.bf16.msra.mxu0 0
    %638 = vmatprep.subr.bf16.mxu0 0
    %639 = vmatpush1.bf16.msra.mxu0 0
    %640 = vmatprep.subr.bf16.mxu0 0
    %641 = vmatpush1.bf16.msra.mxu0 0
    %642 = vmatprep.subr.bf16.mxu0 0
    %643 = vmatpush1.bf16.msra.mxu0 0
    %644 = vmatprep.subr.bf16.mxu0 0
    %645 = vmatpush1.bf16.msra.mxu0 0
    %646 = vmatprep.subr.bf16.mxu0 0
    %647 = vmatpush1.bf16.msra.mxu0 0
    %648 = vmatprep.subr.bf16.mxu0 0
    %649 = vmatpush1.bf16.msra.mxu0 0
    %650 = vmatprep.subr.bf16.mxu0 0
    %651 = vmatpush1.bf16.msra.mxu0 0
    %652 = vmatprep.subr.bf16.mxu0 0
    %653 = vmatpush1.bf16.msra.mxu0 0
    %654 = vmatprep.mubr.bf16.mxu0 0
    %655 = vmatmul.mubr.bf16.gmra.mrb[0].mxu0 %v579
    %v656 = vpop.f32.mrb[0].mxu0
    %v657 = vadd.f32 %v525, %v656
    %v658 = vpop.f32.mrb[0].mxu0
    %v659 = vpop.f32.mrb[0].mxu0
    %v660 = vpop.f32.mrb[0].mxu0
    %661 = vdwg.mxu0
    %v662 = vld [vmem:[%s9] sm:$0xf]
    %v663 = vld [vmem:[%s9 + $0x4] sm:$0xf]
    %v664 = vld [vmem:[%s9 + $0x8] sm:$0xf]
    %v665 = vld [vmem:[%s9 + $0xc] sm:$0xf]
    %v666 = vld [vmem:[%s9 + $0x10] sm:$0xf]
    %v667 = vld [vmem:[%s9 + $0x14] sm:$0xf]
    %v668 = vld [vmem:[%s9 + $0x18] sm:$0xf]
    %v669 = vld [vmem:[%s9 + $0x1c] sm:$0xf]
    %v670 = vld [vmem:[%s9 + $0x20] sm:$0xf]
    %v671 = vld [vmem:[%s9 + $0x24] sm:$0xf]
    %v672 = vld [vmem:[%s9 + $0x28] sm:$0xf]
    %v673 = vld [vmem:[%s9 + $0x2c] sm:$0xf]
    %v674 = vld [vmem:[%s9 + $0x30] sm:$0xf]
    %v675 = vld [vmem:[%s9 + $0x34] sm:$0xf]
    %v676 = vld [vmem:[%s9 + $0x38] sm:$0xf]
    %v677 = vld [vmem:[%s9 + $0x3c] sm:$0xf]
    %v678 = vld [vmem:[%s9 + $0x40] sm:$0xf]
    %v679 = vld [vmem:[%s9 + $0x44] sm:$0xf]
    %v680 = vld [vmem:[%s9 + $0x48] sm:$0xf]
    %v681 = vld [vmem:[%s9 + $0x4c] sm:$0xf]
    %v682 = vld [vmem:[%s9 + $0x50] sm:$0xf]
    %v683 = vld [vmem:[%s9 + $0x54] sm:$0xf]
    %v684 = vld [vmem:[%s9 + $0x58] sm:$0xf]
    %v685 = vld [vmem:[%s9 + $0x5c] sm:$0xf]
    %v686 = vld [vmem:[%s9 + $0x60] sm:$0xf]
    %v687 = vld [vmem:[%s9 + $0x64] sm:$0xf]
    %v688 = vld [vmem:[%s9 + $0x68] sm:$0xf]
    %v689 = vld [vmem:[%s9 + $0x6c] sm:$0xf]
    %v690 = vld [vmem:[%s9 + $0x70] sm:$0xf]
    %v691 = vld [vmem:[%s9 + $0x74] sm:$0xf]
    %v692 = vld [vmem:[%s9 + $0x78] sm:$0xf]
    %v693 = vld [vmem:[%s9 + $0x7c] sm:$0xf]
    %v694 = vld [vmem:[%s9 + $0x80] sm:$0xf]
    %v695 = vld [vmem:[%s9 + $0x84] sm:$0xf]
    %v696 = vld [vmem:[%s9 + $0x88] sm:$0xf]
    %v697 = vld [vmem:[%s9 + $0x8c] sm:$0xf]
    %v698 = vld [vmem:[%s9 + $0x90] sm:$0xf]
    %v699 = vld [vmem:[%s9 + $0x94] sm:$0xf]
    %v700 = vld [vmem:[%s9 + $0x98] sm:$0xf]
    %v701 = vld [vmem:[%s9 + $0x9c] sm:$0xf]
    %v702 = vld [vmem:[%s9 + $0xa0] sm:$0xf]
    %v703 = vld [vmem:[%s9 + $0xa4] sm:$0xf]
    %v704 = vld [vmem:[%s9 + $0xa8] sm:$0xf]
    %v705 = vld [vmem:[%s9 + $0xac] sm:$0xf]
    %v706 = vld [vmem:[%s9 + $0xb0] sm:$0xf]
    %v707 = vld [vmem:[%s9 + $0xb4] sm:$0xf]
    %v708 = vld [vmem:[%s9 + $0xb8] sm:$0xf]
    %v709 = vld [vmem:[%s9 + $0xbc] sm:$0xf]
    %v710 = vmul.f32 %v268, %v270
    %v711 = vpack.c.bf16 %v710, %v710
    %v712 = vmul.f32 %v452, %v270
    %v713 = vpack.c.bf16 %v712, %v712
    %v714 = vmul.f32 %v616, %v270
    %v715 = vpack.c.bf16 %v714, %v714
    %v764 = vunpack.c.l.b16 %v662
    %v765 = vunpack.c.l.b16 %v663
    %v766 = vunpack.c.l.b16 %v664
    %v767 = vunpack.c.l.b16 %v665
    %v768 = vunpack.c.l.b16 %v666
    %v769 = vunpack.c.l.b16 %v667
    %v770 = vunpack.c.l.b16 %v668
    %v771 = vunpack.c.l.b16 %v669
    %v772 = vunpack.c.l.b16 %v670
    %v773 = vunpack.c.l.b16 %v671
    %v774 = vunpack.c.l.b16 %v672
    %v775 = vunpack.c.l.b16 %v673
    %v776 = vunpack.c.l.b16 %v674
    %v777 = vunpack.c.l.b16 %v675
    %v778 = vunpack.c.l.b16 %v676
    %v779 = vunpack.c.l.b16 %v677
    %v780 = vunpack.c.l.b16 %v678
    %v781 = vunpack.c.l.b16 %v679
    %v782 = vunpack.c.l.b16 %v680
    %v783 = vunpack.c.l.b16 %v681
    %v784 = vunpack.c.l.b16 %v682
    %v785 = vunpack.c.l.b16 %v683
    %v786 = vunpack.c.l.b16 %v684
    %v787 = vunpack.c.l.b16 %v685
    %v788 = vunpack.c.l.b16 %v686
    %v789 = vunpack.c.l.b16 %v687
    %v790 = vunpack.c.l.b16 %v688
    %v791 = vunpack.c.l.b16 %v689
    %v792 = vunpack.c.l.b16 %v690
    %v793 = vunpack.c.l.b16 %v691
    %v794 = vunpack.c.l.b16 %v692
    %v795 = vunpack.c.l.b16 %v693
    %v796 = vunpack.c.l.b16 %v694
    %v797 = vunpack.c.l.b16 %v695
    %v798 = vunpack.c.l.b16 %v696
    %v799 = vunpack.c.l.b16 %v697
    %v800 = vunpack.c.l.b16 %v698
    %v801 = vunpack.c.l.b16 %v699
    %v802 = vunpack.c.l.b16 %v700
    %v803 = vunpack.c.l.b16 %v701
    %v804 = vunpack.c.l.b16 %v702
    %v805 = vunpack.c.l.b16 %v703
    %v806 = vunpack.c.l.b16 %v704
    %v807 = vunpack.c.l.b16 %v705
    %v808 = vunpack.c.l.b16 %v706
    %v809 = vunpack.c.l.b16 %v707
    %v810 = vunpack.c.l.b16 %v708
    %v811 = vunpack.c.l.b16 %v709
    %v812 = vpack.c.b16 %v765, %v764
    %v813 = vpack.c.b16 %v767, %v766
    %v814 = vpack.c.b16 %v769, %v768
    %v815 = vpack.c.b16 %v771, %v770
    %v816 = vpack.c.b16 %v773, %v772
    %v817 = vpack.c.b16 %v775, %v774
    %v818 = vpack.c.b16 %v777, %v776
    %v819 = vpack.c.b16 %v779, %v778
    %v820 = vpack.c.b16 %v781, %v780
    %v821 = vpack.c.b16 %v783, %v782
    %v822 = vpack.c.b16 %v785, %v784
    %v823 = vpack.c.b16 %v787, %v786
    %v824 = vpack.c.b16 %v789, %v788
    %v825 = vpack.c.b16 %v791, %v790
    %v826 = vpack.c.b16 %v793, %v792
    %v827 = vpack.c.b16 %v795, %v794
    %v828 = vpack.c.b16 %v797, %v796
    %v829 = vpack.c.b16 %v799, %v798
    %v830 = vpack.c.b16 %v801, %v800
    %v831 = vpack.c.b16 %v803, %v802
    %v832 = vpack.c.b16 %v805, %v804
    %v833 = vpack.c.b16 %v807, %v806
    %v834 = vpack.c.b16 %v809, %v808
    %v835 = vpack.c.b16 %v811, %v810
    %860 = vmatprep.subr.bf16.mxu0 0
    %861 = vmatpush1.bf16.msra.mxu0 %v812
    %862 = vmatprep.subr.bf16.mxu0 0
    %863 = vmatpush1.bf16.msra.mxu0 %v813
    %864 = vmatprep.subr.bf16.mxu0 0
    %865 = vmatpush1.bf16.msra.mxu0 %v814
    %866 = vmatprep.subr.bf16.mxu0 0
    %867 = vmatpush1.bf16.msra.mxu0 %v815
    %868 = vmatprep.subr.bf16.mxu0 0
    %869 = vmatpush1.bf16.msra.mxu0 %v816
    %870 = vmatprep.subr.bf16.mxu0 0
    %871 = vmatpush1.bf16.msra.mxu0 %v817
    %872 = vmatprep.subr.bf16.mxu0 0
    %873 = vmatpush1.bf16.msra.mxu0 %v818
    %874 = vmatprep.subr.bf16.mxu0 0
    %875 = vmatpush1.bf16.msra.mxu0 %v819
    %876 = vmatprep.subr.bf16.mxu0 0
    %877 = vmatpush1.bf16.msra.mxu0 %v820
    %878 = vmatprep.subr.bf16.mxu0 0
    %879 = vmatpush1.bf16.msra.mxu0 %v821
    %880 = vmatprep.subr.bf16.mxu0 0
    %881 = vmatpush1.bf16.msra.mxu0 %v822
    %882 = vmatprep.subr.bf16.mxu0 0
    %883 = vmatpush1.bf16.msra.mxu0 %v823
    %884 = vmatprep.subr.bf16.mxu0 0
    %885 = vmatpush1.bf16.msra.mxu0 %v824
    %886 = vmatprep.subr.bf16.mxu0 0
    %887 = vmatpush1.bf16.msra.mxu0 %v825
    %888 = vmatprep.subr.bf16.mxu0 0
    %889 = vmatpush1.bf16.msra.mxu0 %v826
    %890 = vmatprep.subr.bf16.mxu0 0
    %891 = vmatpush1.bf16.msra.mxu0 %v827
    %892 = vmatprep.mubr.bf16.mxu0 %v713
    %893 = vmatmul.mubr.bf16.gmra.mrb[0].mxu0 %v711
    %v894 = vpop.f32.mrb[0].mxu0
    %v895 = vadd.f32 0.0, %v894
    %v896 = vpop.f32.mrb[0].mxu0
    %v897 = vpop.f32.mrb[0].mxu0
    %v898 = vpop.f32.mrb[0].mxu0
    %899 = vdwg.mxu0
    %900 = vmatprep.subr.bf16.mxu0 0
    %901 = vmatpush1.bf16.msra.mxu0 %v828
    %902 = vmatprep.subr.bf16.mxu0 0
    %903 = vmatpush1.bf16.msra.mxu0 %v829
    %904 = vmatprep.subr.bf16.mxu0 0
    %905 = vmatpush1.bf16.msra.mxu0 %v830
    %906 = vmatprep.subr.bf16.mxu0 0
    %907 = vmatpush1.bf16.msra.mxu0 %v831
    %908 = vmatprep.subr.bf16.mxu0 0
    %909 = vmatpush1.bf16.msra.mxu0 %v832
    %910 = vmatprep.subr.bf16.mxu0 0
    %911 = vmatpush1.bf16.msra.mxu0 %v833
    %912 = vmatprep.subr.bf16.mxu0 0
    %913 = vmatpush1.bf16.msra.mxu0 %v834
    %914 = vmatprep.subr.bf16.mxu0 0
    %915 = vmatpush1.bf16.msra.mxu0 %v835
    %916 = vmatprep.subr.bf16.mxu0 0
    %917 = vmatpush1.bf16.msra.mxu0 0
    %918 = vmatprep.subr.bf16.mxu0 0
    %919 = vmatpush1.bf16.msra.mxu0 0
    %920 = vmatprep.subr.bf16.mxu0 0
    %921 = vmatpush1.bf16.msra.mxu0 0
    %922 = vmatprep.subr.bf16.mxu0 0
    %923 = vmatpush1.bf16.msra.mxu0 0
    %924 = vmatprep.subr.bf16.mxu0 0
    %925 = vmatpush1.bf16.msra.mxu0 0
    %926 = vmatprep.subr.bf16.mxu0 0
    %927 = vmatpush1.bf16.msra.mxu0 0
    %928 = vmatprep.subr.bf16.mxu0 0
    %929 = vmatpush1.bf16.msra.mxu0 0
    %930 = vmatprep.subr.bf16.mxu0 0
    %931 = vmatpush1.bf16.msra.mxu0 0
    %932 = vmatprep.mubr.bf16.mxu0 0
    %933 = vmatmul.mubr.bf16.gmra.mrb[0].mxu0 %v715
    %v934 = vpop.f32.mrb[0].mxu0
    %v935 = vadd.f32 %v895, %v934
    %v936 = vpop.f32.mrb[0].mxu0
    %v937 = vpop.f32.mrb[0].mxu0
    %v938 = vpop.f32.mrb[0].mxu0
    %939 = vdwg.mxu0
    %v940 = vmul.f32 %v268, %v454
    %v941 = vpack.c.bf16 %v940, %v940
    %v942 = vmul.f32 %v452, %v454
    %v943 = vpack.c.bf16 %v942, %v942
    %v944 = vmul.f32 %v616, %v454
    %v945 = vpack.c.bf16 %v944, %v944
    %946 = vmatprep.subr.bf16.mxu0 0
    %947 = vmatpush1.bf16.msra.mxu0 %v812
    %948 = vmatprep.subr.bf16.mxu0 0
    %949 = vmatpush1.bf16.msra.mxu0 %v813
    %950 = vmatprep.subr.bf16.mxu0 0
    %951 = vmatpush1.bf16.msra.mxu0 %v814
    %952 = vmatprep.subr.bf16.mxu0 0
    %953 = vmatpush1.bf16.msra.mxu0 %v815
    %954 = vmatprep.subr.bf16.mxu0 0
    %955 = vmatpush1.bf16.msra.mxu0 %v816
    %956 = vmatprep.subr.bf16.mxu0 0
    %957 = vmatpush1.bf16.msra.mxu0 %v817
    %958 = vmatprep.subr.bf16.mxu0 0
    %959 = vmatpush1.bf16.msra.mxu0 %v818
    %960 = vmatprep.subr.bf16.mxu0 0
    %961 = vmatpush1.bf16.msra.mxu0 %v819
    %962 = vmatprep.subr.bf16.mxu0 0
    %963 = vmatpush1.bf16.msra.mxu0 %v820
    %964 = vmatprep.subr.bf16.mxu0 0
    %965 = vmatpush1.bf16.msra.mxu0 %v821
    %966 = vmatprep.subr.bf16.mxu0 0
    %967 = vmatpush1.bf16.msra.mxu0 %v822
    %968 = vmatprep.subr.bf16.mxu0 0
    %969 = vmatpush1.bf16.msra.mxu0 %v823
    %970 = vmatprep.subr.bf16.mxu0 0
    %971 = vmatpush1.bf16.msra.mxu0 %v824
    %972 = vmatprep.subr.bf16.mxu0 0
    %973 = vmatpush1.bf16.msra.mxu0 %v825
    %974 = vmatprep.subr.bf16.mxu0 0
    %975 = vmatpush1.bf16.msra.mxu0 %v826
    %976 = vmatprep.subr.bf16.mxu0 0
    %977 = vmatpush1.bf16.msra.mxu0 %v827
    %978 = vmatprep.mubr.bf16.mxu0 %v943
    %979 = vmatmul.mubr.bf16.gmra.mrb[0].mxu0 %v941
    %v980 = vpop.f32.mrb[0].mxu0
    %v981 = vadd.f32 0.0, %v980
    %v982 = vpop.f32.mrb[0].mxu0
    %v983 = vpop.f32.mrb[0].mxu0
    %v984 = vpop.f32.mrb[0].mxu0
    %985 = vdwg.mxu0
    %986 = vmatprep.subr.bf16.mxu0 0
    %987 = vmatpush1.bf16.msra.mxu0 %v828
    %988 = vmatprep.subr.bf16.mxu0 0
    %989 = vmatpush1.bf16.msra.mxu0 %v829
    %990 = vmatprep.subr.bf16.mxu0 0
    %991 = vmatpush1.bf16.msra.mxu0 %v830
    %992 = vmatprep.subr.bf16.mxu0 0
    %993 = vmatpush1.bf16.msra.mxu0 %v831
    %994 = vmatprep.subr.bf16.mxu0 0
    %995 = vmatpush1.bf16.msra.mxu0 %v832
    %996 = vmatprep.subr.bf16.mxu0 0
    %997 = vmatpush1.bf16.msra.mxu0 %v833
    %998 = vmatprep.subr.bf16.mxu0 0
    %999 = vmatpush1.bf16.msra.mxu0 %v834
    %1000 = vmatprep.subr.bf16.mxu0 0
    %1001 = vmatpush1.bf16.msra.mxu0 %v835
    %1002 = vmatprep.subr.bf16.mxu0 0
    %1003 = vmatpush1.bf16.msra.mxu0 0
    %1004 = vmatprep.subr.bf16.mxu0 0
    %1005 = vmatpush1.bf16.msra.mxu0 0
    %1006 = vmatprep.subr.bf16.mxu0 0
    %1007 = vmatpush1.bf16.msra.mxu0 0
    %1008 = vmatprep.subr.bf16.mxu0 0
    %1009 = vmatpush1.bf16.msra.mxu0 0
    %1010 = vmatprep.subr.bf16.mxu0 0
    %1011 = vmatpush1.bf16.msra.mxu0 0
    %1012 = vmatprep.subr.bf16.mxu0 0
    %1013 = vmatpush1.bf16.msra.mxu0 0
    %1014 = vmatprep.subr.bf16.mxu0 0
    %1015 = vmatpush1.bf16.msra.mxu0 0
    %1016 = vmatprep.subr.bf16.mxu0 0
    %1017 = vmatpush1.bf16.msra.mxu0 0
    %1018 = vmatprep.mubr.bf16.mxu0 0
    %1019 = vmatmul.mubr.bf16.gmra.mrb[0].mxu0 %v945
    %v1020 = vpop.f32.mrb[0].mxu0
    %v1021 = vadd.f32 %v981, %v1020
    %v1022 = vpop.f32.mrb[0].mxu0
    %v1023 = vpop.f32.mrb[0].mxu0
    %v1024 = vpop.f32.mrb[0].mxu0
    %1025 = vdwg.mxu0
    %v1026 = vmul.f32 %v268, %v618
    %v1027 = vpack.c.bf16 %v1026, %v1026
    %v1028 = vmul.f32 %v452, %v618
    %v1029 = vpack.c.bf16 %v1028, %v1028
    %v1030 = vmul.f32 %v616, %v618
    %v1031 = vpack.c.bf16 %v1030, %v1030
    %1032 = vmatprep.subr.bf16.mxu0 0
    %1033 = vmatpush1.bf16.msra.mxu0 %v812
    %1034 = vmatprep.subr.bf16.mxu0 0
    %1035 = vmatpush1.bf16.msra.mxu0 %v813
    %1036 = vmatprep.subr.bf16.mxu0 0
    %1037 = vmatpush1.bf16.msra.mxu0 %v814
    %1038 = vmatprep.subr.bf16.mxu0 0
    %1039 = vmatpush1.bf16.msra.mxu0 %v815
    %1040 = vmatprep.subr.bf16.mxu0 0
    %1041 = vmatpush1.bf16.msra.mxu0 %v816
    %1042 = vmatprep.subr.bf16.mxu0 0
    %1043 = vmatpush1.bf16.msra.mxu0 %v817
    %1044 = vmatprep.subr.bf16.mxu0 0
    %1045 = vmatpush1.bf16.msra.mxu0 %v818
    %1046 = vmatprep.subr.bf16.mxu0 0
    %1047 = vmatpush1.bf16.msra.mxu0 %v819
    %1048 = vmatprep.subr.bf16.mxu0 0
    %1049 = vmatpush1.bf16.msra.mxu0 %v820
    %1050 = vmatprep.subr.bf16.mxu0 0
    %1051 = vmatpush1.bf16.msra.mxu0 %v821
    %1052 = vmatprep.subr.bf16.mxu0 0
    %1053 = vmatpush1.bf16.msra.mxu0 %v822
    %1054 = vmatprep.subr.bf16.mxu0 0
    %1055 = vmatpush1.bf16.msra.mxu0 %v823
    %1056 = vmatprep.subr.bf16.mxu0 0
    %1057 = vmatpush1.bf16.msra.mxu0 %v824
    %1058 = vmatprep.subr.bf16.mxu0 0
    %1059 = vmatpush1.bf16.msra.mxu0 %v825
    %1060 = vmatprep.subr.bf16.mxu0 0
    %1061 = vmatpush1.bf16.msra.mxu0 %v826
    %1062 = vmatprep.subr.bf16.mxu0 0
    %1063 = vmatpush1.bf16.msra.mxu0 %v827
    %1064 = vmatprep.mubr.bf16.mxu0 %v1029
    %1065 = vmatmul.mubr.bf16.gmra.mrb[0].mxu0 %v1027
    %v1066 = vpop.f32.mrb[0].mxu0
    %v1067 = vadd.f32 0.0, %v1066
    %v1068 = vpop.f32.mrb[0].mxu0
    %v1069 = vpop.f32.mrb[0].mxu0
    %v1070 = vpop.f32.mrb[0].mxu0
    %1071 = vdwg.mxu0
    %1072 = vmatprep.subr.bf16.mxu0 0
    %1073 = vmatpush1.bf16.msra.mxu0 %v828
    %1074 = vmatprep.subr.bf16.mxu0 0
    %1075 = vmatpush1.bf16.msra.mxu0 %v829
    %1076 = vmatprep.subr.bf16.mxu0 0
    %1077 = vmatpush1.bf16.msra.mxu0 %v830
    %1078 = vmatprep.subr.bf16.mxu0 0
    %1079 = vmatpush1.bf16.msra.mxu0 %v831
    %1080 = vmatprep.subr.bf16.mxu0 0
    %1081 = vmatpush1.bf16.msra.mxu0 %v832
    %1082 = vmatprep.subr.bf16.mxu0 0
    %1083 = vmatpush1.bf16.msra.mxu0 %v833
    %1084 = vmatprep.subr.bf16.mxu0 0
    %1085 = vmatpush1.bf16.msra.mxu0 %v834
    %1086 = vmatprep.subr.bf16.mxu0 0
    %1087 = vmatpush1.bf16.msra.mxu0 %v835
    %1088 = vmatprep.subr.bf16.mxu0 0
    %1089 = vmatpush1.bf16.msra.mxu0 0
    %1090 = vmatprep.subr.bf16.mxu0 0
    %1091 = vmatpush1.bf16.msra.mxu0 0
    %1092 = vmatprep.subr.bf16.mxu0 0
    %1093 = vmatpush1.bf16.msra.mxu0 0
    %1094 = vmatprep.subr.bf16.mxu0 0
    %1095 = vmatpush1.bf16.msra.mxu0 0
    %1096 = vmatprep.subr.bf16.mxu0 0
    %1097 = vmatpush1.bf16.msra.mxu0 0
    %1098 = vmatprep.subr.bf16.mxu0 0
    %1099 = vmatpush1.bf16.msra.mxu0 0
    %1100 = vmatprep.subr.bf16.mxu0 0
    %1101 = vmatpush1.bf16.msra.mxu0 0
    %1102 = vmatprep.subr.bf16.mxu0 0
    %1103 = vmatpush1.bf16.msra.mxu0 0
    %1104 = vmatprep.mubr.bf16.mxu0 0
    %1105 = vmatmul.mubr.bf16.gmra.mrb[0].mxu0 %v1031
    %v1106 = vpop.f32.mrb[0].mxu0
    %v1107 = vadd.f32 %v1067, %v1106
    %v1108 = vpop.f32.mrb[0].mxu0
    %v1109 = vpop.f32.mrb[0].mxu0
    %v1110 = vpop.f32.mrb[0].mxu0
    %1111 = vdwg.mxu0
    %v1112 = vmax.f32 %v935, %v1021
    %v1113 = vmax.f32 %v1112, %v1107
    %v1114 = vsub.f32 %v935, %v1113
    %v1115 = vmul.f32 %v1114, 1.442695
    %v1116 = vpow.pop %v1115
    %v1117 = vsub.f32 %v1021, %v1113
    %v1118 = vmul.f32 %v1117, 1.442695
    %v1119 = vpow.pop %v1118
    %v1120 = vsub.f32 %v1107, %v1113
    %v1121 = vmul.f32 %v1120, 1.442695
    %v1122 = vpow.pop %v1121
    %v1123 = vadd.f32 %v1116, %v1119
    %v1124 = vadd.f32 %v1123, %v1122
    %v1125 = vrcp.pop %v1124
    %v1126 = vmul.f32 %v1116, %v1125
    %v1127 = vmul.f32 %v1119, %v1125
    %v1128 = vmul.f32 %v1122, %v1125
    %1130 = vrot.lane.b32.xlu0 %v1127, 24
    %v1131 = vpop.permute.xlu0 %1130
    %1134 = vrot.lane.b32.xlu0 %v1128, 48
    %v1135 = vpop.permute.xlu0 %1134
    %vm1137 = vcmask 195584
    %v1138 = vsel %vm1137, %v1126, %v1131
    %v1139 = vsel %vm577, %v1138, %v1135
    %v1140 = vpack.c.bf16 %v1139, %v1139
    %v1141 = vld [vmem:[%s10] sm:$0xff]
    %v1142 = vld [vmem:[%s10 + $0x8] sm:$0xf]
    %v1143 = vld [vmem:[%s10 + $0xc] sm:$0xff]
    %v1144 = vld [vmem:[%s10 + $0x14] sm:$0xf]
    %v1145 = vld [vmem:[%s10 + $0x18] sm:$0xff]
    %v1146 = vld [vmem:[%s10 + $0x20] sm:$0xf]
    %v1147 = vld [vmem:[%s10 + $0x24] sm:$0xff]
    %v1148 = vld [vmem:[%s10 + $0x2c] sm:$0xf]
    %v1149 = vld [vmem:[%s10 + $0x30] sm:$0xff]
    %v1150 = vld [vmem:[%s10 + $0x38] sm:$0xf]
    %v1151 = vld [vmem:[%s10 + $0x3c] sm:$0xff]
    %v1152 = vld [vmem:[%s10 + $0x44] sm:$0xf]
    %v1153 = vld [vmem:[%s10 + $0x48] sm:$0xff]
    %v1154 = vld [vmem:[%s10 + $0x50] sm:$0xf]
    %v1155 = vld [vmem:[%s10 + $0x54] sm:$0xff]
    %v1156 = vld [vmem:[%s10 + $0x5c] sm:$0xf]
    %v1157 = vld [vmem:[%s10 + $0x60] sm:$0xff]
    %v1158 = vld [vmem:[%s10 + $0x68] sm:$0xf]
    %v1159 = vld [vmem:[#allocation14] sm:$0xff]
    %v1160 = vld [vmem:[#allocation14 + $0x8] sm:$0xf]
    %v1161 = vld [vmem:[#allocation14 + $0xc] sm:$0xff]
    %v1162 = vld [vmem:[#allocation14 + $0x14] sm:$0xf]
    %v1163 = vld [vmem:[#allocation14 + $0x18] sm:$0xff]
    %v1164 = vld [vmem:[#allocation14 + $0x20] sm:$0xf]
    %v1165 = vld [vmem:[#allocation14 + $0x24] sm:$0xff]
    %v1166 = vld [vmem:[#allocation14 + $0x2c] sm:$0xf]
    %v1167 = vld [vmem:[#allocation14 + $0x30] sm:$0xff]
    %v1168 = vld [vmem:[#allocation14 + $0x38] sm:$0xf]
    %v1169 = vld [vmem:[#allocation14 + $0x3c] sm:$0xff]
    %v1170 = vld [vmem:[#allocation14 + $0x44] sm:$0xf]
    %v1171 = vld [vmem:[#allocation14 + $0x48] sm:$0xff]
    %v1172 = vld [vmem:[#allocation14 + $0x50] sm:$0xf]
    %v1173 = vld [vmem:[#allocation14 + $0x54] sm:$0xff]
    %v1174 = vld [vmem:[#allocation14 + $0x5c] sm:$0xf]
    %v1175 = vld [vmem:[#allocation14 + $0x60] sm:$0xff]
    %v1176 = vld [vmem:[#allocation14 + $0x68] sm:$0xf]
    %v1177 = vld [vmem:[#allocation16] sm:$0xff]
    %v1178 = vld [vmem:[#allocation16 + $0x8] sm:$0xf]
    %v1179 = vld [vmem:[#allocation16 + $0xc] sm:$0xff]
    %v1180 = vld [vmem:[#allocation16 + $0x14] sm:$0xf]
    %v1181 = vld [vmem:[#allocation16 + $0x18] sm:$0xff]
    %v1182 = vld [vmem:[#allocation16 + $0x20] sm:$0xf]
    %v1183 = vld [vmem:[#allocation16 + $0x24] sm:$0xff]
    %v1184 = vld [vmem:[#allocation16 + $0x2c] sm:$0xf]
    %v1185 = vld [vmem:[#allocation16 + $0x30] sm:$0xff]
    %v1186 = vld [vmem:[#allocation16 + $0x38] sm:$0xf]
    %v1187 = vld [vmem:[#allocation16 + $0x3c] sm:$0xff]
    %v1188 = vld [vmem:[#allocation16 + $0x44] sm:$0xf]
    %v1189 = vld [vmem:[#allocation16 + $0x48] sm:$0xff]
    %v1190 = vld [vmem:[#allocation16 + $0x50] sm:$0xf]
    %v1191 = vld [vmem:[#allocation16 + $0x54] sm:$0xff]
    %v1192 = vld [vmem:[#allocation16 + $0x5c] sm:$0xf]
    %v1193 = vld [vmem:[#allocation16 + $0x60] sm:$0xff]
    %v1194 = vld [vmem:[#allocation16 + $0x68] sm:$0xf]
    %v1213 = vunpack.c.l.b16 %v1141
    %v1214 = vunpack.c.h.b16 %v1141
    %v1215 = vunpack.c.l.b16 %v1142
    %v1216 = vunpack.c.l.b16 %v1143
    %v1217 = vunpack.c.h.b16 %v1143
    %v1218 = vunpack.c.l.b16 %v1144
    %v1219 = vunpack.c.l.b16 %v1145
    %v1220 = vunpack.c.h.b16 %v1145
    %v1221 = vunpack.c.l.b16 %v1146
    %v1222 = vunpack.c.l.b16 %v1147
    %v1223 = vunpack.c.h.b16 %v1147
    %v1224 = vunpack.c.l.b16 %v1148
    %v1225 = vunpack.c.l.b16 %v1149
    %v1226 = vunpack.c.h.b16 %v1149
    %v1227 = vunpack.c.l.b16 %v1150
    %v1228 = vunpack.c.l.b16 %v1151
    %v1229 = vunpack.c.h.b16 %v1151
    %v1230 = vunpack.c.l.b16 %v1152
    %v1231 = vunpack.c.l.b16 %v1153
    %v1232 = vunpack.c.h.b16 %v1153
    %v1233 = vunpack.c.l.b16 %v1154
    %v1234 = vunpack.c.l.b16 %v1155
    %v1235 = vunpack.c.h.b16 %v1155
    %v1236 = vunpack.c.l.b16 %v1156
    %v1237 = vunpack.c.l.b16 %v1157
    %v1238 = vunpack.c.h.b16 %v1157
    %v1239 = vunpack.c.l.b16 %v1158
    %v1240 = vpack.c.b16 %v1216, %v1213
    %v1241 = vpack.c.b16 %v1217, %v1214
    %v1242 = vpack.c.b16 %v1218, %v1215
    %v1243 = vpack.c.b16 %v1222, %v1219
    %v1244 = vpack.c.b16 %v1223, %v1220
    %v1245 = vpack.c.b16 %v1224, %v1221
    %v1246 = vpack.c.b16 %v1228, %v1225
    %v1247 = vpack.c.b16 %v1229, %v1226
    %v1248 = vpack.c.b16 %v1230, %v1227
    %v1249 = vpack.c.b16 %v1234, %v1231
    %v1250 = vpack.c.b16 %v1235, %v1232
    %v1251 = vpack.c.b16 %v1236, %v1233
    %v1252 = vpack.c.b16 %v1237, %v1237
    %v1253 = vpack.c.b16 %v1238, %v1238
    %v1254 = vpack.c.b16 %v1239, %v1239
    %vm1267 = vcmask 588800
    %v1269 = vsel %vm1267, %v1140, 0
    %vm1271 = vcmask 1043456
    %v1273 = vsel %vm1271, %v1252, 0
    %v1276 = vsel %vm1271, %v1253, 0
    %v1279 = vsel %vm1271, %v1254, 0
    %1281 = vmatprep.subr.bf16.mxu0 %v1241
    %1282 = vmatpush1.bf16.msra.mxu0 %v1240
    %1283 = vmatprep.subr.bf16.mxu0 %v1244
    %1284 = vmatpush1.bf16.msra.mxu0 %v1243
    %1285 = vmatprep.subr.bf16.mxu0 %v1247
    %1286 = vmatpush1.bf16.msra.mxu0 %v1246
    %1287 = vmatprep.subr.bf16.mxu0 %v1250
    %1288 = vmatpush1.bf16.msra.mxu0 %v1249
    %1289 = vmatprep.subr.bf16.mxu0 %v1276
    %1290 = vmatpush1.bf16.msra.mxu0 %v1273
    %1291 = vmatprep.subr.bf16.mxu0 0
    %1292 = vmatpush1.bf16.msra.mxu0 0
    %1293 = vmatprep.subr.bf16.mxu0 0
    %1294 = vmatpush1.bf16.msra.mxu0 0
    %1295 = vmatprep.subr.bf16.mxu0 0
    %1296 = vmatpush1.bf16.msra.mxu0 0
    %1297 = vmatprep.subr.bf16.mxu0 0
    %1298 = vmatpush1.bf16.msra.mxu0 0
    %1299 = vmatprep.subr.bf16.mxu0 0
    %1300 = vmatpush1.bf16.msra.mxu0 0
    %1301 = vmatprep.subr.bf16.mxu0 0
    %1302 = vmatpush1.bf16.msra.mxu0 0
    %1303 = vmatprep.subr.bf16.mxu0 0
    %1304 = vmatpush1.bf16.msra.mxu0 0
    %1305 = vmatprep.subr.bf16.mxu0 0
    %1306 = vmatpush1.bf16.msra.mxu0 0
    %1307 = vmatprep.subr.bf16.mxu0 0
    %1308 = vmatpush1.bf16.msra.mxu0 0
    %1309 = vmatprep.subr.bf16.mxu0 0
    %1310 = vmatpush1.bf16.msra.mxu0 0
    %1311 = vmatprep.subr.bf16.mxu0 0
    %1312 = vmatpush1.bf16.msra.mxu0 0
    %1313 = vmatprep.mubr.bf16.mxu0 0
    %1314 = vmatmul.mubr.bf16.gmra.mrb[0].mxu0 %v1269
    %v1315 = vpop.f32.mrb[0].mxu0
    %v1316 = vadd.f32 0.0, %v1315
    %v1317 = vpop.f32.mrb[0].mxu0
    %v1318 = vadd.f32 0.0, %v1317
    %v1319 = vpop.f32.mrb[0].mxu0
    %v1320 = vpop.f32.mrb[0].mxu0
    %1321 = vdwg.mxu0
    %1322 = vmatprep.subr.bf16.mxu0 0
    %1323 = vmatpush1.bf16.msra.mxu0 %v1242
    %1324 = vmatprep.subr.bf16.mxu0 0
    %1325 = vmatpush1.bf16.msra.mxu0 %v1245
    %1326 = vmatprep.subr.bf16.mxu0 0
    %1327 = vmatpush1.bf16.msra.mxu0 %v1248
    %1328 = vmatprep.subr.bf16.mxu0 0
    %1329 = vmatpush1.bf16.msra.mxu0 %v1251
    %1330 = vmatprep.subr.bf16.mxu0 0
    %1331 = vmatpush1.bf16.msra.mxu0 %v1279
    %1332 = vmatprep.subr.bf16.mxu0 0
    %1333 = vmatpush1.bf16.msra.mxu0 0
    %1334 = vmatprep.subr.bf16.mxu0 0
    %1335 = vmatpush1.bf16.msra.mxu0 0
    %1336 = vmatprep.subr.bf16.mxu0 0
    %1337 = vmatpush1.bf16.msra.mxu0 0
    %1338 = vmatprep.subr.bf16.mxu0 0
    %1339 = vmatpush1.bf16.msra.mxu0 0
    %1340 = vmatprep.subr.bf16.mxu0 0
    %1341 = vmatpush1.bf16.msra.mxu0 0
    %1342 = vmatprep.subr.bf16.mxu0 0
    %1343 = vmatpush1.bf16.msra.mxu0 0
    %1344 = vmatprep.subr.bf16.mxu0 0
    %1345 = vmatpush1.bf16.msra.mxu0 0
    %1346 = vmatprep.subr.bf16.mxu0 0
    %1347 = vmatpush1.bf16.msra.mxu0 0
    %1348 = vmatprep.subr.bf16.mxu0 0
    %1349 = vmatpush1.bf16.msra.mxu0 0
    %1350 = vmatprep.subr.bf16.mxu0 0
    %1351 = vmatpush1.bf16.msra.mxu0 0
    %1352 = vmatprep.subr.bf16.mxu0 0
    %1353 = vmatpush1.bf16.msra.mxu0 0
    %1354 = vmatprep.mubr.bf16.mxu0 0
    %1355 = vmatmul.mubr.bf16.gmra.mrb[0].mxu0 %v1269
    %v1356 = vpop.f32.mrb[0].mxu0
    %v1357 = vadd.f32 0.0, %v1356
    %v1358 = vpop.f32.mrb[0].mxu0
    %v1359 = vpop.f32.mrb[0].mxu0
    %v1360 = vpop.f32.mrb[0].mxu0
    %1361 = vdwg.mxu0
    %v1362 = vmul.f32 %v1316, %v309
    %v1363 = vmul.f32 %v1318, %v493
    %v1364 = vmul.f32 %v1357, %v657
    %v1365 = vadd.f32 %v1362, %v1363
    %v1366 = vadd.f32 %v1365, %v1364
    %v1367 = vpack.c.bf16 %v1366, %v1366
    %v1386 = vunpack.c.l.b16 %v1159
    %v1387 = vunpack.c.h.b16 %v1159
    %v1388 = vunpack.c.l.b16 %v1160
    %v1389 = vunpack.c.l.b16 %v1161
    %v1390 = vunpack.c.h.b16 %v1161
    %v1391 = vunpack.c.l.b16 %v1162
    %v1392 = vunpack.c.l.b16 %v1163
    %v1393 = vunpack.c.h.b16 %v1163
    %v1394 = vunpack.c.l.b16 %v1164
    %v1395 = vunpack.c.l.b16 %v1165
    %v1396 = vunpack.c.h.b16 %v1165
    %v1397 = vunpack.c.l.b16 %v1166
    %v1398 = vunpack.c.l.b16 %v1167
    %v1399 = vunpack.c.h.b16 %v1167
    %v1400 = vunpack.c.l.b16 %v1168
    %v1401 = vunpack.c.l.b16 %v1169
    %v1402 = vunpack.c.h.b16 %v1169
    %v1403 = vunpack.c.l.b16 %v1170
    %v1404 = vunpack.c.l.b16 %v1171
    %v1405 = vunpack.c.h.b16 %v1171
    %v1406 = vunpack.c.l.b16 %v1172
    %v1407 = vunpack.c.l.b16 %v1173
    %v1408 = vunpack.c.h.b16 %v1173
    %v1409 = vunpack.c.l.b16 %v1174
    %v1410 = vunpack.c.l.b16 %v1175
    %v1411 = vunpack.c.h.b16 %v1175
    %v1412 = vunpack.c.l.b16 %v1176
    %v1413 = vpack.c.b16 %v1389, %v1386
    %v1414 = vpack.c.b16 %v1390, %v1387
    %v1415 = vpack.c.b16 %v1391, %v1388
    %v1416 = vpack.c.b16 %v1395, %v1392
    %v1417 = vpack.c.b16 %v1396, %v1393
    %v1418 = vpack.c.b16 %v1397, %v1394
    %v1419 = vpack.c.b16 %v1401, %v1398
    %v1420 = vpack.c.b16 %v1402, %v1399
    %v1421 = vpack.c.b16 %v1403, %v1400
    %v1422 = vpack.c.b16 %v1407, %v1404
    %v1423 = vpack.c.b16 %v1408, %v1405
    %v1424 = vpack.c.b16 %v1409, %v1406
    %v1425 = vpack.c.b16 %v1410, %v1410
    %v1426 = vpack.c.b16 %v1411, %v1411
    %v1427 = vpack.c.b16 %v1412, %v1412
    %v1441 = vsel %vm1271, %v1425, 0
    %v1444 = vsel %vm1271, %v1426, 0
    %v1447 = vsel %vm1271, %v1427, 0
    %1449 = vmatprep.subr.bf16.mxu0 %v1414
    %1450 = vmatpush1.bf16.msra.mxu0 %v1413
    %1451 = vmatprep.subr.bf16.mxu0 %v1417
    %1452 = vmatpush1.bf16.msra.mxu0 %v1416
    %1453 = vmatprep.subr.bf16.mxu0 %v1420
    %1454 = vmatpush1.bf16.msra.mxu0 %v1419
    %1455 = vmatprep.subr.bf16.mxu0 %v1423
    %1456 = vmatpush1.bf16.msra.mxu0 %v1422
    %1457 = vmatprep.subr.bf16.mxu0 %v1444
    %1458 = vmatpush1.bf16.msra.mxu0 %v1441
    %1459 = vmatprep.subr.bf16.mxu0 0
    %1460 = vmatpush1.bf16.msra.mxu0 0
    %1461 = vmatprep.subr.bf16.mxu0 0
    %1462 = vmatpush1.bf16.msra.mxu0 0
    %1463 = vmatprep.subr.bf16.mxu0 0
    %1464 = vmatpush1.bf16.msra.mxu0 0
    %1465 = vmatprep.subr.bf16.mxu0 0
    %1466 = vmatpush1.bf16.msra.mxu0 0
    %1467 = vmatprep.subr.bf16.mxu0 0
    %1468 = vmatpush1.bf16.msra.mxu0 0
    %1469 = vmatprep.subr.bf16.mxu0 0
    %1470 = vmatpush1.bf16.msra.mxu0 0
    %1471 = vmatprep.subr.bf16.mxu0 0
    %1472 = vmatpush1.bf16.msra.mxu0 0
    %1473 = vmatprep.subr.bf16.mxu0 0
    %1474 = vmatpush1.bf16.msra.mxu0 0
    %1475 = vmatprep.subr.bf16.mxu0 0
    %1476 = vmatpush1.bf16.msra.mxu0 0
    %1477 = vmatprep.subr.bf16.mxu0 0
    %1478 = vmatpush1.bf16.msra.mxu0 0
    %1479 = vmatprep.subr.bf16.mxu0 0
    %1480 = vmatpush1.bf16.msra.mxu0 0
    %1481 = vmatprep.mubr.bf16.mxu0 0
    %1482 = vmatmul.mubr.bf16.gmra.mrb[0].mxu0 %v1269
    %v1483 = vpop.f32.mrb[0].mxu0
    %v1484 = vadd.f32 0.0, %v1483
    %v1485 = vpop.f32.mrb[0].mxu0
    %v1486 = vadd.f32 0.0, %v1485
    %v1487 = vpop.f32.mrb[0].mxu0
    %v1488 = vpop.f32.mrb[0].mxu0
    %1489 = vdwg.mxu0
    %1490 = vmatprep.subr.bf16.mxu0 0
    %1491 = vmatpush1.bf16.msra.mxu0 %v1415
    %1492 = vmatprep.subr.bf16.mxu0 0
    %1493 = vmatpush1.bf16.msra.mxu0 %v1418
    %1494 = vmatprep.subr.bf16.mxu0 0
    %1495 = vmatpush1.bf16.msra.mxu0 %v1421
    %1496 = vmatprep.subr.bf16.mxu0 0
    %1497 = vmatpush1.bf16.msra.mxu0 %v1424
    %1498 = vmatprep.subr.bf16.mxu0 0
    %1499 = vmatpush1.bf16.msra.mxu0 %v1447
    %1500 = vmatprep.subr.bf16.mxu0 0
    %1501 = vmatpush1.bf16.msra.mxu0 0
    %1502 = vmatprep.subr.bf16.mxu0 0
    %1503 = vmatpush1.bf16.msra.mxu0 0
    %1504 = vmatprep.subr.bf16.mxu0 0
    %1505 = vmatpush1.bf16.msra.mxu0 0
    %1506 = vmatprep.subr.bf16.mxu0 0
    %1507 = vmatpush1.bf16.msra.mxu0 0
    %1508 = vmatprep.subr.bf16.mxu0 0
    %1509 = vmatpush1.bf16.msra.mxu0 0
    %1510 = vmatprep.subr.bf16.mxu0 0
    %1511 = vmatpush1.bf16.msra.mxu0 0
    %1512 = vmatprep.subr.bf16.mxu0 0
    %1513 = vmatpush1.bf16.msra.mxu0 0
    %1514 = vmatprep.subr.bf16.mxu0 0
    %1515 = vmatpush1.bf16.msra.mxu0 0
    %1516 = vmatprep.subr.bf16.mxu0 0
    %1517 = vmatpush1.bf16.msra.mxu0 0
    %1518 = vmatprep.subr.bf16.mxu0 0
    %1519 = vmatpush1.bf16.msra.mxu0 0
    %1520 = vmatprep.subr.bf16.mxu0 0
    %1521 = vmatpush1.bf16.msra.mxu0 0
    %1522 = vmatprep.mubr.bf16.mxu0 0
    %1523 = vmatmul.mubr.bf16.gmra.mrb[0].mxu0 %v1269
    %v1524 = vpop.f32.mrb[0].mxu0
    %v1525 = vadd.f32 0.0, %v1524
    %v1526 = vpop.f32.mrb[0].mxu0
    %v1527 = vpop.f32.mrb[0].mxu0
    %v1528 = vpop.f32.mrb[0].mxu0
    %1529 = vdwg.mxu0
    %v1530 = vmul.f32 %v1484, %v309
    %v1531 = vmul.f32 %v1486, %v493
    %v1532 = vmul.f32 %v1525, %v657
    %v1533 = vadd.f32 %v1530, %v1531
    %v1534 = vadd.f32 %v1533, %v1532
    %v1535 = vpack.c.bf16 %v1534, %v1534
    %v1554 = vunpack.c.l.b16 %v1177
    %v1555 = vunpack.c.h.b16 %v1177
    %v1556 = vunpack.c.l.b16 %v1178
    %v1557 = vunpack.c.l.b16 %v1179
    %v1558 = vunpack.c.h.b16 %v1179
    %v1559 = vunpack.c.l.b16 %v1180
    %v1560 = vunpack.c.l.b16 %v1181
    %v1561 = vunpack.c.h.b16 %v1181
    %v1562 = vunpack.c.l.b16 %v1182
    %v1563 = vunpack.c.l.b16 %v1183
    %v1564 = vunpack.c.h.b16 %v1183
    %v1565 = vunpack.c.l.b16 %v1184
    %v1566 = vunpack.c.l.b16 %v1185
    %v1567 = vunpack.c.h.b16 %v1185
    %v1568 = vunpack.c.l.b16 %v1186
    %v1569 = vunpack.c.l.b16 %v1187
    %v1570 = vunpack.c.h.b16 %v1187
    %v1571 = vunpack.c.l.b16 %v1188
    %v1572 = vunpack.c.l.b16 %v1189
    %v1573 = vunpack.c.h.b16 %v1189
    %v1574 = vunpack.c.l.b16 %v1190
    %v1575 = vunpack.c.l.b16 %v1191
    %v1576 = vunpack.c.h.b16 %v1191
    %v1577 = vunpack.c.l.b16 %v1192
    %v1578 = vunpack.c.l.b16 %v1193
    %v1579 = vunpack.c.h.b16 %v1193
    %v1580 = vunpack.c.l.b16 %v1194
    %v1581 = vpack.c.b16 %v1557, %v1554
    %v1582 = vpack.c.b16 %v1558, %v1555
    %v1583 = vpack.c.b16 %v1559, %v1556
    %v1584 = vpack.c.b16 %v1563, %v1560
    %v1585 = vpack.c.b16 %v1564, %v1561
    %v1586 = vpack.c.b16 %v1565, %v1562
    %v1587 = vpack.c.b16 %v1569, %v1566
    %v1588 = vpack.c.b16 %v1570, %v1567
    %v1589 = vpack.c.b16 %v1571, %v1568
    %v1590 = vpack.c.b16 %v1575, %v1572
    %v1591 = vpack.c.b16 %v1576, %v1573
    %v1592 = vpack.c.b16 %v1577, %v1574
    %v1593 = vpack.c.b16 %v1578, %v1578
    %v1594 = vpack.c.b16 %v1579, %v1579
    %v1595 = vpack.c.b16 %v1580, %v1580
    %v1609 = vsel %vm1271, %v1593, 0
    %v1612 = vsel %vm1271, %v1594, 0
    %v1615 = vsel %vm1271, %v1595, 0
    %1617 = vmatprep.subr.bf16.mxu0 %v1582
    %1618 = vmatpush1.bf16.msra.mxu0 %v1581
    %1619 = vmatprep.subr.bf16.mxu0 %v1585
    %1620 = vmatpush1.bf16.msra.mxu0 %v1584
    %1621 = vmatprep.subr.bf16.mxu0 %v1588
    %1622 = vmatpush1.bf16.msra.mxu0 %v1587
    %1623 = vmatprep.subr.bf16.mxu0 %v1591
    %1624 = vmatpush1.bf16.msra.mxu0 %v1590
    %1625 = vmatprep.subr.bf16.mxu0 %v1612
    %1626 = vmatpush1.bf16.msra.mxu0 %v1609
    %1627 = vmatprep.subr.bf16.mxu0 0
    %1628 = vmatpush1.bf16.msra.mxu0 0
    %1629 = vmatprep.subr.bf16.mxu0 0
    %1630 = vmatpush1.bf16.msra.mxu0 0
    %1631 = vmatprep.subr.bf16.mxu0 0
    %1632 = vmatpush1.bf16.msra.mxu0 0
    %1633 = vmatprep.subr.bf16.mxu0 0
    %1634 = vmatpush1.bf16.msra.mxu0 0
    %1635 = vmatprep.subr.bf16.mxu0 0
    %1636 = vmatpush1.bf16.msra.mxu0 0
    %1637 = vmatprep.subr.bf16.mxu0 0
    %1638 = vmatpush1.bf16.msra.mxu0 0
    %1639 = vmatprep.subr.bf16.mxu0 0
    %1640 = vmatpush1.bf16.msra.mxu0 0
    %1641 = vmatprep.subr.bf16.mxu0 0
    %1642 = vmatpush1.bf16.msra.mxu0 0
    %1643 = vmatprep.subr.bf16.mxu0 0
    %1644 = vmatpush1.bf16.msra.mxu0 0
    %1645 = vmatprep.subr.bf16.mxu0 0
    %1646 = vmatpush1.bf16.msra.mxu0 0
    %1647 = vmatprep.subr.bf16.mxu0 0
    %1648 = vmatpush1.bf16.msra.mxu0 0
    %1649 = vmatprep.mubr.bf16.mxu0 0
    %1650 = vmatmul.mubr.bf16.gmra.mrb[0].mxu0 %v1269
    %v1651 = vpop.f32.mrb[0].mxu0
    %v1652 = vadd.f32 0.0, %v1651
    %v1653 = vpop.f32.mrb[0].mxu0
    %v1654 = vadd.f32 0.0, %v1653
    %v1655 = vpop.f32.mrb[0].mxu0
    %v1656 = vpop.f32.mrb[0].mxu0
    %1657 = vdwg.mxu0
    %1658 = vmatprep.subr.bf16.mxu0 0
    %1659 = vmatpush1.bf16.msra.mxu0 %v1583
    %1660 = vmatprep.subr.bf16.mxu0 0
    %1661 = vmatpush1.bf16.msra.mxu0 %v1586
    %1662 = vmatprep.subr.bf16.mxu0 0
    %1663 = vmatpush1.bf16.msra.mxu0 %v1589
    %1664 = vmatprep.subr.bf16.mxu0 0
    %1665 = vmatpush1.bf16.msra.mxu0 %v1592
    %1666 = vmatprep.subr.bf16.mxu0 0
    %1667 = vmatpush1.bf16.msra.mxu0 %v1615
    %1668 = vmatprep.subr.bf16.mxu0 0
    %1669 = vmatpush1.bf16.msra.mxu0 0
    %1670 = vmatprep.subr.bf16.mxu0 0
    %1671 = vmatpush1.bf16.msra.mxu0 0
    %1672 = vmatprep.subr.bf16.mxu0 0
    %1673 = vmatpush1.bf16.msra.mxu0 0
    %1674 = vmatprep.subr.bf16.mxu0 0
    %1675 = vmatpush1.bf16.msra.mxu0 0
    %1676 = vmatprep.subr.bf16.mxu0 0
    %1677 = vmatpush1.bf16.msra.mxu0 0
    %1678 = vmatprep.subr.bf16.mxu0 0
    %1679 = vmatpush1.bf16.msra.mxu0 0
    %1680 = vmatprep.subr.bf16.mxu0 0
    %1681 = vmatpush1.bf16.msra.mxu0 0
    %1682 = vmatprep.subr.bf16.mxu0 0
    %1683 = vmatpush1.bf16.msra.mxu0 0
    %1684 = vmatprep.subr.bf16.mxu0 0
    %1685 = vmatpush1.bf16.msra.mxu0 0
    %1686 = vmatprep.subr.bf16.mxu0 0
    %1687 = vmatpush1.bf16.msra.mxu0 0
    %1688 = vmatprep.subr.bf16.mxu0 0
    %1689 = vmatpush1.bf16.msra.mxu0 0
    %1690 = vmatprep.mubr.bf16.mxu0 0
    %1691 = vmatmul.mubr.bf16.gmra.mrb[0].mxu0 %v1269
    %v1692 = vpop.f32.mrb[0].mxu0
    %v1693 = vadd.f32 0.0, %v1692
    %v1694 = vpop.f32.mrb[0].mxu0
    %v1695 = vpop.f32.mrb[0].mxu0
    %v1696 = vpop.f32.mrb[0].mxu0
    %1697 = vdwg.mxu0
    %v1698 = vmul.f32 %v1652, %v309
    %v1699 = vmul.f32 %v1654, %v493
    %v1700 = vmul.f32 %v1693, %v657
    %v1701 = vadd.f32 %v1698, %v1699
    %v1702 = vadd.f32 %v1701, %v1700
    %v1703 = vpack.c.bf16 %v1702, %v1702
    %v1704 = vld [vmem:[%s13] sm:$0xf]
    %v1705 = vld [vmem:[%s13 + $0x4] sm:$0xf]
    %v1706 = vld [vmem:[%s13 + $0x8] sm:$0xf]
    %v1707 = vld [vmem:[%s13 + $0xc] sm:$0xf]
    %v1708 = vld [vmem:[%s13 + $0x10] sm:$0xf]
    %v1709 = vld [vmem:[%s13 + $0x14] sm:$0xf]
    %v1710 = vld [vmem:[%s13 + $0x18] sm:$0xf]
    %v1711 = vld [vmem:[%s13 + $0x1c] sm:$0xf]
    %v1712 = vld [vmem:[%s13 + $0x20] sm:$0xf]
    %v1713 = vld [vmem:[%s13 + $0x24] sm:$0xf]
    %v1714 = vld [vmem:[%s13 + $0x28] sm:$0xf]
    %v1715 = vld [vmem:[%s13 + $0x2c] sm:$0xf]
    %v1716 = vld [vmem:[%s13 + $0x30] sm:$0xf]
    %v1717 = vld [vmem:[%s13 + $0x34] sm:$0xf]
    %v1718 = vld [vmem:[%s13 + $0x38] sm:$0xf]
    %v1719 = vld [vmem:[%s13 + $0x3c] sm:$0xf]
    %v1720 = vld [vmem:[%s13 + $0x40] sm:$0xf]
    %v1721 = vld [vmem:[%s13 + $0x44] sm:$0xf]
    %v1722 = vld [vmem:[%s13 + $0x48] sm:$0xf]
    %v1723 = vld [vmem:[%s13 + $0x4c] sm:$0xf]
    %v1724 = vld [vmem:[%s13 + $0x50] sm:$0xf]
    %v1725 = vld [vmem:[%s13 + $0x54] sm:$0xf]
    %v1726 = vld [vmem:[%s13 + $0x58] sm:$0xf]
    %v1727 = vld [vmem:[%s13 + $0x5c] sm:$0xf]
    %v1728 = vld [vmem:[%s13 + $0x60] sm:$0xf]
    %v1729 = vld [vmem:[%s13 + $0x64] sm:$0xf]
    %v1730 = vld [vmem:[%s13 + $0x68] sm:$0xf]
    %v1731 = vld [vmem:[%s13 + $0x6c] sm:$0xf]
    %v1732 = vld [vmem:[%s13 + $0x70] sm:$0xf]
    %v1733 = vld [vmem:[%s13 + $0x74] sm:$0xf]
    %v1734 = vld [vmem:[%s13 + $0x78] sm:$0xf]
    %v1735 = vld [vmem:[%s13 + $0x7c] sm:$0xf]
    %v1736 = vld [vmem:[%s13 + $0x80] sm:$0xf]
    %v1737 = vld [vmem:[%s13 + $0x84] sm:$0xf]
    %v1738 = vld [vmem:[%s13 + $0x88] sm:$0xf]
    %v1739 = vld [vmem:[%s13 + $0x8c] sm:$0xf]
    %v1740 = vld [vmem:[%s13 + $0x90] sm:$0xf]
    %v1741 = vld [vmem:[%s13 + $0x94] sm:$0xf]
    %v1742 = vld [vmem:[%s13 + $0x98] sm:$0xf]
    %v1743 = vld [vmem:[%s13 + $0x9c] sm:$0xf]
    %v1744 = vld [vmem:[%s13 + $0xa0] sm:$0xf]
    %v1745 = vld [vmem:[%s13 + $0xa4] sm:$0xf]
    %v1746 = vld [vmem:[%s13 + $0xa8] sm:$0xf]
    %v1747 = vld [vmem:[%s13 + $0xac] sm:$0xf]
    %v1748 = vld [vmem:[%s13 + $0xb0] sm:$0xf]
    %v1749 = vld [vmem:[%s13 + $0xb4] sm:$0xf]
    %v1750 = vld [vmem:[%s13 + $0xb8] sm:$0xf]
    %v1751 = vld [vmem:[%s13 + $0xbc] sm:$0xf]
    %v1752 = vld [vmem:[%s14] sm:$0x1]
    %v1754 = vlaneseq
    %v1755 = vshrl.u32 %v1754, 7
    %v1756 = vsub.s32 0, %v1755
    %v1757 = vrot.slane %v1752, %v1756
    %v1807 = vunpack.c.l.b16 %v1704
    %v1808 = vunpack.c.l.b16 %v1705
    %v1809 = vunpack.c.l.b16 %v1706
    %v1810 = vunpack.c.l.b16 %v1707
    %v1811 = vunpack.c.l.b16 %v1708
    %v1812 = vunpack.c.l.b16 %v1709
    %v1813 = vunpack.c.l.b16 %v1710
    %v1814 = vunpack.c.l.b16 %v1711
    %v1815 = vunpack.c.l.b16 %v1712
    %v1816 = vunpack.c.l.b16 %v1713
    %v1817 = vunpack.c.l.b16 %v1714
    %v1818 = vunpack.c.l.b16 %v1715
    %v1819 = vunpack.c.l.b16 %v1716
    %v1820 = vunpack.c.l.b16 %v1717
    %v1821 = vunpack.c.l.b16 %v1718
    %v1822 = vunpack.c.l.b16 %v1719
    %v1823 = vunpack.c.l.b16 %v1720
    %v1824 = vunpack.c.l.b16 %v1721
    %v1825 = vunpack.c.l.b16 %v1722
    %v1826 = vunpack.c.l.b16 %v1723
    %v1827 = vunpack.c.l.b16 %v1724
    %v1828 = vunpack.c.l.b16 %v1725
    %v1829 = vunpack.c.l.b16 %v1726
    %v1830 = vunpack.c.l.b16 %v1727
    %v1831 = vunpack.c.l.b16 %v1728
    %v1832 = vunpack.c.l.b16 %v1729
    %v1833 = vunpack.c.l.b16 %v1730
    %v1834 = vunpack.c.l.b16 %v1731
    %v1835 = vunpack.c.l.b16 %v1732
    %v1836 = vunpack.c.l.b16 %v1733
    %v1837 = vunpack.c.l.b16 %v1734
    %v1838 = vunpack.c.l.b16 %v1735
    %v1839 = vunpack.c.l.b16 %v1736
    %v1840 = vunpack.c.l.b16 %v1737
    %v1841 = vunpack.c.l.b16 %v1738
    %v1842 = vunpack.c.l.b16 %v1739
    %v1843 = vunpack.c.l.b16 %v1740
    %v1844 = vunpack.c.l.b16 %v1741
    %v1845 = vunpack.c.l.b16 %v1742
    %v1846 = vunpack.c.l.b16 %v1743
    %v1847 = vunpack.c.l.b16 %v1744
    %v1848 = vunpack.c.l.b16 %v1745
    %v1849 = vunpack.c.l.b16 %v1746
    %v1850 = vunpack.c.l.b16 %v1747
    %v1851 = vunpack.c.l.b16 %v1748
    %v1852 = vunpack.c.l.b16 %v1749
    %v1853 = vunpack.c.l.b16 %v1750
    %v1854 = vunpack.c.l.b16 %v1751
    %v1855 = vpack.c.b16 %v1808, %v1807
    %v1856 = vpack.c.b16 %v1810, %v1809
    %v1857 = vpack.c.b16 %v1812, %v1811
    %v1858 = vpack.c.b16 %v1814, %v1813
    %v1859 = vpack.c.b16 %v1816, %v1815
    %v1860 = vpack.c.b16 %v1818, %v1817
    %v1861 = vpack.c.b16 %v1820, %v1819
    %v1862 = vpack.c.b16 %v1822, %v1821
    %v1863 = vpack.c.b16 %v1824, %v1823
    %v1864 = vpack.c.b16 %v1826, %v1825
    %v1865 = vpack.c.b16 %v1828, %v1827
    %v1866 = vpack.c.b16 %v1830, %v1829
    %v1867 = vpack.c.b16 %v1832, %v1831
    %v1868 = vpack.c.b16 %v1834, %v1833
    %v1869 = vpack.c.b16 %v1836, %v1835
    %v1870 = vpack.c.b16 %v1838, %v1837
    %v1871 = vpack.c.b16 %v1840, %v1839
    %v1872 = vpack.c.b16 %v1842, %v1841
    %v1873 = vpack.c.b16 %v1844, %v1843
    %v1874 = vpack.c.b16 %v1846, %v1845
    %v1875 = vpack.c.b16 %v1848, %v1847
    %v1876 = vpack.c.b16 %v1850, %v1849
    %v1877 = vpack.c.b16 %v1852, %v1851
    %v1878 = vpack.c.b16 %v1854, %v1853
    %1903 = vmatprep.subr.bf16.mxu0 0
    %1904 = vmatpush1.bf16.msra.mxu0 %v1855
    %1905 = vmatprep.subr.bf16.mxu0 0
    %1906 = vmatpush1.bf16.msra.mxu0 %v1856
    %1907 = vmatprep.subr.bf16.mxu0 0
    %1908 = vmatpush1.bf16.msra.mxu0 %v1857
    %1909 = vmatprep.subr.bf16.mxu0 0
    %1910 = vmatpush1.bf16.msra.mxu0 %v1858
    %1911 = vmatprep.subr.bf16.mxu0 0
    %1912 = vmatpush1.bf16.msra.mxu0 %v1859
    %1913 = vmatprep.subr.bf16.mxu0 0
    %1914 = vmatpush1.bf16.msra.mxu0 %v1860
    %1915 = vmatprep.subr.bf16.mxu0 0
    %1916 = vmatpush1.bf16.msra.mxu0 %v1861
    %1917 = vmatprep.subr.bf16.mxu0 0
    %1918 = vmatpush1.bf16.msra.mxu0 %v1862
    %1919 = vmatprep.subr.bf16.mxu0 0
    %1920 = vmatpush1.bf16.msra.mxu0 %v1863
    %1921 = vmatprep.subr.bf16.mxu0 0
    %1922 = vmatpush1.bf16.msra.mxu0 %v1864
    %1923 = vmatprep.subr.bf16.mxu0 0
    %1924 = vmatpush1.bf16.msra.mxu0 %v1865
    %1925 = vmatprep.subr.bf16.mxu0 0
    %1926 = vmatpush1.bf16.msra.mxu0 %v1866
    %1927 = vmatprep.subr.bf16.mxu0 0
    %1928 = vmatpush1.bf16.msra.mxu0 %v1867
    %1929 = vmatprep.subr.bf16.mxu0 0
    %1930 = vmatpush1.bf16.msra.mxu0 %v1868
    %1931 = vmatprep.subr.bf16.mxu0 0
    %1932 = vmatpush1.bf16.msra.mxu0 %v1869
    %1933 = vmatprep.subr.bf16.mxu0 0
    %1934 = vmatpush1.bf16.msra.mxu0 %v1870
    %1935 = vmatprep.mubr.bf16.mxu0 %v1535
    %1936 = vmatmul.mubr.bf16.gmra.mrb[0].mxu0 %v1367
    %v1937 = vpop.f32.mrb[0].mxu0
    %v1938 = vadd.f32 %v1757, %v1937
    %v1939 = vpop.f32.mrb[0].mxu0
    %v1940 = vpop.f32.mrb[0].mxu0
    %v1941 = vpop.f32.mrb[0].mxu0
    %1942 = vdwg.mxu0
    %1943 = vmatprep.subr.bf16.mxu0 0
    %1944 = vmatpush1.bf16.msra.mxu0 %v1871
    %1945 = vmatprep.subr.bf16.mxu0 0
    %1946 = vmatpush1.bf16.msra.mxu0 %v1872
    %1947 = vmatprep.subr.bf16.mxu0 0
    %1948 = vmatpush1.bf16.msra.mxu0 %v1873
    %1949 = vmatprep.subr.bf16.mxu0 0
    %1950 = vmatpush1.bf16.msra.mxu0 %v1874
    %1951 = vmatprep.subr.bf16.mxu0 0
    %1952 = vmatpush1.bf16.msra.mxu0 %v1875
    %1953 = vmatprep.subr.bf16.mxu0 0
    %1954 = vmatpush1.bf16.msra.mxu0 %v1876
    %1955 = vmatprep.subr.bf16.mxu0 0
    %1956 = vmatpush1.bf16.msra.mxu0 %v1877
    %1957 = vmatprep.subr.bf16.mxu0 0
    %1958 = vmatpush1.bf16.msra.mxu0 %v1878
    %1959 = vmatprep.subr.bf16.mxu0 0
    %1960 = vmatpush1.bf16.msra.mxu0 0
    %1961 = vmatprep.subr.bf16.mxu0 0
    %1962 = vmatpush1.bf16.msra.mxu0 0
    %1963 = vmatprep.subr.bf16.mxu0 0
    %1964 = vmatpush1.bf16.msra.mxu0 0
    %1965 = vmatprep.subr.bf16.mxu0 0
    %1966 = vmatpush1.bf16.msra.mxu0 0
    %1967 = vmatprep.subr.bf16.mxu0 0
    %1968 = vmatpush1.bf16.msra.mxu0 0
    %1969 = vmatprep.subr.bf16.mxu0 0
    %1970 = vmatpush1.bf16.msra.mxu0 0
    %1971 = vmatprep.subr.bf16.mxu0 0
    %1972 = vmatpush1.bf16.msra.mxu0 0
    %1973 = vmatprep.subr.bf16.mxu0 0
    %1974 = vmatpush1.bf16.msra.mxu0 0
    %1975 = vmatprep.mubr.bf16.mxu0 0
    %1976 = vmatmul.mubr.bf16.gmra.mrb[0].mxu0 %v1703
    %v1977 = vpop.f32.mrb[0].mxu0
    %v1978 = vadd.f32 %v1938, %v1977
    %v1979 = vpop.f32.mrb[0].mxu0
    %v1980 = vpop.f32.mrb[0].mxu0
    %v1981 = vpop.f32.mrb[0].mxu0
    %1982 = vdwg.mxu0
    %1983 = vst [vmem:[#allocation17] sm:$0xff] %v1978
    %v1984 = vld [vmem:[%s15] sm:$0xff]
    %v1985 = vld [vmem:[%s15 + $0x8] sm:$0xff]
    %v1986 = vld [vmem:[%s15 + $0x10] sm:$0xff]
    %v1987 = vld [vmem:[%s15 + $0x18] sm:$0xff]
    %v1988 = vld [vmem:[%s15 + $0x20] sm:$0xff]
    %v1989 = vld [vmem:[%s15 + $0x28] sm:$0xff]
    %v1990 = vld [vmem:[%s15 + $0x30] sm:$0xff]
    %v1991 = vld [vmem:[%s15 + $0x38] sm:$0xff]
    %v1992 = vld [vmem:[%s15 + $0x40] sm:$0xff]
    %v1994 = vsel %vm1267, %v1139, 0
    %1996 = vmatprep.subr.mxu0 0.0
    %1997 = vmatpush1.msra.mxu0 %v1984
    %1998 = vmatprep.subr.mxu0 0.0
    %1999 = vmatpush1.msra.mxu0 %v1985
    %2000 = vmatprep.subr.mxu0 0.0
    %2001 = vmatpush1.msra.mxu0 %v1986
    %2002 = vmatprep.subr.mxu0 0.0
    %2003 = vmatpush1.msra.mxu0 %v1987
    %2004 = vmatprep.subr.mxu0 0.0
    %2005 = vmatpush1.msra.mxu0 %v1988
    %2006 = vmatprep.subr.mxu0 0.0
    %2007 = vmatpush1.msra.mxu0 %v1989
    %2008 = vmatprep.subr.mxu0 0.0
    %2009 = vmatpush1.msra.mxu0 %v1990
    %2010 = vmatprep.subr.mxu0 0.0
    %2011 = vmatpush1.msra.mxu0 %v1991
    %2012 = vmatprep.subr.mxu0 0.0
    %2013 = vmatpush1.msra.mxu0 %v1992
    %2014 = vmatprep.subr.mxu0 0.0
    %2015 = vmatpush1.msra.mxu0 0.0
    %2016 = vmatprep.subr.mxu0 0.0
    %2017 = vmatpush1.msra.mxu0 0.0
    %2018 = vmatprep.subr.mxu0 0.0
    %2019 = vmatpush1.msra.mxu0 0.0
    %2020 = vmatprep.subr.mxu0 0.0
    %2021 = vmatpush1.msra.mxu0 0.0
    %2022 = vmatprep.subr.mxu0 0.0
    %2023 = vmatpush1.msra.mxu0 0.0
    %2024 = vmatprep.subr.mxu0 0.0
    %2025 = vmatpush1.msra.mxu0 0.0
    %2026 = vmatprep.subr.mxu0 0.0
    %2027 = vmatpush1.msra.mxu0 0.0
    %2028 = vmatprep.subr.mxu0 0.0
    %2029 = vmatpush1.msra.mxu0 0.0
    %2030 = vmatprep.subr.mxu0 0.0
    %2031 = vmatpush1.msra.mxu0 0.0
    %2032 = vmatprep.subr.mxu0 0.0
    %2033 = vmatpush1.msra.mxu0 0.0
    %2034 = vmatprep.subr.mxu0 0.0
    %2035 = vmatpush1.msra.mxu0 0.0
    %2036 = vmatprep.subr.mxu0 0.0
    %2037 = vmatpush1.msra.mxu0 0.0
    %2038 = vmatprep.subr.mxu0 0.0
    %2039 = vmatpush1.msra.mxu0 0.0
    %2040 = vmatprep.subr.mxu0 0.0
    %2041 = vmatpush1.msra.mxu0 0.0
    %2042 = vmatprep.subr.mxu0 0.0
    %2043 = vmatpush1.msra.mxu0 0.0
    %2044 = vmatprep.subr.mxu0 0.0
    %2045 = vmatpush1.msra.mxu0 0.0
    %2046 = vmatprep.subr.mxu0 0.0
    %2047 = vmatpush1.msra.mxu0 0.0
    %2048 = vmatprep.subr.mxu0 0.0
    %2049 = vmatpush1.msra.mxu0 0.0
    %2050 = vmatprep.subr.mxu0 0.0
    %2051 = vmatpush1.msra.mxu0 0.0
    %2052 = vmatprep.subr.mxu0 0.0
    %2053 = vmatpush1.msra.mxu0 0.0
    %2054 = vmatprep.subr.mxu0 0.0
    %2055 = vmatpush1.msra.mxu0 0.0
    %2056 = vmatprep.subr.mxu0 0.0
    %2057 = vmatpush1.msra.mxu0 0.0
    %2058 = vmatprep.subr.mxu0 0.0
    %2059 = vmatpush1.msra.mxu0 0.0
    %2060 = vmatprep.mubr.f32.mxu0 0.0
    %2061 = vmatmul.mubr.f32.gmra.mrb[0].mxu0 %v1994
    %v2062 = vpop.f32.mrb[0].mxu0
    %v2063 = vadd.f32 0.0, %v2062
    %v2064 = vpop.f32.mrb[0].mxu0
    %2065 = vdwg.mxu0
    %vm2066 = vcmask 130048
    %2067 = vst.msk [vmem:[#allocation18] sm:$0xff] %vm2066, %v2063
    // Predicated region
    $region102: #{tpu_custom_call.1} parent=1 // pred_check
      _
    $region103: #{tpu_custom_call.1} parent=1 // pred_check_branch
      %2069 = sbr.rel (0) target = $region105
    $region104: #{tpu_custom_call.1} parent=1 // pred_region
      %s2071 = ssub.s32 128, 128
      %2072 = vsyncadd [#allocation4], %s2071
      %s2074 = sshll.u32 [#allocation17], 4
      %s2075 = int_to_ptr.vmem [resolvable:$true] %s2074
      %2077 = dma.vmem_to_hbm [thread:$0]  %s2075, 128, %s16, [#allocation4]
    $region105: #{tpu_custom_call.1} parent=1 // pred_fallthru
      _
    // Predicated region
    $region106: #{tpu_custom_call.1} parent=1 // pred_check
      _
    $region107: #{tpu_custom_call.1} parent=1 // pred_check_branch
      %2079 = sbr.rel (0) target = $region109
    $region108: #{tpu_custom_call.1} parent=1 // pred_region
      %s2081 = ssub.s32 128, 128
      %2082 = vsyncadd [#allocation19], %s2081
      %s2084 = sshll.u32 [#allocation18], 4
      %s2085 = int_to_ptr.vmem [resolvable:$true] %s2084
      %2087 = dma.vmem_to_hbm [thread:$0]  %s2085, 128, %s17, [#allocation19]
    $region109: #{tpu_custom_call.1} parent=1 // pred_fallthru
      _
    // Predicated region
    $region110: #{tpu_custom_call.1} parent=1 // pred_check
      _
    $region111: #{tpu_custom_call.1} parent=1 // pred_check_branch
      %2089 = sbr.rel (0) target = $region113
    $region112: #{tpu_custom_call.1} parent=1 // pred_region
      %2090 = dma.done [#allocation4], 128
    $region113: #{tpu_custom_call.1} parent=1 // pred_fallthru
      _
    // Predicated region
    $region114: #{tpu_custom_call.1} parent=1 // pred_check
      _
    $region115: #{tpu_custom_call.1} parent=1 // pred_check_branch
      %2092 = sbr.rel (0) target = $region117
    $region116: #{tpu_custom_call.1} parent=1 // pred_region
      %2093 = dma.done [#allocation19], 128
    $region117: #{tpu_custom_call.1} parent=1 // pred_fallthru
      _
    %2094 = vsyncpa [#allocation3], 1
    %2095 = vsyncpa [#allocation6], 1
    %2096 = vsyncpa [#allocation9], 1
    %2097 = vsyncpa [#allocation12], 1
    %2098 = vsyncpa [#allocation15], 1
    %2099 = vsyncpa [#allocation4], 1
    %2100 = vsyncpa [#allocation19], 1

// kernel: tpu_custom_call.1
$region0: #{tpu_custom_call.1}
  #allocation0 [shape = 'u32[]', space=smem, size = 0x4, offset = 0x4, fixed_abs, tag = 'smem constant byte address 0x4 - core index']
  #allocation1 [shape = 'u32[144,128]{1,0:T(1,128)}', space=vmem, size = 0x12000, scoped, tag = 'internal scratch']
  %s0 = inlined_call_operand.hbm [shape: f32[8,32], index: 0, kind: input, shape index: {}]
  %s1 = inlined_call_operand.hbm [shape: f32[8,64], index: 1, kind: input, shape index: {}]
  %s2 = inlined_call_operand.hbm [shape: f32[8,48], index: 2, kind: input, shape index: {}]
  %s3 = inlined_call_operand.vmem [shape: bf16[32,384], index: 3, kind: input, shape index: {}]
  %s4 = inlined_call_operand.vmem [shape: f32[1,384], index: 4, kind: input, shape index: {}]
  %s5 = inlined_call_operand.hbm [shape: bf16[64,384], index: 5, kind: input, shape index: {}]
  %s6 = inlined_call_operand.hbm [shape: f32[1,384], index: 6, kind: input, shape index: {}]
  %s7 = inlined_call_operand.hbm [shape: bf16[48,384], index: 7, kind: input, shape index: {}]
  %s8 = inlined_call_operand.hbm [shape: f32[1,384], index: 8, kind: input, shape index: {}]
  %s9 = inlined_call_operand.vmem [shape: bf16[384,24], index: 9, kind: input, shape index: {}]
  %s10 = inlined_call_operand.vmem [shape: bf16[72,384], index: 10, kind: input, shape index: {}]
  %s11 = inlined_call_operand.hbm [shape: bf16[72,384], index: 11, kind: input, shape index: {}]
  %s12 = inlined_call_operand.hbm [shape: bf16[72,384], index: 12, kind: input, shape index: {}]
  %s13 = inlined_call_operand.vmem [shape: bf16[384,128], index: 13, kind: input, shape index: {}]
  %s14 = inlined_call_operand.vmem [shape: f32[1,128], index: 14, kind: input, shape index: {}]
  %s15 = inlined_call_operand.vmem [shape: f32[72,16], index: 15, kind: input, shape index: {}]
  %s16 = inlined_call_operand.hbm [shape: f32[8,128], index: 16, kind: output, shape index: {0}]
  %s17 = inlined_call_operand.hbm [shape: f32[8,16], index: 17, kind: output, shape index: {1}]
  %18 = xla_tuple %s16, %s17
  %s19 = sld [smem:[#allocation0]]
  $region118: #{tpu_custom_call.1} parent=0
    _
  %s21 = ssub.s32 1, %s19
  %s22 = scalar_select 0, %s21, %s19
  $region1: #{tpu_custom_call.1} parent=0
    #allocation2 [shape = 'u8[4096]{0}', space=vmem, size = 0x1000, scoped, tag = 'input window, operand 0, single buffered']
    #allocation3 [shape = 's32[1]{0}', space=sflag, size = 0x4, scoped, tag = 'scoped memory for tpu_custom_call.1']
    #allocation4 [shape = 's32[1]{0}', space=sflag, size = 0x4, scoped, tag = 'scoped memory for tpu_custom_call.1']
    #allocation5 [shape = 'u8[4096]{0}', space=vmem, size = 0x1000, scoped, tag = 'input window, operand 1, single buffered']
    #allocation6 [shape = 's32[1]{0}', space=sflag, size = 0x4, scoped, tag = 'scoped memory for tpu_custom_call.1']
    #allocation7 [shape = 'u8[4096]{0}', space=vmem, size = 0x1000, scoped, tag = 'input window, operand 2, single buffered']
    #allocation8 [shape = 'u8[49152]{0}', space=vmem, size = 0xc000, scoped, tag = 'input window, operand 5, single buffered']
    #allocation9 [shape = 's32[1]{0}', space=sflag, size = 0x4, scoped, tag = 'scoped memory for tpu_custom_call.1']
    #allocation10 [shape = 'u8[1536]{0}', space=vmem, size = 0x800, scoped, tag = 'input window, operand 6, single buffered']
    #allocation11 [shape = 'u8[36864]{0}', space=vmem, size = 0x9000, scoped, tag = 'input window, operand 7, single buffered']
    #allocation12 [shape = 's32[1]{0}', space=sflag, size = 0x4, scoped, tag = 'scoped memory for tpu_custom_call.1']
    #allocation13 [shape = 'u8[1536]{0}', space=vmem, size = 0x800, scoped, tag = 'input window, operand 8, single buffered']
    #allocation14 [shape = 'u8[55296]{0}', space=vmem, size = 0xd800, scoped, tag = 'input window, operand 11, single buffered']
    #allocation15 [shape = 's32[1]{0}', space=sflag, size = 0x4, scoped, tag = 'scoped memory for tpu_custom_call.1']
    #allocation16 [shape = 'u8[55296]{0}', space=vmem, size = 0xd800, scoped, tag = 'input window, operand 12, single buffered']
    #allocation17 [shape = 'u8[4096]{0}', space=vmem, size = 0x1000, scoped, tag = 'output window, operand 0, single buffered']
    #allocation18 [shape = 'u8[4096]{0}', space=vmem, size = 0x1000, scoped, tag = 'output window, operand 1, single buffered']
    #allocation19 [shape = 's32[1]{0}', space=sflag, size = 0x4, scoped, tag = 'scoped memory for tpu_custom_call.1']
    %23 = vsyncpa [#allocation3], 0
    %24 = vsyncpa [#allocation6], 0
    %25 = vsyncpa [#allocation9], 0
    %26 = vsyncpa [#allocation12], 0
    %27 = vsyncpa [#allocation15], 0
    %28 = vsyncpa [#allocation4], 0
    %29 = vsyncpa [#allocation19], 0
    // Predicated region
    $region2: #{tpu_custom_call.1} parent=1 // pred_check
      _
    $region3: #{tpu_custom_call.1} parent=1 // pred_check_branch
      %31 = sbr.rel (0) target = $region5
    $region4: #{tpu_custom_call.1} parent=1 // pred_region
      %s33 = ssub.s32 128, 128
      %34 = vsyncadd [#allocation3], %s33
      %s36 = sshll.u32 [#allocation2], 4
      %s37 = int_to_ptr.vmem [resolvable:$true] %s36
      %39 = dma.hbm_to_vmem [thread:$0]  %s0, 128, %s37, [#allocation3]
    $region5: #{tpu_custom_call.1} parent=1 // pred_fallthru
      _
    // Predicated region
    $region6: #{tpu_custom_call.1} parent=1 // pred_check
      _
    $region7: #{tpu_custom_call.1} parent=1 // pred_check_branch
      %41 = sbr.rel (0) target = $region9
    $region8: #{tpu_custom_call.1} parent=1 // pred_region
      %s43 = ssub.s32 128, 128
      %44 = vsyncadd [#allocation6], %s43
      %s46 = sshll.u32 [#allocation5], 4
      %s47 = int_to_ptr.vmem [resolvable:$true] %s46
      %49 = dma.hbm_to_vmem [thread:$0]  %s1, 128, %s47, [#allocation6]
    $region9: #{tpu_custom_call.1} parent=1 // pred_fallthru
      _
    // Predicated region
    $region10: #{tpu_custom_call.1} parent=1 // pred_check
      _
    $region11: #{tpu_custom_call.1} parent=1 // pred_check_branch
      %51 = sbr.rel (0) target = $region13
    $region12: #{tpu_custom_call.1} parent=1 // pred_region
      %s53 = ssub.s32 128, 128
      %54 = vsyncadd [#allocation6], %s53
      %s56 = sshll.u32 [#allocation7], 4
      %s57 = int_to_ptr.vmem [resolvable:$true] %s56
      %59 = dma.hbm_to_vmem [thread:$0]  %s2, 128, %s57, [#allocation6]
    $region13: #{tpu_custom_call.1} parent=1 // pred_fallthru
      _
    // Predicated region
    $region14: #{tpu_custom_call.1} parent=1 // pred_check
      _
    $region15: #{tpu_custom_call.1} parent=1 // pred_check_branch
      %61 = sbr.rel (0) target = $region17
    $region16: #{tpu_custom_call.1} parent=1 // pred_region
      _
    $region17: #{tpu_custom_call.1} parent=1 // pred_fallthru
      _
    // Predicated region
    $region18: #{tpu_custom_call.1} parent=1 // pred_check
      _
    $region19: #{tpu_custom_call.1} parent=1 // pred_check_branch
      %63 = sbr.rel (0) target = $region21
    $region20: #{tpu_custom_call.1} parent=1 // pred_region
      _
    $region21: #{tpu_custom_call.1} parent=1 // pred_fallthru
      _
    // Predicated region
    $region22: #{tpu_custom_call.1} parent=1 // pred_check
      _
    $region23: #{tpu_custom_call.1} parent=1 // pred_check_branch
      %65 = sbr.rel (0) target = $region25
    $region24: #{tpu_custom_call.1} parent=1 // pred_region
      %s67 = ssub.s32 1536, 1536
      %68 = vsyncadd [#allocation9], %s67
      %s69 = sshll.u32 [#allocation8], 4
      %s70 = int_to_ptr.vmem [resolvable:$true] %s69
      %75 = dma.hbm_to_vmem [thread:$0]  %s5, 1536, %s70, [#allocation9], 192, 192, 12
    $region25: #{tpu_custom_call.1} parent=1 // pred_fallthru
      _
    // Predicated region
    $region26: #{tpu_custom_call.1} parent=1 // pred_check
      _
    $region27: #{tpu_custom_call.1} parent=1 // pred_check_branch
      %77 = sbr.rel (0) target = $region29
    $region28: #{tpu_custom_call.1} parent=1 // pred_region
      %s79 = ssub.s32 48, 48
      %80 = vsyncadd [#allocation9], %s79
      %s82 = sshll.u32 [#allocation10], 4
      %s83 = int_to_ptr.vmem [resolvable:$true] %s82
      %85 = dma.hbm_to_vmem [thread:$0]  %s6, 48, %s83, [#allocation9]
    $region29: #{tpu_custom_call.1} parent=1 // pred_fallthru
      _
    // Predicated region
    $region30: #{tpu_custom_call.1} parent=1 // pred_check
      _
    $region31: #{tpu_custom_call.1} parent=1 // pred_check_branch
      %87 = sbr.rel (0) target = $region33
    $region32: #{tpu_custom_call.1} parent=1 // pred_region
      %s89 = ssub.s32 1152, 1152
      %90 = vsyncadd [#allocation12], %s89
      %s91 = sshll.u32 [#allocation11], 4
      %s92 = int_to_ptr.vmem [resolvable:$true] %s91
      %97 = dma.hbm_to_vmem [thread:$0]  %s7, 1152, %s92, [#allocation12], 192, 192, 12
    $region33: #{tpu_custom_call.1} parent=1 // pred_fallthru
      _
    // Predicated region
    $region34: #{tpu_custom_call.1} parent=1 // pred_check
      _
    $region35: #{tpu_custom_call.1} parent=1 // pred_check_branch
      %99 = sbr.rel (0) target = $region37
    $region36: #{tpu_custom_call.1} parent=1 // pred_region
      %s101 = ssub.s32 48, 48
      %102 = vsyncadd [#allocation12], %s101
      %s104 = sshll.u32 [#allocation13], 4
      %s105 = int_to_ptr.vmem [resolvable:$true] %s104
      %107 = dma.hbm_to_vmem [thread:$0]  %s8, 48, %s105, [#allocation12]
    $region37: #{tpu_custom_call.1} parent=1 // pred_fallthru
      _
    // Predicated region
    $region38: #{tpu_custom_call.1} parent=1 // pred_check
      _
    $region39: #{tpu_custom_call.1} parent=1 // pred_check_branch
      %109 = sbr.rel (0) target = $region41
    $region40: #{tpu_custom_call.1} parent=1 // pred_region
      _
    $region41: #{tpu_custom_call.1} parent=1 // pred_fallthru
      _
    // Predicated region
    $region42: #{tpu_custom_call.1} parent=1 // pred_check
      _
    $region43: #{tpu_custom_call.1} parent=1 // pred_check_branch
      %111 = sbr.rel (0) target = $region45
    $region44: #{tpu_custom_call.1} parent=1 // pred_region
      _
    $region45: #{tpu_custom_call.1} parent=1 // pred_fallthru
      _
    // Predicated region
    $region46: #{tpu_custom_call.1} parent=1 // pred_check
      _
    $region47: #{tpu_custom_call.1} parent=1 // pred_check_branch
      %113 = sbr.rel (0) target = $region49
    $region48: #{tpu_custom_call.1} parent=1 // pred_region
      %s115 = ssub.s32 1728, 1728
      %116 = vsyncadd [#allocation15], %s115
      %s117 = sshll.u32 [#allocation14], 4
      %s118 = int_to_ptr.vmem [resolvable:$true] %s117
      %123 = dma.hbm_to_vmem [thread:$0]  %s11, 1728, %s118, [#allocation15], 192, 192, 12
    $region49: #{tpu_custom_call.1} parent=1 // pred_fallthru
      _
    // Predicated region
    $region50: #{tpu_custom_call.1} parent=1 // pred_check
      _
    $region51: #{tpu_custom_call.1} parent=1 // pred_check_branch
      %125 = sbr.rel (0) target = $region53
    $region52: #{tpu_custom_call.1} parent=1 // pred_region
      %s127 = ssub.s32 1728, 1728
      %128 = vsyncadd [#allocation15], %s127
      %s129 = sshll.u32 [#allocation16], 4
      %s130 = int_to_ptr.vmem [resolvable:$true] %s129
      %135 = dma.hbm_to_vmem [thread:$0]  %s12, 1728, %s130, [#allocation15], 192, 192, 12
    $region53: #{tpu_custom_call.1} parent=1 // pred_fallthru
      _
    // Predicated region
    $region54: #{tpu_custom_call.1} parent=1 // pred_check
      _
    $region55: #{tpu_custom_call.1} parent=1 // pred_check_branch
      %137 = sbr.rel (0) target = $region57
    $region56: #{tpu_custom_call.1} parent=1 // pred_region
      _
    $region57: #{tpu_custom_call.1} parent=1 // pred_fallthru
      _
    // Predicated region
    $region58: #{tpu_custom_call.1} parent=1 // pred_check
      _
    $region59: #{tpu_custom_call.1} parent=1 // pred_check_branch
      %139 = sbr.rel (0) target = $region61
    $region60: #{tpu_custom_call.1} parent=1 // pred_region
      _
    $region61: #{tpu_custom_call.1} parent=1 // pred_fallthru
      _
    // Predicated region
    $region62: #{tpu_custom_call.1} parent=1 // pred_check
      _
    $region63: #{tpu_custom_call.1} parent=1 // pred_check_branch
      %141 = sbr.rel (0) target = $region65
    $region64: #{tpu_custom_call.1} parent=1 // pred_region
      _
    $region65: #{tpu_custom_call.1} parent=1 // pred_fallthru
      _
    // Predicated region
    $region66: #{tpu_custom_call.1} parent=1 // pred_check
      _
    $region67: #{tpu_custom_call.1} parent=1 // pred_check_branch
      %143 = sbr.rel (0) target = $region69
    $region68: #{tpu_custom_call.1} parent=1 // pred_region
      %144 = dma.done [#allocation3], 128
    $region69: #{tpu_custom_call.1} parent=1 // pred_fallthru
      _
    // Predicated region
    $region70: #{tpu_custom_call.1} parent=1 // pred_check
      _
    $region71: #{tpu_custom_call.1} parent=1 // pred_check_branch
      %146 = sbr.rel (0) target = $region73
    $region72: #{tpu_custom_call.1} parent=1 // pred_region
      %147 = dma.done [#allocation6], 128
    $region73: #{tpu_custom_call.1} parent=1 // pred_fallthru
      _
    // Predicated region
    $region74: #{tpu_custom_call.1} parent=1 // pred_check
      _
    $region75: #{tpu_custom_call.1} parent=1 // pred_check_branch
      %149 = sbr.rel (0) target = $region77
    $region76: #{tpu_custom_call.1} parent=1 // pred_region
      %150 = dma.done [#allocation6], 128
    $region77: #{tpu_custom_call.1} parent=1 // pred_fallthru
      _
    // Predicated region
    $region78: #{tpu_custom_call.1} parent=1 // pred_check
      _
    $region79: #{tpu_custom_call.1} parent=1 // pred_check_branch
      %152 = sbr.rel (0) target = $region81
    $region80: #{tpu_custom_call.1} parent=1 // pred_region
      %153 = dma.done [#allocation9], 1536
    $region81: #{tpu_custom_call.1} parent=1 // pred_fallthru
      _
    // Predicated region
    $region82: #{tpu_custom_call.1} parent=1 // pred_check
      _
    $region83: #{tpu_custom_call.1} parent=1 // pred_check_branch
      %155 = sbr.rel (0) target = $region85
    $region84: #{tpu_custom_call.1} parent=1 // pred_region
      %156 = dma.done [#allocation9], 48
    $region85: #{tpu_custom_call.1} parent=1 // pred_fallthru
      _
    // Predicated region
    $region86: #{tpu_custom_call.1} parent=1 // pred_check
      _
    $region87: #{tpu_custom_call.1} parent=1 // pred_check_branch
      %158 = sbr.rel (0) target = $region89
    $region88: #{tpu_custom_call.1} parent=1 // pred_region
      %159 = dma.done [#allocation12], 1152
    $region89: #{tpu_custom_call.1} parent=1 // pred_fallthru
      _
    // Predicated region
    $region90: #{tpu_custom_call.1} parent=1 // pred_check
      _
    $region91: #{tpu_custom_call.1} parent=1 // pred_check_branch
      %161 = sbr.rel (0) target = $region93
    $region92: #{tpu_custom_call.1} parent=1 // pred_region
      %162 = dma.done [#allocation12], 48
    $region93: #{tpu_custom_call.1} parent=1 // pred_fallthru
      _
    // Predicated region
    $region94: #{tpu_custom_call.1} parent=1 // pred_check
      _
    $region95: #{tpu_custom_call.1} parent=1 // pred_check_branch
      %164 = sbr.rel (0) target = $region97
    $region96: #{tpu_custom_call.1} parent=1 // pred_region
      %165 = dma.done [#allocation15], 1728
    $region97: #{tpu_custom_call.1} parent=1 // pred_fallthru
      _
    // Predicated region
    $region98: #{tpu_custom_call.1} parent=1 // pred_check
      _
    $region99: #{tpu_custom_call.1} parent=1 // pred_check_branch
      %167 = sbr.rel (0) target = $region101
    $region100: #{tpu_custom_call.1} parent=1 // pred_region
      %168 = dma.done [#allocation15], 1728
    $region101: #{tpu_custom_call.1} parent=1 // pred_fallthru
      _
    %v170 = vld [vmem:[#allocation2] sm:$0xff]
    %v171 = vpack.c.bf16 %v170, %v170
    %v172 = vld [vmem:[%s3] sm:$0xff]
    %v173 = vld [vmem:[%s3 + $0x8] sm:$0xf]
    %v174 = vld [vmem:[%s3 + $0xc] sm:$0xff]
    %v175 = vld [vmem:[%s3 + $0x14] sm:$0xf]
    %v176 = vld [vmem:[%s3 + $0x18] sm:$0xff]
    %v177 = vld [vmem:[%s3 + $0x20] sm:$0xf]
    %v178 = vld [vmem:[%s3 + $0x24] sm:$0xff]
    %v179 = vld [vmem:[%s3 + $0x2c] sm:$0xf]
    %v180 = vld [vmem:[%s4] sm:$0x7]
    %v182 = vlaneseq
    %v183 = vshrl.u32 %v182, 7
    %v184 = vsub.s32 0, %v183
    %v185 = vrot.slane %v180, %v184
    %v186 = vlaneseq
    %v187 = vshrl.u32 %v186, 7
    %v188 = vsub.s32 1, %v187
    %v189 = vrot.slane %v180, %v188
    %v190 = vlaneseq
    %v191 = vshrl.u32 %v190, 7
    %v192 = vsub.s32 2, %v191
    %v193 = vrot.slane %v180, %v192
    %v205 = vunpack.c.l.b16 %v172
    %v206 = vunpack.c.h.b16 %v172
    %v207 = vunpack.c.l.b16 %v173
    %v208 = vunpack.c.l.b16 %v174
    %v209 = vunpack.c.h.b16 %v174
    %v210 = vunpack.c.l.b16 %v175
    %v211 = vunpack.c.l.b16 %v176
    %v212 = vunpack.c.h.b16 %v176
    %v213 = vunpack.c.l.b16 %v177
    %v214 = vunpack.c.l.b16 %v178
    %v215 = vunpack.c.h.b16 %v178
    %v216 = vunpack.c.l.b16 %v179
    %v217 = vpack.c.b16 %v208, %v205
    %v218 = vpack.c.b16 %v209, %v206
    %v219 = vpack.c.b16 %v210, %v207
    %v220 = vpack.c.b16 %v214, %v211
    %v221 = vpack.c.b16 %v215, %v212
    %v222 = vpack.c.b16 %v216, %v213
    %vm229 = vcmask 261120
    %v231 = vsel %vm229, %v171, 0
    %233 = vmatprep.subr.bf16.mxu0 %v218
    %234 = vmatpush1.bf16.msra.mxu0 %v217
    %235 = vmatprep.subr.bf16.mxu0 %v221
    %236 = vmatpush1.bf16.msra.mxu0 %v220
    %237 = vmatprep.subr.bf16.mxu0 0
    %238 = vmatpush1.bf16.msra.mxu0 0
    %239 = vmatprep.subr.bf16.mxu0 0
    %240 = vmatpush1.bf16.msra.mxu0 0
    %241 = vmatprep.subr.bf16.mxu0 0
    %242 = vmatpush1.bf16.msra.mxu0 0
    %243 = vmatprep.subr.bf16.mxu0 0
    %244 = vmatpush1.bf16.msra.mxu0 0
    %245 = vmatprep.subr.bf16.mxu0 0
    %246 = vmatpush1.bf16.msra.mxu0 0
    %247 = vmatprep.subr.bf16.mxu0 0
    %248 = vmatpush1.bf16.msra.mxu0 0
    %249 = vmatprep.subr.bf16.mxu0 0
    %250 = vmatpush1.bf16.msra.mxu0 0
    %251 = vmatprep.subr.bf16.mxu0 0
    %252 = vmatpush1.bf16.msra.mxu0 0
    %253 = vmatprep.subr.bf16.mxu0 0
    %254 = vmatpush1.bf16.msra.mxu0 0
    %255 = vmatprep.subr.bf16.mxu0 0
    %256 = vmatpush1.bf16.msra.mxu0 0
    %257 = vmatprep.subr.bf16.mxu0 0
    %258 = vmatpush1.bf16.msra.mxu0 0
    %259 = vmatprep.subr.bf16.mxu0 0
    %260 = vmatpush1.bf16.msra.mxu0 0
    %261 = vmatprep.subr.bf16.mxu0 0
    %262 = vmatpush1.bf16.msra.mxu0 0
    %263 = vmatprep.subr.bf16.mxu0 0
    %264 = vmatpush1.bf16.msra.mxu0 0
    %265 = vmatprep.mubr.bf16.mxu0 0
    %266 = vmatmul.mubr.bf16.gmra.mrb[0].mxu0 %v231
    %v267 = vpop.f32.mrb[0].mxu0
    %v268 = vadd.f32 %v185, %v267
    %v269 = vpop.f32.mrb[0].mxu0
    %v270 = vadd.f32 %v189, %v269
    %v271 = vpop.f32.mrb[0].mxu0
    %v272 = vpop.f32.mrb[0].mxu0
    %273 = vdwg.mxu0
    %274 = vmatprep.subr.bf16.mxu0 0
    %275 = vmatpush1.bf16.msra.mxu0 %v219
    %276 = vmatprep.subr.bf16.mxu0 0
    %277 = vmatpush1.bf16.msra.mxu0 %v222
    %278 = vmatprep.subr.bf16.mxu0 0
    %279 = vmatpush1.bf16.msra.mxu0 0
    %280 = vmatprep.subr.bf16.mxu0 0
    %281 = vmatpush1.bf16.msra.mxu0 0
    %282 = vmatprep.subr.bf16.mxu0 0
    %283 = vmatpush1.bf16.msra.mxu0 0
    %284 = vmatprep.subr.bf16.mxu0 0
    %285 = vmatpush1.bf16.msra.mxu0 0
    %286 = vmatprep.subr.bf16.mxu0 0
    %287 = vmatpush1.bf16.msra.mxu0 0
    %288 = vmatprep.subr.bf16.mxu0 0
    %289 = vmatpush1.bf16.msra.mxu0 0
    %290 = vmatprep.subr.bf16.mxu0 0
    %291 = vmatpush1.bf16.msra.mxu0 0
    %292 = vmatprep.subr.bf16.mxu0 0
    %293 = vmatpush1.bf16.msra.mxu0 0
    %294 = vmatprep.subr.bf16.mxu0 0
    %295 = vmatpush1.bf16.msra.mxu0 0
    %296 = vmatprep.subr.bf16.mxu0 0
    %297 = vmatpush1.bf16.msra.mxu0 0
    %298 = vmatprep.subr.bf16.mxu0 0
    %299 = vmatpush1.bf16.msra.mxu0 0
    %300 = vmatprep.subr.bf16.mxu0 0
    %301 = vmatpush1.bf16.msra.mxu0 0
    %302 = vmatprep.subr.bf16.mxu0 0
    %303 = vmatpush1.bf16.msra.mxu0 0
    %304 = vmatprep.subr.bf16.mxu0 0
    %305 = vmatpush1.bf16.msra.mxu0 0
    %306 = vmatprep.mubr.bf16.mxu0 0
    %307 = vmatmul.mubr.bf16.gmra.mrb[0].mxu0 %v231
    %v308 = vpop.f32.mrb[0].mxu0
    %v309 = vadd.f32 %v193, %v308
    %v310 = vpop.f32.mrb[0].mxu0
    %v311 = vpop.f32.mrb[0].mxu0
    %v312 = vpop.f32.mrb[0].mxu0
    %313 = vdwg.mxu0
    %v314 = vld [vmem:[#allocation5] sm:$0xff]
    %v315 = vpack.c.bf16 %v314, %v314
    %v316 = vld [vmem:[#allocation8] sm:$0xff]
    %v317 = vld [vmem:[#allocation8 + $0x8] sm:$0xf]
    %v318 = vld [vmem:[#allocation8 + $0xc] sm:$0xff]
    %v319 = vld [vmem:[#allocation8 + $0x14] sm:$0xf]
    %v320 = vld [vmem:[#allocation8 + $0x18] sm:$0xff]
    %v321 = vld [vmem:[#allocation8 + $0x20] sm:$0xf]
    %v322 = vld [vmem:[#allocation8 + $0x24] sm:$0xff]
    %v323 = vld [vmem:[#allocation8 + $0x2c] sm:$0xf]
    %v324 = vld [vmem:[#allocation8 + $0x30] sm:$0xff]
    %v325 = vld [vmem:[#allocation8 + $0x38] sm:$0xf]
    %v326 = vld [vmem:[#allocation8 + $0x3c] sm:$0xff]
    %v327 = vld [vmem:[#allocation8 + $0x44] sm:$0xf]
    %v328 = vld [vmem:[#allocation8 + $0x48] sm:$0xff]
    %v329 = vld [vmem:[#allocation8 + $0x50] sm:$0xf]
    %v330 = vld [vmem:[#allocation8 + $0x54] sm:$0xff]
    %v331 = vld [vmem:[#allocation8 + $0x5c] sm:$0xf]
    %v332 = vld [vmem:[#allocation10] sm:$0x7]
    %v334 = vlaneseq
    %v335 = vshrl.u32 %v334, 7
    %v336 = vsub.s32 0, %v335
    %v337 = vrot.slane %v332, %v336
    %v338 = vlaneseq
    %v339 = vshrl.u32 %v338, 7
    %v340 = vsub.s32 1, %v339
    %v341 = vrot.slane %v332, %v340
    %v342 = vlaneseq
    %v343 = vshrl.u32 %v342, 7
    %v344 = vsub.s32 2, %v343
    %v345 = vrot.slane %v332, %v344
    %v365 = vunpack.c.l.b16 %v316
    %v366 = vunpack.c.h.b16 %v316
    %v367 = vunpack.c.l.b16 %v317
    %v368 = vunpack.c.l.b16 %v318
    %v369 = vunpack.c.h.b16 %v318
    %v370 = vunpack.c.l.b16 %v319
    %v371 = vunpack.c.l.b16 %v320
    %v372 = vunpack.c.h.b16 %v320
    %v373 = vunpack.c.l.b16 %v321
    %v374 = vunpack.c.l.b16 %v322
    %v375 = vunpack.c.h.b16 %v322
    %v376 = vunpack.c.l.b16 %v323
    %v377 = vunpack.c.l.b16 %v324
    %v378 = vunpack.c.h.b16 %v324
    %v379 = vunpack.c.l.b16 %v325
    %v380 = vunpack.c.l.b16 %v326
    %v381 = vunpack.c.h.b16 %v326
    %v382 = vunpack.c.l.b16 %v327
    %v383 = vunpack.c.l.b16 %v328
    %v384 = vunpack.c.h.b16 %v328
    %v385 = vunpack.c.l.b16 %v329
    %v386 = vunpack.c.l.b16 %v330
    %v387 = vunpack.c.h.b16 %v330
    %v388 = vunpack.c.l.b16 %v331
    %v389 = vpack.c.b16 %v368, %v365
    %v390 = vpack.c.b16 %v369, %v366
    %v391 = vpack.c.b16 %v370, %v367
    %v392 = vpack.c.b16 %v374, %v371
    %v393 = vpack.c.b16 %v375, %v372
    %v394 = vpack.c.b16 %v376, %v373
    %v395 = vpack.c.b16 %v380, %v377
    %v396 = vpack.c.b16 %v381, %v378
    %v397 = vpack.c.b16 %v382, %v379
    %v398 = vpack.c.b16 %v386, %v383
    %v399 = vpack.c.b16 %v387, %v384
    %v400 = vpack.c.b16 %v388, %v385
    %vm413 = vcmask 523264
    %v415 = vsel %vm413, %v315, 0
    %417 = vmatprep.subr.bf16.mxu0 %v390
    %418 = vmatpush1.bf16.msra.mxu0 %v389
    %419 = vmatprep.subr.bf16.mxu0 %v393
    %420 = vmatpush1.bf16.msra.mxu0 %v392
    %421 = vmatprep.subr.bf16.mxu0 %v396
    %422 = vmatpush1.bf16.msra.mxu0 %v395
    %423 = vmatprep.subr.bf16.mxu0 %v399
    %424 = vmatpush1.bf16.msra.mxu0 %v398
    %425 = vmatprep.subr.bf16.mxu0 0
    %426 = vmatpush1.bf16.msra.mxu0 0
    %427 = vmatprep.subr.bf16.mxu0 0
    %428 = vmatpush1.bf16.msra.mxu0 0
    %429 = vmatprep.subr.bf16.mxu0 0
    %430 = vmatpush1.bf16.msra.mxu0 0
    %431 = vmatprep.subr.bf16.mxu0 0
    %432 = vmatpush1.bf16.msra.mxu0 0
    %433 = vmatprep.subr.bf16.mxu0 0
    %434 = vmatpush1.bf16.msra.mxu0 0
    %435 = vmatprep.subr.bf16.mxu0 0
    %436 = vmatpush1.bf16.msra.mxu0 0
    %437 = vmatprep.subr.bf16.mxu0 0
    %438 = vmatpush1.bf16.msra.mxu0 0
    %439 = vmatprep.subr.bf16.mxu0 0
    %440 = vmatpush1.bf16.msra.mxu0 0
    %441 = vmatprep.subr.bf16.mxu0 0
    %442 = vmatpush1.bf16.msra.mxu0 0
    %443 = vmatprep.subr.bf16.mxu0 0
    %444 = vmatpush1.bf16.msra.mxu0 0
    %445 = vmatprep.subr.bf16.mxu0 0
    %446 = vmatpush1.bf16.msra.mxu0 0
    %447 = vmatprep.subr.bf16.mxu0 0
    %448 = vmatpush1.bf16.msra.mxu0 0
    %449 = vmatprep.mubr.bf16.mxu0 0
    %450 = vmatmul.mubr.bf16.gmra.mrb[0].mxu0 %v415
    %v451 = vpop.f32.mrb[0].mxu0
    %v452 = vadd.f32 %v337, %v451
    %v453 = vpop.f32.mrb[0].mxu0
    %v454 = vadd.f32 %v341, %v453
    %v455 = vpop.f32.mrb[0].mxu0
    %v456 = vpop.f32.mrb[0].mxu0
    %457 = vdwg.mxu0
    %458 = vmatprep.subr.bf16.mxu0 0
    %459 = vmatpush1.bf16.msra.mxu0 %v391
    %460 = vmatprep.subr.bf16.mxu0 0
    %461 = vmatpush1.bf16.msra.mxu0 %v394
    %462 = vmatprep.subr.bf16.mxu0 0
    %463 = vmatpush1.bf16.msra.mxu0 %v397
    %464 = vmatprep.subr.bf16.mxu0 0
    %465 = vmatpush1.bf16.msra.mxu0 %v400
    %466 = vmatprep.subr.bf16.mxu0 0
    %467 = vmatpush1.bf16.msra.mxu0 0
    %468 = vmatprep.subr.bf16.mxu0 0
    %469 = vmatpush1.bf16.msra.mxu0 0
    %470 = vmatprep.subr.bf16.mxu0 0
    %471 = vmatpush1.bf16.msra.mxu0 0
    %472 = vmatprep.subr.bf16.mxu0 0
    %473 = vmatpush1.bf16.msra.mxu0 0
    %474 = vmatprep.subr.bf16.mxu0 0
    %475 = vmatpush1.bf16.msra.mxu0 0
    %476 = vmatprep.subr.bf16.mxu0 0
    %477 = vmatpush1.bf16.msra.mxu0 0
    %478 = vmatprep.subr.bf16.mxu0 0
    %479 = vmatpush1.bf16.msra.mxu0 0
    %480 = vmatprep.subr.bf16.mxu0 0
    %481 = vmatpush1.bf16.msra.mxu0 0
    %482 = vmatprep.subr.bf16.mxu0 0
    %483 = vmatpush1.bf16.msra.mxu0 0
    %484 = vmatprep.subr.bf16.mxu0 0
    %485 = vmatpush1.bf16.msra.mxu0 0
    %486 = vmatprep.subr.bf16.mxu0 0
    %487 = vmatpush1.bf16.msra.mxu0 0
    %488 = vmatprep.subr.bf16.mxu0 0
    %489 = vmatpush1.bf16.msra.mxu0 0
    %490 = vmatprep.mubr.bf16.mxu0 0
    %491 = vmatmul.mubr.bf16.gmra.mrb[0].mxu0 %v415
    %v492 = vpop.f32.mrb[0].mxu0
    %v493 = vadd.f32 %v345, %v492
    %v494 = vpop.f32.mrb[0].mxu0
    %v495 = vpop.f32.mrb[0].mxu0
    %v496 = vpop.f32.mrb[0].mxu0
    %497 = vdwg.mxu0
    %v498 = vld [vmem:[#allocation7] sm:$0xff]
    %v499 = vpack.c.bf16 %v498, %v498
    %v500 = vld [vmem:[#allocation11] sm:$0xff]
    %v501 = vld [vmem:[#allocation11 + $0x8] sm:$0xf]
    %v502 = vld [vmem:[#allocation11 + $0xc] sm:$0xff]
    %v503 = vld [vmem:[#allocation11 + $0x14] sm:$0xf]
    %v504 = vld [vmem:[#allocation11 + $0x18] sm:$0xff]
    %v505 = vld [vmem:[#allocation11 + $0x20] sm:$0xf]
    %v506 = vld [vmem:[#allocation11 + $0x24] sm:$0xff]
    %v507 = vld [vmem:[#allocation11 + $0x2c] sm:$0xf]
    %v508 = vld [vmem:[#allocation11 + $0x30] sm:$0xff]
    %v509 = vld [vmem:[#allocation11 + $0x38] sm:$0xf]
    %v510 = vld [vmem:[#allocation11 + $0x3c] sm:$0xff]
    %v511 = vld [vmem:[#allocation11 + $0x44] sm:$0xf]
    %v512 = vld [vmem:[#allocation13] sm:$0x7]
    %v514 = vlaneseq
    %v515 = vshrl.u32 %v514, 7
    %v516 = vsub.s32 0, %v515
    %v517 = vrot.slane %v512, %v516
    %v518 = vlaneseq
    %v519 = vshrl.u32 %v518, 7
    %v520 = vsub.s32 1, %v519
    %v521 = vrot.slane %v512, %v520
    %v522 = vlaneseq
    %v523 = vshrl.u32 %v522, 7
    %v524 = vsub.s32 2, %v523
    %v525 = vrot.slane %v512, %v524
    %v541 = vunpack.c.l.b16 %v500
    %v542 = vunpack.c.h.b16 %v500
    %v543 = vunpack.c.l.b16 %v501
    %v544 = vunpack.c.l.b16 %v502
    %v545 = vunpack.c.h.b16 %v502
    %v546 = vunpack.c.l.b16 %v503
    %v547 = vunpack.c.l.b16 %v504
    %v548 = vunpack.c.h.b16 %v504
    %v549 = vunpack.c.l.b16 %v505
    %v550 = vunpack.c.l.b16 %v506
    %v551 = vunpack.c.h.b16 %v506
    %v552 = vunpack.c.l.b16 %v507
    %v553 = vunpack.c.l.b16 %v508
    %v554 = vunpack.c.h.b16 %v508
    %v555 = vunpack.c.l.b16 %v509
    %v556 = vunpack.c.l.b16 %v510
    %v557 = vunpack.c.h.b16 %v510
    %v558 = vunpack.c.l.b16 %v511
    %v559 = vpack.c.b16 %v544, %v541
    %v560 = vpack.c.b16 %v545, %v542
    %v561 = vpack.c.b16 %v546, %v543
    %v562 = vpack.c.b16 %v550, %v547
    %v563 = vpack.c.b16 %v551, %v548
    %v564 = vpack.c.b16 %v552, %v549
    %v565 = vpack.c.b16 %v556, %v553
    %v566 = vpack.c.b16 %v557, %v554
    %v567 = vpack.c.b16 %v558, %v555
    %vm577 = vcmask 392192
    %v579 = vsel %vm577, %v499, 0
    %581 = vmatprep.subr.bf16.mxu0 %v560
    %582 = vmatpush1.bf16.msra.mxu0 %v559
    %583 = vmatprep.subr.bf16.mxu0 %v563
    %584 = vmatpush1.bf16.msra.mxu0 %v562
    %585 = vmatprep.subr.bf16.mxu0 %v566
    %586 = vmatpush1.bf16.msra.mxu0 %v565
    %587 = vmatprep.subr.bf16.mxu0 0
    %588 = vmatpush1.bf16.msra.mxu0 0
    %589 = vmatprep.subr.bf16.mxu0 0
    %590 = vmatpush1.bf16.msra.mxu0 0
    %591 = vmatprep.subr.bf16.mxu0 0
    %592 = vmatpush1.bf16.msra.mxu0 0
    %593 = vmatprep.subr.bf16.mxu0 0
    %594 = vmatpush1.bf16.msra.mxu0 0
    %595 = vmatprep.subr.bf16.mxu0 0
    %596 = vmatpush1.bf16.msra.mxu0 0
    %597 = vmatprep.subr.bf16.mxu0 0
    %598 = vmatpush1.bf16.msra.mxu0 0
    %599 = vmatprep.subr.bf16.mxu0 0
    %600 = vmatpush1.bf16.msra.mxu0 0
    %601 = vmatprep.subr.bf16.mxu0 0
    %602 = vmatpush1.bf16.msra.mxu0 0
    %603 = vmatprep.subr.bf16.mxu0 0
    %604 = vmatpush1.bf16.msra.mxu0 0
    %605 = vmatprep.subr.bf16.mxu0 0
    %606 = vmatpush1.bf16.msra.mxu0 0
    %607 = vmatprep.subr.bf16.mxu0 0
    %608 = vmatpush1.bf16.msra.mxu0 0
    %609 = vmatprep.subr.bf16.mxu0 0
    %610 = vmatpush1.bf16.msra.mxu0 0
    %611 = vmatprep.subr.bf16.mxu0 0
    %612 = vmatpush1.bf16.msra.mxu0 0
    %613 = vmatprep.mubr.bf16.mxu0 0
    %614 = vmatmul.mubr.bf16.gmra.mrb[0].mxu0 %v579
    %v615 = vpop.f32.mrb[0].mxu0
    %v616 = vadd.f32 %v517, %v615
    %v617 = vpop.f32.mrb[0].mxu0
    %v618 = vadd.f32 %v521, %v617
    %v619 = vpop.f32.mrb[0].mxu0
    %v620 = vpop.f32.mrb[0].mxu0
    %621 = vdwg.mxu0
    %622 = vmatprep.subr.bf16.mxu0 0
    %623 = vmatpush1.bf16.msra.mxu0 %v561
    %624 = vmatprep.subr.bf16.mxu0 0
    %625 = vmatpush1.bf16.msra.mxu0 %v564
    %626 = vmatprep.subr.bf16.mxu0 0
    %627 = vmatpush1.bf16.msra.mxu0 %v567
    %628 = vmatprep.subr.bf16.mxu0 0
    %629 = vmatpush1.bf16.msra.mxu0 0
    %630 = vmatprep.subr.bf16.mxu0 0
    %631 = vmatpush1.bf16.msra.mxu0 0
    %632 = vmatprep.subr.bf16.mxu0 0
    %633 = vmatpush1.bf16.msra.mxu0 0
    %634 = vmatprep.subr.bf16.mxu0 0
    %635 = vmatpush1.bf16.msra.mxu0 0
    %636 = vmatprep.subr.bf16.mxu0 0
    %637 = vmatpush1.bf16.msra.mxu0 0
    %638 = vmatprep.subr.bf16.mxu0 0
    %639 = vmatpush1.bf16.msra.mxu0 0
    %640 = vmatprep.subr.bf16.mxu0 0
    %641 = vmatpush1.bf16.msra.mxu0 0
    %642 = vmatprep.subr.bf16.mxu0 0
    %643 = vmatpush1.bf16.msra.mxu0 0
    %644 = vmatprep.subr.bf16.mxu0 0
    %645 = vmatpush1.bf16.msra.mxu0 0
    %646 = vmatprep.subr.bf16.mxu0 0
    %647 = vmatpush1.bf16.msra.mxu0 0
    %648 = vmatprep.subr.bf16.mxu0 0
    %649 = vmatpush1.bf16.msra.mxu0 0
    %650 = vmatprep.subr.bf16.mxu0 0
    %651 = vmatpush1.bf16.msra.mxu0 0
    %652 = vmatprep.subr.bf16.mxu0 0
    %653 = vmatpush1.bf16.msra.mxu0 0
    %654 = vmatprep.mubr.bf16.mxu0 0
    %655 = vmatmul.mubr.bf16.gmra.mrb[0].mxu0 %v579
    %v656 = vpop.f32.mrb[0].mxu0
    %v657 = vadd.f32 %v525, %v656
    %v658 = vpop.f32.mrb[0].mxu0
    %v659 = vpop.f32.mrb[0].mxu0
    %v660 = vpop.f32.mrb[0].mxu0
    %661 = vdwg.mxu0
    %v662 = vld [vmem:[%s9] sm:$0xf]
    %v663 = vld [vmem:[%s9 + $0x4] sm:$0xf]
    %v664 = vld [vmem:[%s9 + $0x8] sm:$0xf]
    %v665 = vld [vmem:[%s9 + $0xc] sm:$0xf]
    %v666 = vld [vmem:[%s9 + $0x10] sm:$0xf]
    %v667 = vld [vmem:[%s9 + $0x14] sm:$0xf]
    %v668 = vld [vmem:[%s9 + $0x18] sm:$0xf]
    %v669 = vld [vmem:[%s9 + $0x1c] sm:$0xf]
    %v670 = vld [vmem:[%s9 + $0x20] sm:$0xf]
    %v671 = vld [vmem:[%s9 + $0x24] sm:$0xf]
    %v672 = vld [vmem:[%s9 + $0x28] sm:$0xf]
    %v673 = vld [vmem:[%s9 + $0x2c] sm:$0xf]
    %v674 = vld [vmem:[%s9 + $0x30] sm:$0xf]
    %v675 = vld [vmem:[%s9 + $0x34] sm:$0xf]
    %v676 = vld [vmem:[%s9 + $0x38] sm:$0xf]
    %v677 = vld [vmem:[%s9 + $0x3c] sm:$0xf]
    %v678 = vld [vmem:[%s9 + $0x40] sm:$0xf]
    %v679 = vld [vmem:[%s9 + $0x44] sm:$0xf]
    %v680 = vld [vmem:[%s9 + $0x48] sm:$0xf]
    %v681 = vld [vmem:[%s9 + $0x4c] sm:$0xf]
    %v682 = vld [vmem:[%s9 + $0x50] sm:$0xf]
    %v683 = vld [vmem:[%s9 + $0x54] sm:$0xf]
    %v684 = vld [vmem:[%s9 + $0x58] sm:$0xf]
    %v685 = vld [vmem:[%s9 + $0x5c] sm:$0xf]
    %v686 = vld [vmem:[%s9 + $0x60] sm:$0xf]
    %v687 = vld [vmem:[%s9 + $0x64] sm:$0xf]
    %v688 = vld [vmem:[%s9 + $0x68] sm:$0xf]
    %v689 = vld [vmem:[%s9 + $0x6c] sm:$0xf]
    %v690 = vld [vmem:[%s9 + $0x70] sm:$0xf]
    %v691 = vld [vmem:[%s9 + $0x74] sm:$0xf]
    %v692 = vld [vmem:[%s9 + $0x78] sm:$0xf]
    %v693 = vld [vmem:[%s9 + $0x7c] sm:$0xf]
    %v694 = vld [vmem:[%s9 + $0x80] sm:$0xf]
    %v695 = vld [vmem:[%s9 + $0x84] sm:$0xf]
    %v696 = vld [vmem:[%s9 + $0x88] sm:$0xf]
    %v697 = vld [vmem:[%s9 + $0x8c] sm:$0xf]
    %v698 = vld [vmem:[%s9 + $0x90] sm:$0xf]
    %v699 = vld [vmem:[%s9 + $0x94] sm:$0xf]
    %v700 = vld [vmem:[%s9 + $0x98] sm:$0xf]
    %v701 = vld [vmem:[%s9 + $0x9c] sm:$0xf]
    %v702 = vld [vmem:[%s9 + $0xa0] sm:$0xf]
    %v703 = vld [vmem:[%s9 + $0xa4] sm:$0xf]
    %v704 = vld [vmem:[%s9 + $0xa8] sm:$0xf]
    %v705 = vld [vmem:[%s9 + $0xac] sm:$0xf]
    %v706 = vld [vmem:[%s9 + $0xb0] sm:$0xf]
    %v707 = vld [vmem:[%s9 + $0xb4] sm:$0xf]
    %v708 = vld [vmem:[%s9 + $0xb8] sm:$0xf]
    %v709 = vld [vmem:[%s9 + $0xbc] sm:$0xf]
    %v710 = vmul.f32 %v268, %v270
    %v711 = vpack.c.bf16 %v710, %v710
    %v712 = vmul.f32 %v452, %v270
    %v713 = vpack.c.bf16 %v712, %v712
    %v714 = vmul.f32 %v616, %v270
    %v715 = vpack.c.bf16 %v714, %v714
    %v764 = vunpack.c.l.b16 %v662
    %v765 = vunpack.c.l.b16 %v663
    %v766 = vunpack.c.l.b16 %v664
    %v767 = vunpack.c.l.b16 %v665
    %v768 = vunpack.c.l.b16 %v666
    %v769 = vunpack.c.l.b16 %v667
    %v770 = vunpack.c.l.b16 %v668
    %v771 = vunpack.c.l.b16 %v669
    %v772 = vunpack.c.l.b16 %v670
    %v773 = vunpack.c.l.b16 %v671
    %v774 = vunpack.c.l.b16 %v672
    %v775 = vunpack.c.l.b16 %v673
    %v776 = vunpack.c.l.b16 %v674
    %v777 = vunpack.c.l.b16 %v675
    %v778 = vunpack.c.l.b16 %v676
    %v779 = vunpack.c.l.b16 %v677
    %v780 = vunpack.c.l.b16 %v678
    %v781 = vunpack.c.l.b16 %v679
    %v782 = vunpack.c.l.b16 %v680
    %v783 = vunpack.c.l.b16 %v681
    %v784 = vunpack.c.l.b16 %v682
    %v785 = vunpack.c.l.b16 %v683
    %v786 = vunpack.c.l.b16 %v684
    %v787 = vunpack.c.l.b16 %v685
    %v788 = vunpack.c.l.b16 %v686
    %v789 = vunpack.c.l.b16 %v687
    %v790 = vunpack.c.l.b16 %v688
    %v791 = vunpack.c.l.b16 %v689
    %v792 = vunpack.c.l.b16 %v690
    %v793 = vunpack.c.l.b16 %v691
    %v794 = vunpack.c.l.b16 %v692
    %v795 = vunpack.c.l.b16 %v693
    %v796 = vunpack.c.l.b16 %v694
    %v797 = vunpack.c.l.b16 %v695
    %v798 = vunpack.c.l.b16 %v696
    %v799 = vunpack.c.l.b16 %v697
    %v800 = vunpack.c.l.b16 %v698
    %v801 = vunpack.c.l.b16 %v699
    %v802 = vunpack.c.l.b16 %v700
    %v803 = vunpack.c.l.b16 %v701
    %v804 = vunpack.c.l.b16 %v702
    %v805 = vunpack.c.l.b16 %v703
    %v806 = vunpack.c.l.b16 %v704
    %v807 = vunpack.c.l.b16 %v705
    %v808 = vunpack.c.l.b16 %v706
    %v809 = vunpack.c.l.b16 %v707
    %v810 = vunpack.c.l.b16 %v708
    %v811 = vunpack.c.l.b16 %v709
    %v812 = vpack.c.b16 %v765, %v764
    %v813 = vpack.c.b16 %v767, %v766
    %v814 = vpack.c.b16 %v769, %v768
    %v815 = vpack.c.b16 %v771, %v770
    %v816 = vpack.c.b16 %v773, %v772
    %v817 = vpack.c.b16 %v775, %v774
    %v818 = vpack.c.b16 %v777, %v776
    %v819 = vpack.c.b16 %v779, %v778
    %v820 = vpack.c.b16 %v781, %v780
    %v821 = vpack.c.b16 %v783, %v782
    %v822 = vpack.c.b16 %v785, %v784
    %v823 = vpack.c.b16 %v787, %v786
    %v824 = vpack.c.b16 %v789, %v788
    %v825 = vpack.c.b16 %v791, %v790
    %v826 = vpack.c.b16 %v793, %v792
    %v827 = vpack.c.b16 %v795, %v794
    %v828 = vpack.c.b16 %v797, %v796
    %v829 = vpack.c.b16 %v799, %v798
    %v830 = vpack.c.b16 %v801, %v800
    %v831 = vpack.c.b16 %v803, %v802
    %v832 = vpack.c.b16 %v805, %v804
    %v833 = vpack.c.b16 %v807, %v806
    %v834 = vpack.c.b16 %v809, %v808
    %v835 = vpack.c.b16 %v811, %v810
    %860 = vmatprep.subr.bf16.mxu0 0
    %861 = vmatpush1.bf16.msra.mxu0 %v812
    %862 = vmatprep.subr.bf16.mxu0 0
    %863 = vmatpush1.bf16.msra.mxu0 %v813
    %864 = vmatprep.subr.bf16.mxu0 0
    %865 = vmatpush1.bf16.msra.mxu0 %v814
    %866 = vmatprep.subr.bf16.mxu0 0
    %867 = vmatpush1.bf16.msra.mxu0 %v815
    %868 = vmatprep.subr.bf16.mxu0 0
    %869 = vmatpush1.bf16.msra.mxu0 %v816
    %870 = vmatprep.subr.bf16.mxu0 0
    %871 = vmatpush1.bf16.msra.mxu0 %v817
    %872 = vmatprep.subr.bf16.mxu0 0
    %873 = vmatpush1.bf16.msra.mxu0 %v818
    %874 = vmatprep.subr.bf16.mxu0 0
    %875 = vmatpush1.bf16.msra.mxu0 %v819
    %876 = vmatprep.subr.bf16.mxu0 0
    %877 = vmatpush1.bf16.msra.mxu0 %v820
    %878 = vmatprep.subr.bf16.mxu0 0
    %879 = vmatpush1.bf16.msra.mxu0 %v821
    %880 = vmatprep.subr.bf16.mxu0 0
    %881 = vmatpush1.bf16.msra.mxu0 %v822
    %882 = vmatprep.subr.bf16.mxu0 0
    %883 = vmatpush1.bf16.msra.mxu0 %v823
    %884 = vmatprep.subr.bf16.mxu0 0
    %885 = vmatpush1.bf16.msra.mxu0 %v824
    %886 = vmatprep.subr.bf16.mxu0 0
    %887 = vmatpush1.bf16.msra.mxu0 %v825
    %888 = vmatprep.subr.bf16.mxu0 0
    %889 = vmatpush1.bf16.msra.mxu0 %v826
    %890 = vmatprep.subr.bf16.mxu0 0
    %891 = vmatpush1.bf16.msra.mxu0 %v827
    %892 = vmatprep.mubr.bf16.mxu0 %v713
    %893 = vmatmul.mubr.bf16.gmra.mrb[0].mxu0 %v711
    %v894 = vpop.f32.mrb[0].mxu0
    %v895 = vadd.f32 0.0, %v894
    %v896 = vpop.f32.mrb[0].mxu0
    %v897 = vpop.f32.mrb[0].mxu0
    %v898 = vpop.f32.mrb[0].mxu0
    %899 = vdwg.mxu0
    %900 = vmatprep.subr.bf16.mxu0 0
    %901 = vmatpush1.bf16.msra.mxu0 %v828
    %902 = vmatprep.subr.bf16.mxu0 0
    %903 = vmatpush1.bf16.msra.mxu0 %v829
    %904 = vmatprep.subr.bf16.mxu0 0
    %905 = vmatpush1.bf16.msra.mxu0 %v830
    %906 = vmatprep.subr.bf16.mxu0 0
    %907 = vmatpush1.bf16.msra.mxu0 %v831
    %908 = vmatprep.subr.bf16.mxu0 0
    %909 = vmatpush1.bf16.msra.mxu0 %v832
    %910 = vmatprep.subr.bf16.mxu0 0
    %911 = vmatpush1.bf16.msra.mxu0 %v833
    %912 = vmatprep.subr.bf16.mxu0 0
    %913 = vmatpush1.bf16.msra.mxu0 %v834
    %914 = vmatprep.subr.bf16.mxu0 0
    %915 = vmatpush1.bf16.msra.mxu0 %v835
    %916 = vmatprep.subr.bf16.mxu0 0
    %917 = vmatpush1.bf16.msra.mxu0 0
    %918 = vmatprep.subr.bf16.mxu0 0
    %919 = vmatpush1.bf16.msra.mxu0 0
    %920 = vmatprep.subr.bf16.mxu0 0
    %921 = vmatpush1.bf16.msra.mxu0 0
    %922 = vmatprep.subr.bf16.mxu0 0
    %923 = vmatpush1.bf16.msra.mxu0 0
    %924 = vmatprep.subr.bf16.mxu0 0
    %925 = vmatpush1.bf16.msra.mxu0 0
    %926 = vmatprep.subr.bf16.mxu0 0
    %927 = vmatpush1.bf16.msra.mxu0 0
    %928 = vmatprep.subr.bf16.mxu0 0
    %929 = vmatpush1.bf16.msra.mxu0 0
    %930 = vmatprep.subr.bf16.mxu0 0
    %931 = vmatpush1.bf16.msra.mxu0 0
    %932 = vmatprep.mubr.bf16.mxu0 0
    %933 = vmatmul.mubr.bf16.gmra.mrb[0].mxu0 %v715
    %v934 = vpop.f32.mrb[0].mxu0
    %v935 = vadd.f32 %v895, %v934
    %v936 = vpop.f32.mrb[0].mxu0
    %v937 = vpop.f32.mrb[0].mxu0
    %v938 = vpop.f32.mrb[0].mxu0
    %939 = vdwg.mxu0
    %v940 = vmul.f32 %v268, %v454
    %v941 = vpack.c.bf16 %v940, %v940
    %v942 = vmul.f32 %v452, %v454
    %v943 = vpack.c.bf16 %v942, %v942
    %v944 = vmul.f32 %v616, %v454
    %v945 = vpack.c.bf16 %v944, %v944
    %946 = vmatprep.subr.bf16.mxu0 0
    %947 = vmatpush1.bf16.msra.mxu0 %v812
    %948 = vmatprep.subr.bf16.mxu0 0
    %949 = vmatpush1.bf16.msra.mxu0 %v813
    %950 = vmatprep.subr.bf16.mxu0 0
    %951 = vmatpush1.bf16.msra.mxu0 %v814
    %952 = vmatprep.subr.bf16.mxu0 0
    %953 = vmatpush1.bf16.msra.mxu0 %v815
    %954 = vmatprep.subr.bf16.mxu0 0
    %955 = vmatpush1.bf16.msra.mxu0 %v816
    %956 = vmatprep.subr.bf16.mxu0 0
    %957 = vmatpush1.bf16.msra.mxu0 %v817
    %958 = vmatprep.subr.bf16.mxu0 0
    %959 = vmatpush1.bf16.msra.mxu0 %v818
    %960 = vmatprep.subr.bf16.mxu0 0
    %961 = vmatpush1.bf16.msra.mxu0 %v819
    %962 = vmatprep.subr.bf16.mxu0 0
    %963 = vmatpush1.bf16.msra.mxu0 %v820
    %964 = vmatprep.subr.bf16.mxu0 0
    %965 = vmatpush1.bf16.msra.mxu0 %v821
    %966 = vmatprep.subr.bf16.mxu0 0
    %967 = vmatpush1.bf16.msra.mxu0 %v822
    %968 = vmatprep.subr.bf16.mxu0 0
    %969 = vmatpush1.bf16.msra.mxu0 %v823
    %970 = vmatprep.subr.bf16.mxu0 0
    %971 = vmatpush1.bf16.msra.mxu0 %v824
    %972 = vmatprep.subr.bf16.mxu0 0
    %973 = vmatpush1.bf16.msra.mxu0 %v825
    %974 = vmatprep.subr.bf16.mxu0 0
    %975 = vmatpush1.bf16.msra.mxu0 %v826
    %976 = vmatprep.subr.bf16.mxu0 0
    %977 = vmatpush1.bf16.msra.mxu0 %v827
    %978 = vmatprep.mubr.bf16.mxu0 %v943
    %979 = vmatmul.mubr.bf16.gmra.mrb[0].mxu0 %v941
    %v980 = vpop.f32.mrb[0].mxu0
    %v981 = vadd.f32 0.0, %v980
    %v982 = vpop.f32.mrb[0].mxu0
    %v983 = vpop.f32.mrb[0].mxu0
    %v984 = vpop.f32.mrb[0].mxu0
    %985 = vdwg.mxu0
    %986 = vmatprep.subr.bf16.mxu0 0
    %987 = vmatpush1.bf16.msra.mxu0 %v828
    %988 = vmatprep.subr.bf16.mxu0 0
    %989 = vmatpush1.bf16.msra.mxu0 %v829
    %990 = vmatprep.subr.bf16.mxu0 0
    %991 = vmatpush1.bf16.msra.mxu0 %v830
    %992 = vmatprep.subr.bf16.mxu0 0
    %993 = vmatpush1.bf16.msra.mxu0 %v831
    %994 = vmatprep.subr.bf16.mxu0 0
    %995 = vmatpush1.bf16.msra.mxu0 %v832
    %996 = vmatprep.subr.bf16.mxu0 0
    %997 = vmatpush1.bf16.msra.mxu0 %v833
    %998 = vmatprep.subr.bf16.mxu0 0
    %999 = vmatpush1.bf16.msra.mxu0 %v834
    %1000 = vmatprep.subr.bf16.mxu0 0
    %1001 = vmatpush1.bf16.msra.mxu0 %v835
    %1002 = vmatprep.subr.bf16.mxu0 0
    %1003 = vmatpush1.bf16.msra.mxu0 0
    %1004 = vmatprep.subr.bf16.mxu0 0
    %1005 = vmatpush1.bf16.msra.mxu0 0
    %1006 = vmatprep.subr.bf16.mxu0 0
    %1007 = vmatpush1.bf16.msra.mxu0 0
    %1008 = vmatprep.subr.bf16.mxu0 0
    %1009 = vmatpush1.bf16.msra.mxu0 0
    %1010 = vmatprep.subr.bf16.mxu0 0
    %1011 = vmatpush1.bf16.msra.mxu0 0
    %1012 = vmatprep.subr.bf16.mxu0 0
    %1013 = vmatpush1.bf16.msra.mxu0 0
    %1014 = vmatprep.subr.bf16.mxu0 0
    %1015 = vmatpush1.bf16.msra.mxu0 0
    %1016 = vmatprep.subr.bf16.mxu0 0
    %1017 = vmatpush1.bf16.msra.mxu0 0
    %1018 = vmatprep.mubr.bf16.mxu0 0
    %1019 = vmatmul.mubr.bf16.gmra.mrb[0].mxu0 %v945
    %v1020 = vpop.f32.mrb[0].mxu0
    %v1021 = vadd.f32 %v981, %v1020
    %v1022 = vpop.f32.mrb[0].mxu0
    %v1023 = vpop.f32.mrb[0].mxu0
    %v1024 = vpop.f32.mrb[0].mxu0
    %1025 = vdwg.mxu0
    %v1026 = vmul.f32 %v268, %v618
    %v1027 = vpack.c.bf16 %v1026, %v1026
    %v1028 = vmul.f32 %v452, %v618
    %v1029 = vpack.c.bf16 %v1028, %v1028
    %v1030 = vmul.f32 %v616, %v618
    %v1031 = vpack.c.bf16 %v1030, %v1030
    %1032 = vmatprep.subr.bf16.mxu0 0
    %1033 = vmatpush1.bf16.msra.mxu0 %v812
    %1034 = vmatprep.subr.bf16.mxu0 0
    %1035 = vmatpush1.bf16.msra.mxu0 %v813
    %1036 = vmatprep.subr.bf16.mxu0 0
    %1037 = vmatpush1.bf16.msra.mxu0 %v814
    %1038 = vmatprep.subr.bf16.mxu0 0
    %1039 = vmatpush1.bf16.msra.mxu0 %v815
    %1040 = vmatprep.subr.bf16.mxu0 0
    %1041 = vmatpush1.bf16.msra.mxu0 %v816
    %1042 = vmatprep.subr.bf16.mxu0 0
    %1043 = vmatpush1.bf16.msra.mxu0 %v817
    %1044 = vmatprep.subr.bf16.mxu0 0
    %1045 = vmatpush1.bf16.msra.mxu0 %v818
    %1046 = vmatprep.subr.bf16.mxu0 0
    %1047 = vmatpush1.bf16.msra.mxu0 %v819
    %1048 = vmatprep.subr.bf16.mxu0 0
    %1049 = vmatpush1.bf16.msra.mxu0 %v820
    %1050 = vmatprep.subr.bf16.mxu0 0
    %1051 = vmatpush1.bf16.msra.mxu0 %v821
    %1052 = vmatprep.subr.bf16.mxu0 0
    %1053 = vmatpush1.bf16.msra.mxu0 %v822
    %1054 = vmatprep.subr.bf16.mxu0 0
    %1055 = vmatpush1.bf16.msra.mxu0 %v823
    %1056 = vmatprep.subr.bf16.mxu0 0
    %1057 = vmatpush1.bf16.msra.mxu0 %v824
    %1058 = vmatprep.subr.bf16.mxu0 0
    %1059 = vmatpush1.bf16.msra.mxu0 %v825
    %1060 = vmatprep.subr.bf16.mxu0 0
    %1061 = vmatpush1.bf16.msra.mxu0 %v826
    %1062 = vmatprep.subr.bf16.mxu0 0
    %1063 = vmatpush1.bf16.msra.mxu0 %v827
    %1064 = vmatprep.mubr.bf16.mxu0 %v1029
    %1065 = vmatmul.mubr.bf16.gmra.mrb[0].mxu0 %v1027
    %v1066 = vpop.f32.mrb[0].mxu0
    %v1067 = vadd.f32 0.0, %v1066
    %v1068 = vpop.f32.mrb[0].mxu0
    %v1069 = vpop.f32.mrb[0].mxu0
    %v1070 = vpop.f32.mrb[0].mxu0
    %1071 = vdwg.mxu0
    %1072 = vmatprep.subr.bf16.mxu0 0
    %1073 = vmatpush1.bf16.msra.mxu0 %v828
    %1074 = vmatprep.subr.bf16.mxu0 0
    %1075 = vmatpush1.bf16.msra.mxu0 %v829
    %1076 = vmatprep.subr.bf16.mxu0 0
    %1077 = vmatpush1.bf16.msra.mxu0 %v830
    %1078 = vmatprep.subr.bf16.mxu0 0
    %1079 = vmatpush1.bf16.msra.mxu0 %v831
    %1080 = vmatprep.subr.bf16.mxu0 0
    %1081 = vmatpush1.bf16.msra.mxu0 %v832
    %1082 = vmatprep.subr.bf16.mxu0 0
    %1083 = vmatpush1.bf16.msra.mxu0 %v833
    %1084 = vmatprep.subr.bf16.mxu0 0
    %1085 = vmatpush1.bf16.msra.mxu0 %v834
    %1086 = vmatprep.subr.bf16.mxu0 0
    %1087 = vmatpush1.bf16.msra.mxu0 %v835
    %1088 = vmatprep.subr.bf16.mxu0 0
    %1089 = vmatpush1.bf16.msra.mxu0 0
    %1090 = vmatprep.subr.bf16.mxu0 0
    %1091 = vmatpush1.bf16.msra.mxu0 0
    %1092 = vmatprep.subr.bf16.mxu0 0
    %1093 = vmatpush1.bf16.msra.mxu0 0
    %1094 = vmatprep.subr.bf16.mxu0 0
    %1095 = vmatpush1.bf16.msra.mxu0 0
    %1096 = vmatprep.subr.bf16.mxu0 0
    %1097 = vmatpush1.bf16.msra.mxu0 0
    %1098 = vmatprep.subr.bf16.mxu0 0
    %1099 = vmatpush1.bf16.msra.mxu0 0
    %1100 = vmatprep.subr.bf16.mxu0 0
    %1101 = vmatpush1.bf16.msra.mxu0 0
    %1102 = vmatprep.subr.bf16.mxu0 0
    %1103 = vmatpush1.bf16.msra.mxu0 0
    %1104 = vmatprep.mubr.bf16.mxu0 0
    %1105 = vmatmul.mubr.bf16.gmra.mrb[0].mxu0 %v1031
    %v1106 = vpop.f32.mrb[0].mxu0
    %v1107 = vadd.f32 %v1067, %v1106
    %v1108 = vpop.f32.mrb[0].mxu0
    %v1109 = vpop.f32.mrb[0].mxu0
    %v1110 = vpop.f32.mrb[0].mxu0
    %1111 = vdwg.mxu0
    %v1112 = vmax.f32 %v935, %v1021
    %v1113 = vmax.f32 %v1112, %v1107
    %v1114 = vsub.f32 %v935, %v1113
    %v1115 = vmul.f32 %v1114, 1.442695
    %v1116 = vpow.pop %v1115
    %v1117 = vsub.f32 %v1021, %v1113
    %v1118 = vmul.f32 %v1117, 1.442695
    %v1119 = vpow.pop %v1118
    %v1120 = vsub.f32 %v1107, %v1113
    %v1121 = vmul.f32 %v1120, 1.442695
    %v1122 = vpow.pop %v1121
    %v1123 = vadd.f32 %v1116, %v1119
    %v1124 = vadd.f32 %v1123, %v1122
    %v1125 = vrcp.pop %v1124
    %v1126 = vmul.f32 %v1116, %v1125
    %v1127 = vmul.f32 %v1119, %v1125
    %v1128 = vmul.f32 %v1122, %v1125
    %1130 = vrot.lane.b32.xlu0 %v1127, 24
    %v1131 = vpop.permute.xlu0 %1130
    %1134 = vrot.lane.b32.xlu0 %v1128, 48
    %v1135 = vpop.permute.xlu0 %1134
    %vm1137 = vcmask 195584
    %v1138 = vsel %vm1137, %v1126, %v1131
    %v1139 = vsel %vm577, %v1138, %v1135
    %v1140 = vpack.c.bf16 %v1139, %v1139
    %v1141 = vld [vmem:[%s10] sm:$0xff]
    %v1142 = vld [vmem:[%s10 + $0x8] sm:$0xf]
    %v1143 = vld [vmem:[%s10 + $0xc] sm:$0xff]
    %v1144 = vld [vmem:[%s10 + $0x14] sm:$0xf]
    %v1145 = vld [vmem:[%s10 + $0x18] sm:$0xff]
    %v1146 = vld [vmem:[%s10 + $0x20] sm:$0xf]
    %v1147 = vld [vmem:[%s10 + $0x24] sm:$0xff]
    %v1148 = vld [vmem:[%s10 + $0x2c] sm:$0xf]
    %v1149 = vld [vmem:[%s10 + $0x30] sm:$0xff]
    %v1150 = vld [vmem:[%s10 + $0x38] sm:$0xf]
    %v1151 = vld [vmem:[%s10 + $0x3c] sm:$0xff]
    %v1152 = vld [vmem:[%s10 + $0x44] sm:$0xf]
    %v1153 = vld [vmem:[%s10 + $0x48] sm:$0xff]
    %v1154 = vld [vmem:[%s10 + $0x50] sm:$0xf]
    %v1155 = vld [vmem:[%s10 + $0x54] sm:$0xff]
    %v1156 = vld [vmem:[%s10 + $0x5c] sm:$0xf]
    %v1157 = vld [vmem:[%s10 + $0x60] sm:$0xff]
    %v1158 = vld [vmem:[%s10 + $0x68] sm:$0xf]
    %v1159 = vld [vmem:[#allocation14] sm:$0xff]
    %v1160 = vld [vmem:[#allocation14 + $0x8] sm:$0xf]
    %v1161 = vld [vmem:[#allocation14 + $0xc] sm:$0xff]
    %v1162 = vld [vmem:[#allocation14 + $0x14] sm:$0xf]
    %v1163 = vld [vmem:[#allocation14 + $0x18] sm:$0xff]
    %v1164 = vld [vmem:[#allocation14 + $0x20] sm:$0xf]
    %v1165 = vld [vmem:[#allocation14 + $0x24] sm:$0xff]
    %v1166 = vld [vmem:[#allocation14 + $0x2c] sm:$0xf]
    %v1167 = vld [vmem:[#allocation14 + $0x30] sm:$0xff]
    %v1168 = vld [vmem:[#allocation14 + $0x38] sm:$0xf]
    %v1169 = vld [vmem:[#allocation14 + $0x3c] sm:$0xff]
    %v1170 = vld [vmem:[#allocation14 + $0x44] sm:$0xf]
    %v1171 = vld [vmem:[#allocation14 + $0x48] sm:$0xff]
    %v1172 = vld [vmem:[#allocation14 + $0x50] sm:$0xf]
    %v1173 = vld [vmem:[#allocation14 + $0x54] sm:$0xff]
    %v1174 = vld [vmem:[#allocation14 + $0x5c] sm:$0xf]
    %v1175 = vld [vmem:[#allocation14 + $0x60] sm:$0xff]
    %v1176 = vld [vmem:[#allocation14 + $0x68] sm:$0xf]
    %v1177 = vld [vmem:[#allocation16] sm:$0xff]
    %v1178 = vld [vmem:[#allocation16 + $0x8] sm:$0xf]
    %v1179 = vld [vmem:[#allocation16 + $0xc] sm:$0xff]
    %v1180 = vld [vmem:[#allocation16 + $0x14] sm:$0xf]
    %v1181 = vld [vmem:[#allocation16 + $0x18] sm:$0xff]
    %v1182 = vld [vmem:[#allocation16 + $0x20] sm:$0xf]
    %v1183 = vld [vmem:[#allocation16 + $0x24] sm:$0xff]
    %v1184 = vld [vmem:[#allocation16 + $0x2c] sm:$0xf]
    %v1185 = vld [vmem:[#allocation16 + $0x30] sm:$0xff]
    %v1186 = vld [vmem:[#allocation16 + $0x38] sm:$0xf]
    %v1187 = vld [vmem:[#allocation16 + $0x3c] sm:$0xff]
    %v1188 = vld [vmem:[#allocation16 + $0x44] sm:$0xf]
    %v1189 = vld [vmem:[#allocation16 + $0x48] sm:$0xff]
    %v1190 = vld [vmem:[#allocation16 + $0x50] sm:$0xf]
    %v1191 = vld [vmem:[#allocation16 + $0x54] sm:$0xff]
    %v1192 = vld [vmem:[#allocation16 + $0x5c] sm:$0xf]
    %v1193 = vld [vmem:[#allocation16 + $0x60] sm:$0xff]
    %v1194 = vld [vmem:[#allocation16 + $0x68] sm:$0xf]
    %v1213 = vunpack.c.l.b16 %v1141
    %v1214 = vunpack.c.h.b16 %v1141
    %v1215 = vunpack.c.l.b16 %v1142
    %v1216 = vunpack.c.l.b16 %v1143
    %v1217 = vunpack.c.h.b16 %v1143
    %v1218 = vunpack.c.l.b16 %v1144
    %v1219 = vunpack.c.l.b16 %v1145
    %v1220 = vunpack.c.h.b16 %v1145
    %v1221 = vunpack.c.l.b16 %v1146
    %v1222 = vunpack.c.l.b16 %v1147
    %v1223 = vunpack.c.h.b16 %v1147
    %v1224 = vunpack.c.l.b16 %v1148
    %v1225 = vunpack.c.l.b16 %v1149
    %v1226 = vunpack.c.h.b16 %v1149
    %v1227 = vunpack.c.l.b16 %v1150
    %v1228 = vunpack.c.l.b16 %v1151
    %v1229 = vunpack.c.h.b16 %v1151
    %v1230 = vunpack.c.l.b16 %v1152
    %v1231 = vunpack.c.l.b16 %v1153
    %v1232 = vunpack.c.h.b16 %v1153
    %v1233 = vunpack.c.l.b16 %v1154
    %v1234 = vunpack.c.l.b16 %v1155
    %v1235 = vunpack.c.h.b16 %v1155
    %v1236 = vunpack.c.l.b16 %v1156
    %v1237 = vunpack.c.l.b16 %v1157
    %v1238 = vunpack.c.h.b16 %v1157
    %v1239 = vunpack.c.l.b16 %v1158
    %v1240 = vpack.c.b16 %v1216, %v1213
    %v1241 = vpack.c.b16 %v1217, %v1214
    %v1242 = vpack.c.b16 %v1218, %v1215
    %v1243 = vpack.c.b16 %v1222, %v1219
    %v1244 = vpack.c.b16 %v1223, %v1220
    %v1245 = vpack.c.b16 %v1224, %v1221
    %v1246 = vpack.c.b16 %v1228, %v1225
    %v1247 = vpack.c.b16 %v1229, %v1226
    %v1248 = vpack.c.b16 %v1230, %v1227
    %v1249 = vpack.c.b16 %v1234, %v1231
    %v1250 = vpack.c.b16 %v1235, %v1232
    %v1251 = vpack.c.b16 %v1236, %v1233
    %v1252 = vpack.c.b16 %v1237, %v1237
    %v1253 = vpack.c.b16 %v1238, %v1238
    %v1254 = vpack.c.b16 %v1239, %v1239
    %vm1267 = vcmask 588800
    %v1269 = vsel %vm1267, %v1140, 0
    %vm1271 = vcmask 1043456
    %v1273 = vsel %vm1271, %v1252, 0
    %v1276 = vsel %vm1271, %v1253, 0
    %v1279 = vsel %vm1271, %v1254, 0
    %1281 = vmatprep.subr.bf16.mxu0 %v1241
    %1282 = vmatpush1.bf16.msra.mxu0 %v1240
    %1283 = vmatprep.subr.bf16.mxu0 %v1244
    %1284 = vmatpush1.bf16.msra.mxu0 %v1243
    %1285 = vmatprep.subr.bf16.mxu0 %v1247
    %1286 = vmatpush1.bf16.msra.mxu0 %v1246
    %1287 = vmatprep.subr.bf16.mxu0 %v1250
    %1288 = vmatpush1.bf16.msra.mxu0 %v1249
    %1289 = vmatprep.subr.bf16.mxu0 %v1276
    %1290 = vmatpush1.bf16.msra.mxu0 %v1273
    %1291 = vmatprep.subr.bf16.mxu0 0
    %1292 = vmatpush1.bf16.msra.mxu0 0
    %1293 = vmatprep.subr.bf16.mxu0 0
    %1294 = vmatpush1.bf16.msra.mxu0 0
    %1295 = vmatprep.subr.bf16.mxu0 0
    %1296 = vmatpush1.bf16.msra.mxu0 0
    %1297 = vmatprep.subr.bf16.mxu0 0
    %1298 = vmatpush1.bf16.msra.mxu0 0
    %1299 = vmatprep.subr.bf16.mxu0 0
    %1300 = vmatpush1.bf16.msra.mxu0 0
    %1301 = vmatprep.subr.bf16.mxu0 0
    %1302 = vmatpush1.bf16.msra.mxu0 0
    %1303 = vmatprep.subr.bf16.mxu0 0
    %1304 = vmatpush1.bf16.msra.mxu0 0
    %1305 = vmatprep.subr.bf16.mxu0 0
    %1306 = vmatpush1.bf16.msra.mxu0 0
    %1307 = vmatprep.subr.bf16.mxu0 0
    %1308 = vmatpush1.bf16.msra.mxu0 0
    %1309 = vmatprep.subr.bf16.mxu0 0
    %1310 = vmatpush1.bf16.msra.mxu0 0
    %1311 = vmatprep.subr.bf16.mxu0 0
    %1312 = vmatpush1.bf16.msra.mxu0 0
    %1313 = vmatprep.mubr.bf16.mxu0 0
    %1314 = vmatmul.mubr.bf16.gmra.mrb[0].mxu0 %v1269
    %v1315 = vpop.f32.mrb[0].mxu0
    %v1316 = vadd.f32 0.0, %v1315
    %v1317 = vpop.f32.mrb[0].mxu0
    %v1318 = vadd.f32 0.0, %v1317
    %v1319 = vpop.f32.mrb[0].mxu0
    %v1320 = vpop.f32.mrb[0].mxu0
    %1321 = vdwg.mxu0
    %1322 = vmatprep.subr.bf16.mxu0 0
    %1323 = vmatpush1.bf16.msra.mxu0 %v1242
    %1324 = vmatprep.subr.bf16.mxu0 0
    %1325 = vmatpush1.bf16.msra.mxu0 %v1245
    %1326 = vmatprep.subr.bf16.mxu0 0
    %1327 = vmatpush1.bf16.msra.mxu0 %v1248
    %1328 = vmatprep.subr.bf16.mxu0 0
    %1329 = vmatpush1.bf16.msra.mxu0 %v1251
    %1330 = vmatprep.subr.bf16.mxu0 0
    %1331 = vmatpush1.bf16.msra.mxu0 %v1279
    %1332 = vmatprep.subr.bf16.mxu0 0
    %1333 = vmatpush1.bf16.msra.mxu0 0
    %1334 = vmatprep.subr.bf16.mxu0 0
    %1335 = vmatpush1.bf16.msra.mxu0 0
    %1336 = vmatprep.subr.bf16.mxu0 0
    %1337 = vmatpush1.bf16.msra.mxu0 0
    %1338 = vmatprep.subr.bf16.mxu0 0
    %1339 = vmatpush1.bf16.msra.mxu0 0
    %1340 = vmatprep.subr.bf16.mxu0 0
    %1341 = vmatpush1.bf16.msra.mxu0 0
    %1342 = vmatprep.subr.bf16.mxu0 0
    %1343 = vmatpush1.bf16.msra.mxu0 0
    %1344 = vmatprep.subr.bf16.mxu0 0
    %1345 = vmatpush1.bf16.msra.mxu0 0
    %1346 = vmatprep.subr.bf16.mxu0 0
    %1347 = vmatpush1.bf16.msra.mxu0 0
    %1348 = vmatprep.subr.bf16.mxu0 0
    %1349 = vmatpush1.bf16.msra.mxu0 0
    %1350 = vmatprep.subr.bf16.mxu0 0
    %1351 = vmatpush1.bf16.msra.mxu0 0
    %1352 = vmatprep.subr.bf16.mxu0 0
    %1353 = vmatpush1.bf16.msra.mxu0 0
    %1354 = vmatprep.mubr.bf16.mxu0 0
    %1355 = vmatmul.mubr.bf16.gmra.mrb[0].mxu0 %v1269
    %v1356 = vpop.f32.mrb[0].mxu0
    %v1357 = vadd.f32 0.0, %v1356
    %v1358 = vpop.f32.mrb[0].mxu0
    %v1359 = vpop.f32.mrb[0].mxu0
    %v1360 = vpop.f32.mrb[0].mxu0
    %1361 = vdwg.mxu0
    %v1362 = vmul.f32 %v1316, %v309
    %v1363 = vmul.f32 %v1318, %v493
    %v1364 = vmul.f32 %v1357, %v657
    %v1365 = vadd.f32 %v1362, %v1363
    %v1366 = vadd.f32 %v1365, %v1364
    %v1367 = vpack.c.bf16 %v1366, %v1366
    %v1386 = vunpack.c.l.b16 %v1159
    %v1387 = vunpack.c.h.b16 %v1159
    %v1388 = vunpack.c.l.b16 %v1160
    %v1389 = vunpack.c.l.b16 %v1161
    %v1390 = vunpack.c.h.b16 %v1161
    %v1391 = vunpack.c.l.b16 %v1162
    %v1392 = vunpack.c.l.b16 %v1163
    %v1393 = vunpack.c.h.b16 %v1163
    %v1394 = vunpack.c.l.b16 %v1164
    %v1395 = vunpack.c.l.b16 %v1165
    %v1396 = vunpack.c.h.b16 %v1165
    %v1397 = vunpack.c.l.b16 %v1166
    %v1398 = vunpack.c.l.b16 %v1167
    %v1399 = vunpack.c.h.b16 %v1167
    %v1400 = vunpack.c.l.b16 %v1168
    %v1401 = vunpack.c.l.b16 %v1169
    %v1402 = vunpack.c.h.b16 %v1169
    %v1403 = vunpack.c.l.b16 %v1170
    %v1404 = vunpack.c.l.b16 %v1171
    %v1405 = vunpack.c.h.b16 %v1171
    %v1406 = vunpack.c.l.b16 %v1172
    %v1407 = vunpack.c.l.b16 %v1173
    %v1408 = vunpack.c.h.b16 %v1173
    %v1409 = vunpack.c.l.b16 %v1174
    %v1410 = vunpack.c.l.b16 %v1175
    %v1411 = vunpack.c.h.b16 %v1175
    %v1412 = vunpack.c.l.b16 %v1176
    %v1413 = vpack.c.b16 %v1389, %v1386
    %v1414 = vpack.c.b16 %v1390, %v1387
    %v1415 = vpack.c.b16 %v1391, %v1388
    %v1416 = vpack.c.b16 %v1395, %v1392
    %v1417 = vpack.c.b16 %v1396, %v1393
    %v1418 = vpack.c.b16 %v1397, %v1394
    %v1419 = vpack.c.b16 %v1401, %v1398
    %v1420 = vpack.c.b16 %v1402, %v1399
    %v1421 = vpack.c.b16 %v1403, %v1400
    %v1422 = vpack.c.b16 %v1407, %v1404
    %v1423 = vpack.c.b16 %v1408, %v1405
    %v1424 = vpack.c.b16 %v1409, %v1406
    %v1425 = vpack.c.b16 %v1410, %v1410
    %v1426 = vpack.c.b16 %v1411, %v1411
    %v1427 = vpack.c.b16 %v1412, %v1412
    %v1441 = vsel %vm1271, %v1425, 0
    %v1444 = vsel %vm1271, %v1426, 0
    %v1447 = vsel %vm1271, %v1427, 0
    %1449 = vmatprep.subr.bf16.mxu0 %v1414
    %1450 = vmatpush1.bf16.msra.mxu0 %v1413
    %1451 = vmatprep.subr.bf16.mxu0 %v1417
    %1452 = vmatpush1.bf16.msra.mxu0 %v1416
    %1453 = vmatprep.subr.bf16.mxu0 %v1420
    %1454 = vmatpush1.bf16.msra.mxu0 %v1419
    %1455 = vmatprep.subr.bf16.mxu0 %v1423
    %1456 = vmatpush1.bf16.msra.mxu0 %v1422
    %1457 = vmatprep.subr.bf16.mxu0 %v1444
    %1458 = vmatpush1.bf16.msra.mxu0 %v1441
    %1459 = vmatprep.subr.bf16.mxu0 0
    %1460 = vmatpush1.bf16.msra.mxu0 0
    %1461 = vmatprep.subr.bf16.mxu0 0
    %1462 = vmatpush1.bf16.msra.mxu0 0
    %1463 = vmatprep.subr.bf16.mxu0 0
    %1464 = vmatpush1.bf16.msra.mxu0 0
    %1465 = vmatprep.subr.bf16.mxu0 0
    %1466 = vmatpush1.bf16.msra.mxu0 0
    %1467 = vmatprep.subr.bf16.mxu0 0
    %1468 = vmatpush1.bf16.msra.mxu0 0
    %1469 = vmatprep.subr.bf16.mxu0 0
    %1470 = vmatpush1.bf16.msra.mxu0 0
    %1471 = vmatprep.subr.bf16.mxu0 0
    %1472 = vmatpush1.bf16.msra.mxu0 0
    %1473 = vmatprep.subr.bf16.mxu0 0
    %1474 = vmatpush1.bf16.msra.mxu0 0
    %1475 = vmatprep.subr.bf16.mxu0 0
    %1476 = vmatpush1.bf16.msra.mxu0 0
    %1477 = vmatprep.subr.bf16.mxu0 0
    %1478 = vmatpush1.bf16.msra.mxu0 0
    %1479 = vmatprep.subr.bf16.mxu0 0
    %1480 = vmatpush1.bf16.msra.mxu0 0
    %1481 = vmatprep.mubr.bf16.mxu0 0
    %1482 = vmatmul.mubr.bf16.gmra.mrb[0].mxu0 %v1269
    %v1483 = vpop.f32.mrb[0].mxu0
    %v1484 = vadd.f32 0.0, %v1483
    %v1485 = vpop.f32.mrb[0].mxu0
    %v1486 = vadd.f32 0.0, %v1485
    %v1487 = vpop.f32.mrb[0].mxu0
    %v1488 = vpop.f32.mrb[0].mxu0
    %1489 = vdwg.mxu0
    %1490 = vmatprep.subr.bf16.mxu0 0
    %1491 = vmatpush1.bf16.msra.mxu0 %v1415
    %1492 = vmatprep.subr.bf16.mxu0 0
    %1493 = vmatpush1.bf16.msra.mxu0 %v1418
    %1494 = vmatprep.subr.bf16.mxu0 0
    %1495 = vmatpush1.bf16.msra.mxu0 %v1421
    %1496 = vmatprep.subr.bf16.mxu0 0
    %1497 = vmatpush1.bf16.msra.mxu0 %v1424
    %1498 = vmatprep.subr.bf16.mxu0 0
    %1499 = vmatpush1.bf16.msra.mxu0 %v1447
    %1500 = vmatprep.subr.bf16.mxu0 0
    %1501 = vmatpush1.bf16.msra.mxu0 0
    %1502 = vmatprep.subr.bf16.mxu0 0
    %1503 = vmatpush1.bf16.msra.mxu0 0
    %1504 = vmatprep.subr.bf16.mxu0 0
    %1505 = vmatpush1.bf16.msra.mxu0 0
    %1506 = vmatprep.subr.bf16.mxu0 0
    %1507 = vmatpush1.bf16.msra.mxu0 0
    %1508 = vmatprep.subr.bf16.mxu0 0
    %1509 = vmatpush1.bf16.msra.mxu0 0
    %1510 = vmatprep.subr.bf16.mxu0 0
    %1511 = vmatpush1.bf16.msra.mxu0 0
    %1512 = vmatprep.subr.bf16.mxu0 0
    %1513 = vmatpush1.bf16.msra.mxu0 0
    %1514 = vmatprep.subr.bf16.mxu0 0
    %1515 = vmatpush1.bf16.msra.mxu0 0
    %1516 = vmatprep.subr.bf16.mxu0 0
    %1517 = vmatpush1.bf16.msra.mxu0 0
    %1518 = vmatprep.subr.bf16.mxu0 0
    %1519 = vmatpush1.bf16.msra.mxu0 0
    %1520 = vmatprep.subr.bf16.mxu0 0
    %1521 = vmatpush1.bf16.msra.mxu0 0
    %1522 = vmatprep.mubr.bf16.mxu0 0
    %1523 = vmatmul.mubr.bf16.gmra.mrb[0].mxu0 %v1269
    %v1524 = vpop.f32.mrb[0].mxu0
    %v1525 = vadd.f32 0.0, %v1524
    %v1526 = vpop.f32.mrb[0].mxu0
    %v1527 = vpop.f32.mrb[0].mxu0
    %v1528 = vpop.f32.mrb[0].mxu0
    %1529 = vdwg.mxu0
    %v1530 = vmul.f32 %v1484, %v309
    %v1531 = vmul.f32 %v1486, %v493
    %v1532 = vmul.f32 %v1525, %v657
    %v1533 = vadd.f32 %v1530, %v1531
    %v1534 = vadd.f32 %v1533, %v1532
    %v1535 = vpack.c.bf16 %v1534, %v1534
    %v1554 = vunpack.c.l.b16 %v1177
    %v1555 = vunpack.c.h.b16 %v1177
    %v1556 = vunpack.c.l.b16 %v1178
    %v1557 = vunpack.c.l.b16 %v1179
    %v1558 = vunpack.c.h.b16 %v1179
    %v1559 = vunpack.c.l.b16 %v1180
    %v1560 = vunpack.c.l.b16 %v1181
    %v1561 = vunpack.c.h.b16 %v1181
    %v1562 = vunpack.c.l.b16 %v1182
    %v1563 = vunpack.c.l.b16 %v1183
    %v1564 = vunpack.c.h.b16 %v1183
    %v1565 = vunpack.c.l.b16 %v1184
    %v1566 = vunpack.c.l.b16 %v1185
    %v1567 = vunpack.c.h.b16 %v1185
    %v1568 = vunpack.c.l.b16 %v1186
    %v1569 = vunpack.c.l.b16 %v1187
    %v1570 = vunpack.c.h.b16 %v1187
    %v1571 = vunpack.c.l.b16 %v1188
    %v1572 = vunpack.c.l.b16 %v1189
    %v1573 = vunpack.c.h.b16 %v1189
    %v1574 = vunpack.c.l.b16 %v1190
    %v1575 = vunpack.c.l.b16 %v1191
    %v1576 = vunpack.c.h.b16 %v1191
    %v1577 = vunpack.c.l.b16 %v1192
    %v1578 = vunpack.c.l.b16 %v1193
    %v1579 = vunpack.c.h.b16 %v1193
    %v1580 = vunpack.c.l.b16 %v1194
    %v1581 = vpack.c.b16 %v1557, %v1554
    %v1582 = vpack.c.b16 %v1558, %v1555
    %v1583 = vpack.c.b16 %v1559, %v1556
    %v1584 = vpack.c.b16 %v1563, %v1560
    %v1585 = vpack.c.b16 %v1564, %v1561
    %v1586 = vpack.c.b16 %v1565, %v1562
    %v1587 = vpack.c.b16 %v1569, %v1566
    %v1588 = vpack.c.b16 %v1570, %v1567
    %v1589 = vpack.c.b16 %v1571, %v1568
    %v1590 = vpack.c.b16 %v1575, %v1572
    %v1591 = vpack.c.b16 %v1576, %v1573
    %v1592 = vpack.c.b16 %v1577, %v1574
    %v1593 = vpack.c.b16 %v1578, %v1578
    %v1594 = vpack.c.b16 %v1579, %v1579
    %v1595 = vpack.c.b16 %v1580, %v1580
    %v1609 = vsel %vm1271, %v1593, 0
    %v1612 = vsel %vm1271, %v1594, 0
    %v1615 = vsel %vm1271, %v1595, 0
    %1617 = vmatprep.subr.bf16.mxu0 %v1582
    %1618 = vmatpush1.bf16.msra.mxu0 %v1581
    %1619 = vmatprep.subr.bf16.mxu0 %v1585
    %1620 = vmatpush1.bf16.msra.mxu0 %v1584
    %1621 = vmatprep.subr.bf16.mxu0 %v1588
    %1622 = vmatpush1.bf16.msra.mxu0 %v1587
    %1623 = vmatprep.subr.bf16.mxu0 %v1591
    %1624 = vmatpush1.bf16.msra.mxu0 %v1590
    %1625 = vmatprep.subr.bf16.mxu0 %v1612
    %1626 = vmatpush1.bf16.msra.mxu0 %v1609
    %1627 = vmatprep.subr.bf16.mxu0 0
    %1628 = vmatpush1.bf16.msra.mxu0 0
    %1629 = vmatprep.subr.bf16.mxu0 0
    %1630 = vmatpush1.bf16.msra.mxu0 0
    %1631 = vmatprep.subr.bf16.mxu0 0
    %1632 = vmatpush1.bf16.msra.mxu0 0
    %1633 = vmatprep.subr.bf16.mxu0 0
    %1634 = vmatpush1.bf16.msra.mxu0 0
    %1635 = vmatprep.subr.bf16.mxu0 0
    %1636 = vmatpush1.bf16.msra.mxu0 0
    %1637 = vmatprep.subr.bf16.mxu0 0
    %1638 = vmatpush1.bf16.msra.mxu0 0
    %1639 = vmatprep.subr.bf16.mxu0 0
    %1640 = vmatpush1.bf16.msra.mxu0 0
    %1641 = vmatprep.subr.bf16.mxu0 0
    %1642 = vmatpush1.bf16.msra.mxu0 0
    %1643 = vmatprep.subr.bf16.mxu0 0
    %1644 = vmatpush1.bf16.msra.mxu0 0
    %1645 = vmatprep.subr.bf16.mxu0 0
    %1646 = vmatpush1.bf16.msra.mxu0 0
    %1647 = vmatprep.subr.bf16.mxu0 0
    %1648 = vmatpush1.bf16.msra.mxu0 0
    %1649 = vmatprep.mubr.bf16.mxu0 0
    %1650 = vmatmul.mubr.bf16.gmra.mrb[0].mxu0 %v1269
    %v1651 = vpop.f32.mrb[0].mxu0
    %v1652 = vadd.f32 0.0, %v1651
    %v1653 = vpop.f32.mrb[0].mxu0
    %v1654 = vadd.f32 0.0, %v1653
    %v1655 = vpop.f32.mrb[0].mxu0
    %v1656 = vpop.f32.mrb[0].mxu0
    %1657 = vdwg.mxu0
    %1658 = vmatprep.subr.bf16.mxu0 0
    %1659 = vmatpush1.bf16.msra.mxu0 %v1583
    %1660 = vmatprep.subr.bf16.mxu0 0
    %1661 = vmatpush1.bf16.msra.mxu0 %v1586
    %1662 = vmatprep.subr.bf16.mxu0 0
    %1663 = vmatpush1.bf16.msra.mxu0 %v1589
    %1664 = vmatprep.subr.bf16.mxu0 0
    %1665 = vmatpush1.bf16.msra.mxu0 %v1592
    %1666 = vmatprep.subr.bf16.mxu0 0
    %1667 = vmatpush1.bf16.msra.mxu0 %v1615
    %1668 = vmatprep.subr.bf16.mxu0 0
    %1669 = vmatpush1.bf16.msra.mxu0 0
    %1670 = vmatprep.subr.bf16.mxu0 0
    %1671 = vmatpush1.bf16.msra.mxu0 0
    %1672 = vmatprep.subr.bf16.mxu0 0
    %1673 = vmatpush1.bf16.msra.mxu0 0
    %1674 = vmatprep.subr.bf16.mxu0 0
    %1675 = vmatpush1.bf16.msra.mxu0 0
    %1676 = vmatprep.subr.bf16.mxu0 0
    %1677 = vmatpush1.bf16.msra.mxu0 0
    %1678 = vmatprep.subr.bf16.mxu0 0
    %1679 = vmatpush1.bf16.msra.mxu0 0
    %1680 = vmatprep.subr.bf16.mxu0 0
    %1681 = vmatpush1.bf16.msra.mxu0 0
    %1682 = vmatprep.subr.bf16.mxu0 0
    %1683 = vmatpush1.bf16.msra.mxu0 0
    %1684 = vmatprep.subr.bf16.mxu0 0
    %1685 = vmatpush1.bf16.msra.mxu0 0
    %1686 = vmatprep.subr.bf16.mxu0 0
    %1687 = vmatpush1.bf16.msra.mxu0 0
    %1688 = vmatprep.subr.bf16.mxu0 0
    %1689 = vmatpush1.bf16.msra.mxu0 0
    %1690 = vmatprep.mubr.bf16.mxu0 0
    %1691 = vmatmul.mubr.bf16.gmra.mrb[0].mxu0 %v1269
    %v1692 = vpop.f32.mrb[0].mxu0
    %v1693 = vadd.f32 0.0, %v1692
    %v1694 = vpop.f32.mrb[0].mxu0
    %v1695 = vpop.f32.mrb[0].mxu0
    %v1696 = vpop.f32.mrb[0].mxu0
    %1697 = vdwg.mxu0
    %v1698 = vmul.f32 %v1652, %v309
    %v1699 = vmul.f32 %v1654, %v493
    %v1700 = vmul.f32 %v1693, %v657
    %v1701 = vadd.f32 %v1698, %v1699
    %v1702 = vadd.f32 %v1701, %v1700
    %v1703 = vpack.c.bf16 %v1702, %v1702
    %v1704 = vld [vmem:[%s13] sm:$0xf]
    %v1705 = vld [vmem:[%s13 + $0x4] sm:$0xf]
    %v1706 = vld [vmem:[%s13 + $0x8] sm:$0xf]
    %v1707 = vld [vmem:[%s13 + $0xc] sm:$0xf]
    %v1708 = vld [vmem:[%s13 + $0x10] sm:$0xf]
    %v1709 = vld [vmem:[%s13 + $0x14] sm:$0xf]
    %v1710 = vld [vmem:[%s13 + $0x18] sm:$0xf]
    %v1711 = vld [vmem:[%s13 + $0x1c] sm:$0xf]
    %v1712 = vld [vmem:[%s13 + $0x20] sm:$0xf]
    %v1713 = vld [vmem:[%s13 + $0x24] sm:$0xf]
    %v1714 = vld [vmem:[%s13 + $0x28] sm:$0xf]
    %v1715 = vld [vmem:[%s13 + $0x2c] sm:$0xf]
    %v1716 = vld [vmem:[%s13 + $0x30] sm:$0xf]
    %v1717 = vld [vmem:[%s13 + $0x34] sm:$0xf]
    %v1718 = vld [vmem:[%s13 + $0x38] sm:$0xf]
    %v1719 = vld [vmem:[%s13 + $0x3c] sm:$0xf]
    %v1720 = vld [vmem:[%s13 + $0x40] sm:$0xf]
    %v1721 = vld [vmem:[%s13 + $0x44] sm:$0xf]
    %v1722 = vld [vmem:[%s13 + $0x48] sm:$0xf]
    %v1723 = vld [vmem:[%s13 + $0x4c] sm:$0xf]
    %v1724 = vld [vmem:[%s13 + $0x50] sm:$0xf]
    %v1725 = vld [vmem:[%s13 + $0x54] sm:$0xf]
    %v1726 = vld [vmem:[%s13 + $0x58] sm:$0xf]
    %v1727 = vld [vmem:[%s13 + $0x5c] sm:$0xf]
    %v1728 = vld [vmem:[%s13 + $0x60] sm:$0xf]
    %v1729 = vld [vmem:[%s13 + $0x64] sm:$0xf]
    %v1730 = vld [vmem:[%s13 + $0x68] sm:$0xf]
    %v1731 = vld [vmem:[%s13 + $0x6c] sm:$0xf]
    %v1732 = vld [vmem:[%s13 + $0x70] sm:$0xf]
    %v1733 = vld [vmem:[%s13 + $0x74] sm:$0xf]
    %v1734 = vld [vmem:[%s13 + $0x78] sm:$0xf]
    %v1735 = vld [vmem:[%s13 + $0x7c] sm:$0xf]
    %v1736 = vld [vmem:[%s13 + $0x80] sm:$0xf]
    %v1737 = vld [vmem:[%s13 + $0x84] sm:$0xf]
    %v1738 = vld [vmem:[%s13 + $0x88] sm:$0xf]
    %v1739 = vld [vmem:[%s13 + $0x8c] sm:$0xf]
    %v1740 = vld [vmem:[%s13 + $0x90] sm:$0xf]
    %v1741 = vld [vmem:[%s13 + $0x94] sm:$0xf]
    %v1742 = vld [vmem:[%s13 + $0x98] sm:$0xf]
    %v1743 = vld [vmem:[%s13 + $0x9c] sm:$0xf]
    %v1744 = vld [vmem:[%s13 + $0xa0] sm:$0xf]
    %v1745 = vld [vmem:[%s13 + $0xa4] sm:$0xf]
    %v1746 = vld [vmem:[%s13 + $0xa8] sm:$0xf]
    %v1747 = vld [vmem:[%s13 + $0xac] sm:$0xf]
    %v1748 = vld [vmem:[%s13 + $0xb0] sm:$0xf]
    %v1749 = vld [vmem:[%s13 + $0xb4] sm:$0xf]
    %v1750 = vld [vmem:[%s13 + $0xb8] sm:$0xf]
    %v1751 = vld [vmem:[%s13 + $0xbc] sm:$0xf]
    %v1752 = vld [vmem:[%s14] sm:$0x1]
    %v1754 = vlaneseq
    %v1755 = vshrl.u32 %v1754, 7
    %v1756 = vsub.s32 0, %v1755
    %v1757 = vrot.slane %v1752, %v1756
    %v1807 = vunpack.c.l.b16 %v1704
    %v1808 = vunpack.c.l.b16 %v1705
    %v1809 = vunpack.c.l.b16 %v1706
    %v1810 = vunpack.c.l.b16 %v1707
    %v1811 = vunpack.c.l.b16 %v1708
    %v1812 = vunpack.c.l.b16 %v1709
    %v1813 = vunpack.c.l.b16 %v1710
    %v1814 = vunpack.c.l.b16 %v1711
    %v1815 = vunpack.c.l.b16 %v1712
    %v1816 = vunpack.c.l.b16 %v1713
    %v1817 = vunpack.c.l.b16 %v1714
    %v1818 = vunpack.c.l.b16 %v1715
    %v1819 = vunpack.c.l.b16 %v1716
    %v1820 = vunpack.c.l.b16 %v1717
    %v1821 = vunpack.c.l.b16 %v1718
    %v1822 = vunpack.c.l.b16 %v1719
    %v1823 = vunpack.c.l.b16 %v1720
    %v1824 = vunpack.c.l.b16 %v1721
    %v1825 = vunpack.c.l.b16 %v1722
    %v1826 = vunpack.c.l.b16 %v1723
    %v1827 = vunpack.c.l.b16 %v1724
    %v1828 = vunpack.c.l.b16 %v1725
    %v1829 = vunpack.c.l.b16 %v1726
    %v1830 = vunpack.c.l.b16 %v1727
    %v1831 = vunpack.c.l.b16 %v1728
    %v1832 = vunpack.c.l.b16 %v1729
    %v1833 = vunpack.c.l.b16 %v1730
    %v1834 = vunpack.c.l.b16 %v1731
    %v1835 = vunpack.c.l.b16 %v1732
    %v1836 = vunpack.c.l.b16 %v1733
    %v1837 = vunpack.c.l.b16 %v1734
    %v1838 = vunpack.c.l.b16 %v1735
    %v1839 = vunpack.c.l.b16 %v1736
    %v1840 = vunpack.c.l.b16 %v1737
    %v1841 = vunpack.c.l.b16 %v1738
    %v1842 = vunpack.c.l.b16 %v1739
    %v1843 = vunpack.c.l.b16 %v1740
    %v1844 = vunpack.c.l.b16 %v1741
    %v1845 = vunpack.c.l.b16 %v1742
    %v1846 = vunpack.c.l.b16 %v1743
    %v1847 = vunpack.c.l.b16 %v1744
    %v1848 = vunpack.c.l.b16 %v1745
    %v1849 = vunpack.c.l.b16 %v1746
    %v1850 = vunpack.c.l.b16 %v1747
    %v1851 = vunpack.c.l.b16 %v1748
    %v1852 = vunpack.c.l.b16 %v1749
    %v1853 = vunpack.c.l.b16 %v1750
    %v1854 = vunpack.c.l.b16 %v1751
    %v1855 = vpack.c.b16 %v1808, %v1807
    %v1856 = vpack.c.b16 %v1810, %v1809
    %v1857 = vpack.c.b16 %v1812, %v1811
    %v1858 = vpack.c.b16 %v1814, %v1813
    %v1859 = vpack.c.b16 %v1816, %v1815
    %v1860 = vpack.c.b16 %v1818, %v1817
    %v1861 = vpack.c.b16 %v1820, %v1819
    %v1862 = vpack.c.b16 %v1822, %v1821
    %v1863 = vpack.c.b16 %v1824, %v1823
    %v1864 = vpack.c.b16 %v1826, %v1825
    %v1865 = vpack.c.b16 %v1828, %v1827
    %v1866 = vpack.c.b16 %v1830, %v1829
    %v1867 = vpack.c.b16 %v1832, %v1831
    %v1868 = vpack.c.b16 %v1834, %v1833
    %v1869 = vpack.c.b16 %v1836, %v1835
    %v1870 = vpack.c.b16 %v1838, %v1837
    %v1871 = vpack.c.b16 %v1840, %v1839
    %v1872 = vpack.c.b16 %v1842, %v1841
    %v1873 = vpack.c.b16 %v1844, %v1843
    %v1874 = vpack.c.b16 %v1846, %v1845
    %v1875 = vpack.c.b16 %v1848, %v1847
    %v1876 = vpack.c.b16 %v1850, %v1849
    %v1877 = vpack.c.b16 %v1852, %v1851
    %v1878 = vpack.c.b16 %v1854, %v1853
    %1903 = vmatprep.subr.bf16.mxu0 0
    %1904 = vmatpush1.bf16.msra.mxu0 %v1855
    %1905 = vmatprep.subr.bf16.mxu0 0
    %1906 = vmatpush1.bf16.msra.mxu0 %v1856
    %1907 = vmatprep.subr.bf16.mxu0 0
    %1908 = vmatpush1.bf16.msra.mxu0 %v1857
    %1909 = vmatprep.subr.bf16.mxu0 0
    %1910 = vmatpush1.bf16.msra.mxu0 %v1858
    %1911 = vmatprep.subr.bf16.mxu0 0
    %1912 = vmatpush1.bf16.msra.mxu0 %v1859
    %1913 = vmatprep.subr.bf16.mxu0 0
    %1914 = vmatpush1.bf16.msra.mxu0 %v1860
    %1915 = vmatprep.subr.bf16.mxu0 0
    %1916 = vmatpush1.bf16.msra.mxu0 %v1861
    %1917 = vmatprep.subr.bf16.mxu0 0
    %1918 = vmatpush1.bf16.msra.mxu0 %v1862
    %1919 = vmatprep.subr.bf16.mxu0 0
    %1920 = vmatpush1.bf16.msra.mxu0 %v1863
    %1921 = vmatprep.subr.bf16.mxu0 0
    %1922 = vmatpush1.bf16.msra.mxu0 %v1864
    %1923 = vmatprep.subr.bf16.mxu0 0
    %1924 = vmatpush1.bf16.msra.mxu0 %v1865
    %1925 = vmatprep.subr.bf16.mxu0 0
    %1926 = vmatpush1.bf16.msra.mxu0 %v1866
    %1927 = vmatprep.subr.bf16.mxu0 0
    %1928 = vmatpush1.bf16.msra.mxu0 %v1867
    %1929 = vmatprep.subr.bf16.mxu0 0
    %1930 = vmatpush1.bf16.msra.mxu0 %v1868
    %1931 = vmatprep.subr.bf16.mxu0 0
    %1932 = vmatpush1.bf16.msra.mxu0 %v1869
    %1933 = vmatprep.subr.bf16.mxu0 0
    %1934 = vmatpush1.bf16.msra.mxu0 %v1870
    %1935 = vmatprep.mubr.bf16.mxu0 %v1535
    %1936 = vmatmul.mubr.bf16.gmra.mrb[0].mxu0 %v1367
    %v1937 = vpop.f32.mrb[0].mxu0
    %v1938 = vadd.f32 %v1757, %v1937
    %v1939 = vpop.f32.mrb[0].mxu0
    %v1940 = vpop.f32.mrb[0].mxu0
    %v1941 = vpop.f32.mrb[0].mxu0
    %1942 = vdwg.mxu0
    %1943 = vmatprep.subr.bf16.mxu0 0
    %1944 = vmatpush1.bf16.msra.mxu0 %v1871
    %1945 = vmatprep.subr.bf16.mxu0 0
    %1946 = vmatpush1.bf16.msra.mxu0 %v1872
    %1947 = vmatprep.subr.bf16.mxu0 0
    %1948 = vmatpush1.bf16.msra.mxu0 %v1873
    %1949 = vmatprep.subr.bf16.mxu0 0
    %1950 = vmatpush1.bf16.msra.mxu0 %v1874
    %1951 = vmatprep.subr.bf16.mxu0 0
    %1952 = vmatpush1.bf16.msra.mxu0 %v1875
    %1953 = vmatprep.subr.bf16.mxu0 0
    %1954 = vmatpush1.bf16.msra.mxu0 %v1876
    %1955 = vmatprep.subr.bf16.mxu0 0
    %1956 = vmatpush1.bf16.msra.mxu0 %v1877
    %1957 = vmatprep.subr.bf16.mxu0 0
    %1958 = vmatpush1.bf16.msra.mxu0 %v1878
    %1959 = vmatprep.subr.bf16.mxu0 0
    %1960 = vmatpush1.bf16.msra.mxu0 0
    %1961 = vmatprep.subr.bf16.mxu0 0
    %1962 = vmatpush1.bf16.msra.mxu0 0
    %1963 = vmatprep.subr.bf16.mxu0 0
    %1964 = vmatpush1.bf16.msra.mxu0 0
    %1965 = vmatprep.subr.bf16.mxu0 0
    %1966 = vmatpush1.bf16.msra.mxu0 0
    %1967 = vmatprep.subr.bf16.mxu0 0
    %1968 = vmatpush1.bf16.msra.mxu0 0
    %1969 = vmatprep.subr.bf16.mxu0 0
    %1970 = vmatpush1.bf16.msra.mxu0 0
    %1971 = vmatprep.subr.bf16.mxu0 0
    %1972 = vmatpush1.bf16.msra.mxu0 0
    %1973 = vmatprep.subr.bf16.mxu0 0
    %1974 = vmatpush1.bf16.msra.mxu0 0
    %1975 = vmatprep.mubr.bf16.mxu0 0
    %1976 = vmatmul.mubr.bf16.gmra.mrb[0].mxu0 %v1703
    %v1977 = vpop.f32.mrb[0].mxu0
    %v1978 = vadd.f32 %v1938, %v1977
    %v1979 = vpop.f32.mrb[0].mxu0
    %v1980 = vpop.f32.mrb[0].mxu0
    %v1981 = vpop.f32.mrb[0].mxu0
    %1982 = vdwg.mxu0
    %1983 = vst [vmem:[#allocation17] sm:$0xff] %v1978
    %v1984 = vld [vmem:[%s15] sm:$0xff]
    %v1985 = vld [vmem:[%s15 + $0x8] sm:$0xff]
    %v1986 = vld [vmem:[%s15 + $0x10] sm:$0xff]
    %v1987 = vld [vmem:[%s15 + $0x18] sm:$0xff]
    %v1988 = vld [vmem:[%s15 + $0x20] sm:$0xff]
    %v1989 = vld [vmem:[%s15 + $0x28] sm:$0xff]
    %v1990 = vld [vmem:[%s15 + $0x30] sm:$0xff]
    %v1991 = vld [vmem:[%s15 + $0x38] sm:$0xff]
    %v1992 = vld [vmem:[%s15 + $0x40] sm:$0xff]
    %v1994 = vsel %vm1267, %v1139, 0
    %1996 = vmatprep.subr.mxu0 0.0
    %1997 = vmatpush1.msra.mxu0 %v1984
    %1998 = vmatprep.subr.mxu0 0.0
    %1999 = vmatpush1.msra.mxu0 %v1985
    %2000 = vmatprep.subr.mxu0 0.0
    %2001 = vmatpush1.msra.mxu0 %v1986
    %2002 = vmatprep.subr.mxu0 0.0
    %2003 = vmatpush1.msra.mxu0 %v1987
    %2004 = vmatprep.subr.mxu0 0.0
    %2005 = vmatpush1.msra.mxu0 %v1988
    %2006 = vmatprep.subr.mxu0 0.0
    %2007 = vmatpush1.msra.mxu0 %v1989
    %2008 = vmatprep.subr.mxu0 0.0
    %2009 = vmatpush1.msra.mxu0 %v1990
    %2010 = vmatprep.subr.mxu0 0.0
    %2011 = vmatpush1.msra.mxu0 %v1991
    %2012 = vmatprep.subr.mxu0 0.0
    %2013 = vmatpush1.msra.mxu0 %v1992
    %2014 = vmatprep.subr.mxu0 0.0
    %2015 = vmatpush1.msra.mxu0 0.0
    %2016 = vmatprep.subr.mxu0 0.0
    %2017 = vmatpush1.msra.mxu0 0.0
    %2018 = vmatprep.subr.mxu0 0.0
    %2019 = vmatpush1.msra.mxu0 0.0
    %2020 = vmatprep.subr.mxu0 0.0
    %2021 = vmatpush1.msra.mxu0 0.0
    %2022 = vmatprep.subr.mxu0 0.0
    %2023 = vmatpush1.msra.mxu0 0.0
    %2024 = vmatprep.subr.mxu0 0.0
    %2025 = vmatpush1.msra.mxu0 0.0
    %2026 = vmatprep.subr.mxu0 0.0
    %2027 = vmatpush1.msra.mxu0 0.0
    %2028 = vmatprep.subr.mxu0 0.0
    %2029 = vmatpush1.msra.mxu0 0.0
    %2030 = vmatprep.subr.mxu0 0.0
    %2031 = vmatpush1.msra.mxu0 0.0
    %2032 = vmatprep.subr.mxu0 0.0
    %2033 = vmatpush1.msra.mxu0 0.0
    %2034 = vmatprep.subr.mxu0 0.0
    %2035 = vmatpush1.msra.mxu0 0.0
    %2036 = vmatprep.subr.mxu0 0.0
    %2037 = vmatpush1.msra.mxu0 0.0
    %2038 = vmatprep.subr.mxu0 0.0
    %2039 = vmatpush1.msra.mxu0 0.0
    %2040 = vmatprep.subr.mxu0 0.0
    %2041 = vmatpush1.msra.mxu0 0.0
    %2042 = vmatprep.subr.mxu0 0.0
    %2043 = vmatpush1.msra.mxu0 0.0
    %2044 = vmatprep.subr.mxu0 0.0
    %2045 = vmatpush1.msra.mxu0 0.0
    %2046 = vmatprep.subr.mxu0 0.0
    %2047 = vmatpush1.msra.mxu0 0.0
    %2048 = vmatprep.subr.mxu0 0.0
    %2049 = vmatpush1.msra.mxu0 0.0
    %2050 = vmatprep.subr.mxu0 0.0
    %2051 = vmatpush1.msra.mxu0 0.0
    %2052 = vmatprep.subr.mxu0 0.0
    %2053 = vmatpush1.msra.mxu0 0.0
    %2054 = vmatprep.subr.mxu0 0.0
    %2055 = vmatpush1.msra.mxu0 0.0
    %2056 = vmatprep.subr.mxu0 0.0
    %2057 = vmatpush1.msra.mxu0 0.0
    %2058 = vmatprep.subr.mxu0 0.0
    %2059 = vmatpush1.msra.mxu0 0.0
    %2060 = vmatprep.mubr.f32.mxu0 0.0
    %2061 = vmatmul.mubr.f32.gmra.mrb[0].mxu0 %v1994
    %v2062 = vpop.f32.mrb[0].mxu0
    %v2063 = vadd.f32 0.0, %v2062
    %v2064 = vpop.f32.mrb[0].mxu0
    %2065 = vdwg.mxu0
    %vm2066 = vcmask 130048
    %2067 = vst.msk [vmem:[#allocation18] sm:$0xff] %vm2066, %v2063
    // Predicated region
    $region102: #{tpu_custom_call.1} parent=1 // pred_check
      _
    $region103: #{tpu_custom_call.1} parent=1 // pred_check_branch
      %2069 = sbr.rel (0) target = $region105
    $region104: #{tpu_custom_call.1} parent=1 // pred_region
      %s2071 = ssub.s32 128, 128
      %2072 = vsyncadd [#allocation4], %s2071
      %s2074 = sshll.u32 [#allocation17], 4
      %s2075 = int_to_ptr.vmem [resolvable:$true] %s2074
      %2077 = dma.vmem_to_hbm [thread:$0]  %s2075, 128, %s16, [#allocation4]
    $region105: #{tpu_custom_call.1} parent=1 // pred_fallthru
      _
    // Predicated region
    $region106: #{tpu_custom_call.1} parent=1 // pred_check
      _
    $region107: #{tpu_custom_call.1} parent=1 // pred_check_branch
      %2079 = sbr.rel (0) target = $region109
    $region108: #{tpu_custom_call.1} parent=1 // pred_region
      %s2081 = ssub.s32 128, 128
      %2082 = vsyncadd [#allocation19], %s2081
      %s2084 = sshll.u32 [#allocation18], 4
      %s2085 = int_to_ptr.vmem [resolvable:$true] %s2084
      %2087 = dma.vmem_to_hbm [thread:$0]  %s2085, 128, %s17, [#allocation19]
    $region109: #{tpu_custom_call.1} parent=1 // pred_fallthru
      _
    // Predicated region
    $region110: #{tpu_custom_call.1} parent=1 // pred_check
      _
    $region111: #{tpu_custom_call.1} parent=1 // pred_check_branch
      %2089 = sbr.rel (0) target = $region113
    $region112: #{tpu_custom_call.1} parent=1 // pred_region
      %2090 = dma.done [#allocation4], 128
    $region113: #{tpu_custom_call.1} parent=1 // pred_fallthru
      _
    // Predicated region
    $region114: #{tpu_custom_call.1} parent=1 // pred_check
      _
    $region115: #{tpu_custom_call.1} parent=1 // pred_check_branch
      %2092 = sbr.rel (0) target = $region117
    $region116: #{tpu_custom_call.1} parent=1 // pred_region
      %2093 = dma.done [#allocation19], 128
    $region117: #{tpu_custom_call.1} parent=1 // pred_fallthru
      _
    %2094 = vsyncpa [#allocation3], 1
    %2095 = vsyncpa [#allocation6], 1
    %2096 = vsyncpa [#allocation9], 1
    %2097 = vsyncpa [#allocation12], 1
    %2098 = vsyncpa [#allocation15], 1
    %2099 = vsyncpa [#allocation4], 1
    %2100 = vsyncpa [#allocation19], 1

</llo_original>
